<compile_context>
chip_gen: v6e
topology: v6e:2x2x1
jax: 0.10.0
libtpu: 0.0.40
codegen_flags: <defaults>
</compile_context>

<pallas_src>
import functools
from collections import Counter

import jax
import jax.numpy as jnp
import numpy as np
from jax.experimental import pallas as pl
from jax.experimental.pallas import tpu as pltpu

_LANE = 128          # lane width == inner reduction chunk
_BATCH_TILE = 8      # sublane-aligned batch rows per grid step


def _round_up(x, m):
    return (x + m - 1) // m * m


def _rouge1_kernel(tgt_ref, hyp_ref, f1_ref, cref_sc, occ_sc):
    # tgt_ref : (Bt, Lt) int32  reference token ids (zero padded)
    # hyp_ref : (Bt, Lo) int32  hypothesis token ids (zero padded)
    # f1_ref  : (Bt, 1)  f32    per-example ROUGE-1 F1
    # cref_sc : (Bt, Lo) f32    per-hyp-position count of matching ref tokens
    # occ_sc  : (Bt, Lo) f32    per-hyp-position earlier-duplicate rank
    Bt, Lt = tgt_ref.shape
    _, Lo = hyp_ref.shape

    hyp = hyp_ref[...]
    valid_hyp = jnp.logical_and(hyp != 0, hyp != 1)          # (Bt, Lo) bool
    hyp_m = jnp.where(valid_hyp, hyp, -1)                    # sentinel -1

    cref_sc[...] = jnp.zeros_like(cref_sc)
    occ_sc[...] = jnp.zeros_like(occ_sc)

    # ---- c_ref[b, j] = # valid ref tokens equal to hyp token j -------------
    for c in range(Lt // _LANE):
        ref_c = tgt_ref[:, c * _LANE:(c + 1) * _LANE]        # (Bt, CK) int32
        ref_m = jnp.where(jnp.logical_and(ref_c != 0, ref_c != 1), ref_c, -2)
        eq = hyp_m[:, :, None] == ref_m[:, None, :]          # (Bt, Lo, CK) bool
        cref_sc[...] += jnp.sum(eq.astype(jnp.float32), axis=-1)

    # ---- occ[b, j] = # earlier valid occurrences of hyp token j in hyp -----
    j_idx = jax.lax.broadcasted_iota(jnp.int32, (Lo, _LANE), 0)   # hoisted
    k_loc = jax.lax.broadcasted_iota(jnp.int32, (Lo, _LANE), 1)   # hoisted
    for c in range(Lo // _LANE):
        hyp_c = hyp_ref[:, c * _LANE:(c + 1) * _LANE]        # (Bt, CK) int32
        hyp_mc = jnp.where(jnp.logical_and(hyp_c != 0, hyp_c != 1), hyp_c, -1)
        eq = hyp_m[:, :, None] == hyp_mc[:, None, :]         # (Bt, Lo, CK) bool
        prior = (k_loc + c * _LANE) < j_idx                  # (Lo, CK) bool
        hit = jnp.logical_and(eq, prior[None, :, :])
        occ_sc[...] += jnp.sum(hit.astype(jnp.float32), axis=-1)

    # ---- clipped-overlap F1 -------------------------------------------------
    # hyp position j contributes iff its (valid) duplicate rank is below the
    # ref count of its token  =>  sum_j match == sum_w min(cnt_ref, cnt_hyp)
    match = jnp.logical_and(valid_hyp, occ_sc[...] < cref_sc[...])
    overlap = jnp.sum(match.astype(jnp.float32), axis=-1, keepdims=True)  # (Bt,1)
    n_hyp = jnp.sum(valid_hyp.astype(jnp.float32), axis=-1, keepdims=True)

    tgt = tgt_ref[...]
    valid_ref = jnp.logical_and(tgt != 0, tgt != 1)
    n_ref = jnp.sum(valid_ref.astype(jnp.float32), axis=-1, keepdims=True)

    # F1 = 2PR/(P+R) = 2*overlap/(n_ref+n_hyp) whenever overlap > 0, else 0.
    denom = n_ref + n_hyp
    inv = pl.reciprocal(jnp.maximum(denom, 1.0), approx=True)
    f1_ref[...] = jnp.where(overlap > 0.0, 2.0 * overlap * inv, 0.0)


@functools.partial(jax.jit, static_argnames=("batch_tile",))
def rouge1_score_forward(outputs, targets, batch_tile=_BATCH_TILE):
    """Mirrors Rouge1Score.forward(outputs, targets) -> scalar f32 batch-mean F1."""
    hyp = outputs.astype(jnp.int32)
    tgt = targets.astype(jnp.int32)
    B, Lo = hyp.shape
    _, Lt = tgt.shape

    Bt = batch_tile                      # multiple of 8 (sublanes)
    B_p = _round_up(B, Bt)
    Lo_p = _round_up(Lo, _LANE)
    Lt_p = _round_up(Lt, _LANE)

    # token id 0 is an ignore token -> zero padding is semantically inert
    hyp_p = jnp.pad(hyp, ((0, B_p - B), (0, Lo_p - Lo)))
    tgt_p = jnp.pad(tgt, ((0, B_p - B), (0, Lt_p - Lt)))

    f1 = pl.pallas_call(
        _rouge1_kernel,
        out_shape=jax.ShapeDtypeStruct((B_p, 1), jnp.float32),
        grid_spec=pltpu.PrefetchScalarGridSpec(
            num_scalar_prefetch=0,
            grid=(B_p // Bt,),
            in_specs=[
                pl.BlockSpec((Bt, Lt_p), lambda b: (b, 0)),
                pl.BlockSpec((Bt, Lo_p), lambda b: (b, 0)),
            ],
            out_specs=pl.BlockSpec((Bt, 1), lambda b: (b, 0)),
            scratch_shapes=[
                pltpu.VMEM((Bt, Lo_p), jnp.float32),   # c_ref accumulator
                pltpu.VMEM((Bt, Lo_p), jnp.float32),   # occ accumulator
            ],
        ),
        compiler_params=pltpu.CompilerParams(
            dimension_semantics=("parallel",),
        ),
    )(tgt_p, hyp_p)

    # batch mean over the *true* batch only (padded rows excluded)
    return jnp.sum(f1[:B, 0]) / jnp.float32(B)


def _rouge1_reference(targets, outputs, ignore=(0, 1)):
    f1s = []
    for r_row, h_row in zip(np.asarray(targets), np.asarray(outputs)):
        r = [int(t) for t in r_row if int(t) not in ignore]
        h = [int(t) for t in h_row if int(t) not in ignore]
        cr, ch = Counter(r), Counter(h)
        overlap = sum(min(cr[w], ch[w]) for w in ch)
        p = overlap / len(h) if len(h) > 0 else 0.0
        rc = overlap / len(r) if len(r) > 0 else 0.0
        f1 = 2.0 * p * rc / (p + rc) if (p + rc) > 0 else 0.0
        f1s.append(f1)
    return float(np.mean(f1s))


if __name__ == "__main__":
    key = jax.random.PRNGKey(0)
    k1, k2 = jax.random.split(key)
    B, Lt, Lo = 2, 10, 8
    # small vocab so ignore tokens (0, 1) and repeated tokens actually occur
    targets = jax.random.randint(k1, (B, Lt), 0, 12, dtype=jnp.int32)
    outputs = jax.random.randint(k2, (B, Lo), 0, 12, dtype=jnp.int32)

    f1 = rouge1_score_forward(outputs, targets)
    f1 = jax.block_until_ready(f1)

    ref = _rouge1_reference(targets, outputs)
    # tolerance loosened slightly: epilogue uses the EUP approximate reciprocal
    assert abs(float(f1) - ref) < 1e-3, (float(f1), ref)
    print("KERNEL_OK")
</pallas_src>

<mosaic_0001>
module attributes {stable_mosaic.version = 11 : i64} {
  func.func @_rouge1_kernel(%arg0: i32, %arg1: memref<8x128xi32, #tpu.memory_space<vmem>>, %arg2: memref<8x128xi32, #tpu.memory_space<vmem>>, %arg3: memref<8x1xf32, #tpu.memory_space<vmem>>, %arg4: memref<8x128xf32, #tpu.memory_space<vmem>>, %arg5: memref<8x128xf32, #tpu.memory_space<vmem>>) attributes {dimension_semantics = [#tpu.dimension_semantics<parallel>], iteration_bounds = array<i64: 1>, scalar_prefetch = 0 : i64, scratch_operands = 2 : i64, tpu.core_type = #tpu.core_type<tc>, window_params = [{transform_indices = @transform_0, window_bounds = array<i64: 8, 128>}, {transform_indices = @transform_1, window_bounds = array<i64: 8, 128>}, {transform_indices = @transform_2, window_bounds = array<i64: 8, 1>}]} {
    %c0 = arith.constant 0 : index
    %c0_0 = arith.constant 0 : index
    %0 = vector.load %arg2[%c0, %c0_0] : memref<8x128xi32, #tpu.memory_space<vmem>>, vector<8x128xi32>
    %c0_i32 = arith.constant 0 : i32
    %1 = vector.broadcast %c0_i32 : i32 to vector<8x128xi32>
    %2 = arith.cmpi ne, %0, %1 : vector<8x128xi32>
    %c1_i32 = arith.constant 1 : i32
    %3 = vector.broadcast %c1_i32 : i32 to vector<8x128xi32>
    %4 = arith.cmpi ne, %0, %3 : vector<8x128xi32>
    %5 = arith.andi %2, %4 : vector<8x128xi1>
    %c-1_i32 = arith.constant -1 : i32
    %6 = vector.broadcast %c-1_i32 : i32 to vector<8x128xi32>
    %7 = arith.select %5, %0, %6 : vector<8x128xi1>, vector<8x128xi32>
    %cst = arith.constant 0.000000e+00 : f32
    %8 = vector.broadcast %cst : f32 to vector<8x128xf32>
    %c0_1 = arith.constant 0 : index
    %c0_2 = arith.constant 0 : index
    %9 = vector.load %arg4[%c0_1, %c0_2] : memref<8x128xf32, #tpu.memory_space<vmem>>, vector<8x128xf32>
    tpu.vector_store %arg4[%c0_1, %c0_2], %8 {strides = array<i32>} : memref<8x128xf32, #tpu.memory_space<vmem>>, vector<8x128xf32>,
    %cst_3 = arith.constant 0.000000e+00 : f32
    %10 = vector.broadcast %cst_3 : f32 to vector<8x128xf32>
    %c0_4 = arith.constant 0 : index
    %c0_5 = arith.constant 0 : index
    %11 = vector.load %arg5[%c0_4, %c0_5] : memref<8x128xf32, #tpu.memory_space<vmem>>, vector<8x128xf32>
    tpu.vector_store %arg5[%c0_4, %c0_5], %10 {strides = array<i32>} : memref<8x128xf32, #tpu.memory_space<vmem>>, vector<8x128xf32>,
    %c0_6 = arith.constant 0 : index
    %c0_7 = arith.constant 0 : index
    %12 = vector.load %arg1[%c0_6, %c0_7] : memref<8x128xi32, #tpu.memory_space<vmem>>, vector<8x128xi32>
    %c0_i32_8 = arith.constant 0 : i32
    %13 = vector.broadcast %c0_i32_8 : i32 to vector<8x128xi32>
    %14 = arith.cmpi ne, %12, %13 : vector<8x128xi32>
    %c1_i32_9 = arith.constant 1 : i32
    %15 = vector.broadcast %c1_i32_9 : i32 to vector<8x128xi32>
    %16 = arith.cmpi ne, %12, %15 : vector<8x128xi32>
    %17 = arith.andi %14, %16 : vector<8x128xi1>
    %c-2_i32 = arith.constant -2 : i32
    %18 = vector.broadcast %c-2_i32 : i32 to vector<8x128xi32>
    %19 = arith.select %17, %12, %18 : vector<8x128xi1>, vector<8x128xi32>
    %20 = vector.shape_cast %7 : vector<8x128xi32> to vector<8x128x1xi32>
    %21 = vector.shape_cast %19 : vector<8x128xi32> to vector<8x1x128xi32>
    %22 = vector.broadcast %20 : vector<8x128x1xi32> to vector<8x128x128xi32>
    %23 = vector.broadcast %21 : vector<8x1x128xi32> to vector<8x128x128xi32>
    %24 = arith.cmpi eq, %22, %23 : vector<8x128x128xi32>
    %c0_10 = arith.constant 0 : index
    %c0_11 = arith.constant 0 : index
    %25 = vector.load %arg4[%c0_10, %c0_11] : memref<8x128xf32, #tpu.memory_space<vmem>>, vector<8x128xf32>
    %26 = arith.extui %24 : vector<8x128x128xi1> to vector<8x128x128xi32>
    %27 = arith.sitofp %26 : vector<8x128x128xi32> to vector<8x128x128xf32>
    %cst_12 = arith.constant dense<0.000000e+00> : vector<8x128xf32>
    %28 = vector.multi_reduction <add>, %27, %cst_12 [2] : vector<8x128x128xf32> to vector<8x128xf32>
    %29 = arith.addf %25, %28 : vector<8x128xf32>
    %c0_13 = arith.constant 0 : index
    %c0_14 = arith.constant 0 : index
    %30 = vector.load %arg4[%c0_13, %c0_14] : memref<8x128xf32, #tpu.memory_space<vmem>>, vector<8x128xf32>
    tpu.vector_store %arg4[%c0_13, %c0_14], %29 {strides = array<i32>} : memref<8x128xf32, #tpu.memory_space<vmem>>, vector<8x128xf32>,
    %31 = tpu.iota {dimensions = array<i32: 0>} : vector<128x128xi32>
    %32 = tpu.iota {dimensions = array<i32: 1>} : vector<128x128xi32>
    %c0_15 = arith.constant 0 : index
    %c0_16 = arith.constant 0 : index
    %33 = vector.load %arg2[%c0_15, %c0_16] : memref<8x128xi32, #tpu.memory_space<vmem>>, vector<8x128xi32>
    %c0_i32_17 = arith.constant 0 : i32
    %34 = vector.broadcast %c0_i32_17 : i32 to vector<8x128xi32>
    %35 = arith.cmpi ne, %33, %34 : vector<8x128xi32>
    %c1_i32_18 = arith.constant 1 : i32
    %36 = vector.broadcast %c1_i32_18 : i32 to vector<8x128xi32>
    %37 = arith.cmpi ne, %33, %36 : vector<8x128xi32>
    %38 = arith.andi %35, %37 : vector<8x128xi1>
    %c-1_i32_19 = arith.constant -1 : i32
    %39 = vector.broadcast %c-1_i32_19 : i32 to vector<8x128xi32>
    %40 = arith.select %38, %33, %39 : vector<8x128xi1>, vector<8x128xi32>
    %41 = vector.shape_cast %7 : vector<8x128xi32> to vector<8x128x1xi32>
    %42 = vector.shape_cast %40 : vector<8x128xi32> to vector<8x1x128xi32>
    %43 = vector.broadcast %41 : vector<8x128x1xi32> to vector<8x128x128xi32>
    %44 = vector.broadcast %42 : vector<8x1x128xi32> to vector<8x128x128xi32>
    %45 = arith.cmpi eq, %43, %44 : vector<8x128x128xi32>
    %c0_i32_20 = arith.constant 0 : i32
    %46 = vector.broadcast %c0_i32_20 : i32 to vector<128x128xi32>
    %47 = arith.addi %32, %46 : vector<128x128xi32>
    %48 = arith.cmpi slt, %47, %31 : vector<128x128xi32>
    %49 = vector.shape_cast %48 : vector<128x128xi1> to vector<1x128x128xi1>
    %50 = vector.broadcast %49 : vector<1x128x128xi1> to vector<8x128x128xi1>
    %51 = arith.andi %45, %50 : vector<8x128x128xi1>
    %c0_21 = arith.constant 0 : index
    %c0_22 = arith.constant 0 : index
    %52 = vector.load %arg5[%c0_21, %c0_22] : memref<8x128xf32, #tpu.memory_space<vmem>>, vector<8x128xf32>
    %53 = arith.extui %51 : vector<8x128x128xi1> to vector<8x128x128xi32>
    %54 = arith.sitofp %53 : vector<8x128x128xi32> to vector<8x128x128xf32>
    %cst_23 = arith.constant dense<0.000000e+00> : vector<8x128xf32>
    %55 = vector.multi_reduction <add>, %54, %cst_23 [2] : vector<8x128x128xf32> to vector<8x128xf32>
    %56 = arith.addf %52, %55 : vector<8x128xf32>
    %c0_24 = arith.constant 0 : index
    %c0_25 = arith.constant 0 : index
    %57 = vector.load %arg5[%c0_24, %c0_25] : memref<8x128xf32, #tpu.memory_space<vmem>>, vector<8x128xf32>
    tpu.vector_store %arg5[%c0_24, %c0_25], %56 {strides = array<i32>} : memref<8x128xf32, #tpu.memory_space<vmem>>, vector<8x128xf32>,
    %c0_26 = arith.constant 0 : index
    %c0_27 = arith.constant 0 : index
    %58 = vector.load %arg5[%c0_26, %c0_27] : memref<8x128xf32, #tpu.memory_space<vmem>>, vector<8x128xf32>
    %c0_28 = arith.constant 0 : index
    %c0_29 = arith.constant 0 : index
    %59 = vector.load %arg4[%c0_28, %c0_29] : memref<8x128xf32, #tpu.memory_space<vmem>>, vector<8x128xf32>
    %60 = arith.cmpf olt, %58, %59 : vector<8x128xf32>
    %61 = arith.andi %5, %60 : vector<8x128xi1>
    %62 = arith.extui %61 : vector<8x128xi1> to vector<8x128xi32>
    %63 = arith.sitofp %62 : vector<8x128xi32> to vector<8x128xf32>
    %cst_30 = arith.constant dense<0.000000e+00> : vector<8xf32>
    %64 = vector.multi_reduction <add>, %63, %cst_30 [1] : vector<8x128xf32> to vector<8xf32>
    %65 = vector.shape_cast %64 : vector<8xf32> to vector<8x1xf32>
    %66 = arith.extui %5 : vector<8x128xi1> to vector<8x128xi32>
    %67 = arith.sitofp %66 : vector<8x128xi32> to vector<8x128xf32>
    %cst_31 = arith.constant dense<0.000000e+00> : vector<8xf32>
    %68 = vector.multi_reduction <add>, %67, %cst_31 [1] : vector<8x128xf32> to vector<8xf32>
    %69 = vector.shape_cast %68 : vector<8xf32> to vector<8x1xf32>
    %c0_32 = arith.constant 0 : index
    %c0_33 = arith.constant 0 : index
    %70 = vector.load %arg1[%c0_32, %c0_33] : memref<8x128xi32, #tpu.memory_space<vmem>>, vector<8x128xi32>
    %c0_i32_34 = arith.constant 0 : i32
    %71 = vector.broadcast %c0_i32_34 : i32 to vector<8x128xi32>
    %72 = arith.cmpi ne, %70, %71 : vector<8x128xi32>
    %c1_i32_35 = arith.constant 1 : i32
    %73 = vector.broadcast %c1_i32_35 : i32 to vector<8x128xi32>
    %74 = arith.cmpi ne, %70, %73 : vector<8x128xi32>
    %75 = arith.andi %72, %74 : vector<8x128xi1>
    %76 = arith.extui %75 : vector<8x128xi1> to vector<8x128xi32>
    %77 = arith.sitofp %76 : vector<8x128xi32> to vector<8x128xf32>
    %cst_36 = arith.constant dense<0.000000e+00> : vector<8xf32>
    %78 = vector.multi_reduction <add>, %77, %cst_36 [1] : vector<8x128xf32> to vector<8xf32>
    %79 = vector.shape_cast %78 : vector<8xf32> to vector<8x1xf32>
    %80 = arith.addf %79, %69 : vector<8x1xf32>
    %cst_37 = arith.constant 1.000000e+00 : f32
    %81 = vector.broadcast %cst_37 : f32 to vector<8x1xf32>
    %82 = arith.maximumf %80, %81 : vector<8x1xf32>
    %83 = tpu.reciprocal %82 {approx = true} : vector<8x1xf32> -> vector<8x1xf32>
    %cst_38 = arith.constant 0.000000e+00 : f32
    %84 = vector.broadcast %cst_38 : f32 to vector<8x1xf32>
    %85 = arith.cmpf ogt, %65, %84 : vector<8x1xf32>
    %cst_39 = arith.constant 2.000000e+00 : f32
    %86 = vector.broadcast %cst_39 : f32 to vector<8x1xf32>
    %87 = arith.mulf %86, %65 : vector<8x1xf32>
    %88 = arith.mulf %87, %83 : vector<8x1xf32>
    %cst_40 = arith.constant 0.000000e+00 : f32
    %89 = vector.broadcast %cst_40 : f32 to vector<8x1xf32>
    %90 = arith.select %85, %88, %89 : vector<8x1xi1>, vector<8x1xf32>
    %c0_41 = arith.constant 0 : index
    %c0_42 = arith.constant 0 : index
    %91 = vector.load %arg3[%c0_41, %c0_42] : memref<8x1xf32, #tpu.memory_space<vmem>>, vector<8x1xf32>
    tpu.vector_store %arg3[%c0_41, %c0_42], %90 {strides = array<i32>} : memref<8x1xf32, #tpu.memory_space<vmem>>, vector<8x1xf32>,
    return
  }
  func.func @transform_0(%arg0: i32) -> (i32, i32) {
    %c0_i32 = arith.constant 0 : i32
    %c0_i32_0 = arith.constant 0 : i32
    return %arg0, %c0_i32 : i32, i32
  }
  func.func @transform_1(%arg0: i32) -> (i32, i32) {
    %c0_i32 = arith.constant 0 : i32
    %c0_i32_0 = arith.constant 0 : i32
    return %arg0, %c0_i32 : i32, i32
  }
  func.func @transform_2(%arg0: i32) -> (i32, i32) {
    %c0_i32 = arith.constant 0 : i32
    %c0_i32_0 = arith.constant 0 : i32
    return %arg0, %c0_i32 : i32, i32
  }
}

</mosaic_0001>

<llo_original>
// kernel: rouge1_score_forward.1
$region0: #{rouge1_score_forward.1}
  #allocation0 [shape = 'u32[]', space=smem, size = 0x4, offset = 0x4, fixed_abs, tag = 'smem constant byte address 0x4 - core index']
  #allocation1 [shape = 'u32[144,128]{1,0:T(1,128)}', space=vmem, size = 0x12000, scoped, tag = 'internal scratch']
  #allocation2 [shape = 'f32[8,128]{1,0:T(8,128)}', space=vmem, size = 0x1000, scoped, tag = 'scratch operand']
  #allocation3 [shape = 'f32[8,128]{1,0:T(8,128)}', space=vmem, size = 0x1000, scoped, tag = 'scratch operand']
  %s0 = inlined_call_operand.vmem [shape: s32[8,128], index: 0, kind: input, shape index: {}]
  %s1 = inlined_call_operand.vmem [shape: s32[8,128], index: 1, kind: input, shape index: {}]
  %s2 = inlined_call_operand.vmem [shape: f32[8,1], index: 2, kind: output, shape index: {}]
  %s3 = sld [smem:[#allocation0]]
  $region18: #{rouge1_score_forward.1} parent=0
    _
  %s5 = ssub.s32 1, %s3
  %s6 = scalar_select 0, %s5, %s3
  // Predicated region
  $region2: #{rouge1_score_forward.1} parent=0 // pred_check
    _
  $region3: #{rouge1_score_forward.1} parent=0 // pred_check_branch
    %8 = sbr.rel (0) target = $region5
  $region4: #{rouge1_score_forward.1} parent=0 // pred_region
    _
  $region5: #{rouge1_score_forward.1} parent=0 // pred_fallthru
    _
  // Predicated region
  $region6: #{rouge1_score_forward.1} parent=0 // pred_check
    _
  $region7: #{rouge1_score_forward.1} parent=0 // pred_check_branch
    %10 = sbr.rel (0) target = $region9
  $region8: #{rouge1_score_forward.1} parent=0 // pred_region
    _
  $region9: #{rouge1_score_forward.1} parent=0 // pred_fallthru
    _
  %v11 = vld [vmem:[%s1] sm:$0xff]
  %vm12 = vcmp.ne.s32.totalorder %v11, 0
  %vm13 = vcmp.ne.s32.totalorder %v11, 1
  %vm14 = vmand %vm12, %vm13
  %v15 = vsel %vm14, %v11, 4294967295
  %16 = vst [vmem:[#allocation2] sm:$0xff] 0.0
  %17 = vst [vmem:[#allocation3] sm:$0xff] 0.0
  %v18 = vld [vmem:[%s0] sm:$0xff]
  %vm19 = vcmp.ne.s32.totalorder %v18, 0
  %vm20 = vcmp.ne.s32.totalorder %v18, 1
  %vm21 = vmand %vm19, %vm20
  %v22 = vsel %vm21, %v18, 4294967294
  %v23 = vlaneseq
  %v24 = vshrl.u32 %v23, 7
  %v25 = vsub.s32 0, %v24
  %v26 = vrot.slane %v15, %v25
  %28 = vbcast.lane.b32.xlu0 %v26, 256
  %v29 = vpop.permute.xlu0 %28
  %s31 = sor.u32 256, 8
  %32 = vbcast.lane.b32.xlu0 %v26, %s31
  %v33 = vpop.permute.xlu0 %32
  %s35 = sor.u32 256, 16
  %36 = vbcast.lane.b32.xlu0 %v26, %s35
  %v37 = vpop.permute.xlu0 %36
  %s39 = sor.u32 256, 24
  %40 = vbcast.lane.b32.xlu0 %v26, %s39
  %v41 = vpop.permute.xlu0 %40
  %s43 = sor.u32 256, 32
  %44 = vbcast.lane.b32.xlu0 %v26, %s43
  %v45 = vpop.permute.xlu0 %44
  %s47 = sor.u32 256, 40
  %48 = vbcast.lane.b32.xlu0 %v26, %s47
  %v49 = vpop.permute.xlu0 %48
  %s51 = sor.u32 256, 48
  %52 = vbcast.lane.b32.xlu0 %v26, %s51
  %v53 = vpop.permute.xlu0 %52
  %s55 = sor.u32 256, 56
  %56 = vbcast.lane.b32.xlu0 %v26, %s55
  %v57 = vpop.permute.xlu0 %56
  %s59 = sor.u32 256, 64
  %60 = vbcast.lane.b32.xlu0 %v26, %s59
  %v61 = vpop.permute.xlu0 %60
  %s63 = sor.u32 256, 72
  %64 = vbcast.lane.b32.xlu0 %v26, %s63
  %v65 = vpop.permute.xlu0 %64
  %s67 = sor.u32 256, 80
  %68 = vbcast.lane.b32.xlu0 %v26, %s67
  %v69 = vpop.permute.xlu0 %68
  %s71 = sor.u32 256, 88
  %72 = vbcast.lane.b32.xlu0 %v26, %s71
  %v73 = vpop.permute.xlu0 %72
  %s75 = sor.u32 256, 96
  %76 = vbcast.lane.b32.xlu0 %v26, %s75
  %v77 = vpop.permute.xlu0 %76
  %s79 = sor.u32 256, 104
  %80 = vbcast.lane.b32.xlu0 %v26, %s79
  %v81 = vpop.permute.xlu0 %80
  %s83 = sor.u32 256, 112
  %84 = vbcast.lane.b32.xlu0 %v26, %s83
  %v85 = vpop.permute.xlu0 %84
  %s87 = sor.u32 256, 120
  %88 = vbcast.lane.b32.xlu0 %v26, %s87
  %v89 = vpop.permute.xlu0 %88
  %v90 = vlaneseq
  %v91 = vshrl.u32 %v90, 7
  %v92 = vsub.s32 1, %v91
  %v93 = vrot.slane %v15, %v92
  %95 = vbcast.lane.b32.xlu0 %v93, 256
  %v96 = vpop.permute.xlu0 %95
  %s98 = sor.u32 256, 8
  %99 = vbcast.lane.b32.xlu0 %v93, %s98
  %v100 = vpop.permute.xlu0 %99
  %s102 = sor.u32 256, 16
  %103 = vbcast.lane.b32.xlu0 %v93, %s102
  %v104 = vpop.permute.xlu0 %103
  %s106 = sor.u32 256, 24
  %107 = vbcast.lane.b32.xlu0 %v93, %s106
  %v108 = vpop.permute.xlu0 %107
  %s110 = sor.u32 256, 32
  %111 = vbcast.lane.b32.xlu0 %v93, %s110
  %v112 = vpop.permute.xlu0 %111
  %s114 = sor.u32 256, 40
  %115 = vbcast.lane.b32.xlu0 %v93, %s114
  %v116 = vpop.permute.xlu0 %115
  %s118 = sor.u32 256, 48
  %119 = vbcast.lane.b32.xlu0 %v93, %s118
  %v120 = vpop.permute.xlu0 %119
  %s122 = sor.u32 256, 56
  %123 = vbcast.lane.b32.xlu0 %v93, %s122
  %v124 = vpop.permute.xlu0 %123
  %s126 = sor.u32 256, 64
  %127 = vbcast.lane.b32.xlu0 %v93, %s126
  %v128 = vpop.permute.xlu0 %127
  %s130 = sor.u32 256, 72
  %131 = vbcast.lane.b32.xlu0 %v93, %s130
  %v132 = vpop.permute.xlu0 %131
  %s134 = sor.u32 256, 80
  %135 = vbcast.lane.b32.xlu0 %v93, %s134
  %v136 = vpop.permute.xlu0 %135
  %s138 = sor.u32 256, 88
  %139 = vbcast.lane.b32.xlu0 %v93, %s138
  %v140 = vpop.permute.xlu0 %139
  %s142 = sor.u32 256, 96
  %143 = vbcast.lane.b32.xlu0 %v93, %s142
  %v144 = vpop.permute.xlu0 %143
  %s146 = sor.u32 256, 104
  %147 = vbcast.lane.b32.xlu0 %v93, %s146
  %v148 = vpop.permute.xlu0 %147
  %s150 = sor.u32 256, 112
  %151 = vbcast.lane.b32.xlu0 %v93, %s150
  %v152 = vpop.permute.xlu0 %151
  %s154 = sor.u32 256, 120
  %155 = vbcast.lane.b32.xlu0 %v93, %s154
  %v156 = vpop.permute.xlu0 %155
  %v157 = vlaneseq
  %v158 = vshrl.u32 %v157, 7
  %v159 = vsub.s32 2, %v158
  %v160 = vrot.slane %v15, %v159
  %162 = vbcast.lane.b32.xlu0 %v160, 256
  %v163 = vpop.permute.xlu0 %162
  %s165 = sor.u32 256, 8
  %166 = vbcast.lane.b32.xlu0 %v160, %s165
  %v167 = vpop.permute.xlu0 %166
  %s169 = sor.u32 256, 16
  %170 = vbcast.lane.b32.xlu0 %v160, %s169
  %v171 = vpop.permute.xlu0 %170
  %s173 = sor.u32 256, 24
  %174 = vbcast.lane.b32.xlu0 %v160, %s173
  %v175 = vpop.permute.xlu0 %174
  %s177 = sor.u32 256, 32
  %178 = vbcast.lane.b32.xlu0 %v160, %s177
  %v179 = vpop.permute.xlu0 %178
  %s181 = sor.u32 256, 40
  %182 = vbcast.lane.b32.xlu0 %v160, %s181
  %v183 = vpop.permute.xlu0 %182
  %s185 = sor.u32 256, 48
  %186 = vbcast.lane.b32.xlu0 %v160, %s185
  %v187 = vpop.permute.xlu0 %186
  %s189 = sor.u32 256, 56
  %190 = vbcast.lane.b32.xlu0 %v160, %s189
  %v191 = vpop.permute.xlu0 %190
  %s193 = sor.u32 256, 64
  %194 = vbcast.lane.b32.xlu0 %v160, %s193
  %v195 = vpop.permute.xlu0 %194
  %s197 = sor.u32 256, 72
  %198 = vbcast.lane.b32.xlu0 %v160, %s197
  %v199 = vpop.permute.xlu0 %198
  %s201 = sor.u32 256, 80
  %202 = vbcast.lane.b32.xlu0 %v160, %s201
  %v203 = vpop.permute.xlu0 %202
  %s205 = sor.u32 256, 88
  %206 = vbcast.lane.b32.xlu0 %v160, %s205
  %v207 = vpop.permute.xlu0 %206
  %s209 = sor.u32 256, 96
  %210 = vbcast.lane.b32.xlu0 %v160, %s209
  %v211 = vpop.permute.xlu0 %210
  %s213 = sor.u32 256, 104
  %214 = vbcast.lane.b32.xlu0 %v160, %s213
  %v215 = vpop.permute.xlu0 %214
  %s217 = sor.u32 256, 112
  %218 = vbcast.lane.b32.xlu0 %v160, %s217
  %v219 = vpop.permute.xlu0 %218
  %s221 = sor.u32 256, 120
  %222 = vbcast.lane.b32.xlu0 %v160, %s221
  %v223 = vpop.permute.xlu0 %222
  %v224 = vlaneseq
  %v225 = vshrl.u32 %v224, 7
  %v226 = vsub.s32 3, %v225
  %v227 = vrot.slane %v15, %v226
  %229 = vbcast.lane.b32.xlu0 %v227, 256
  %v230 = vpop.permute.xlu0 %229
  %s232 = sor.u32 256, 8
  %233 = vbcast.lane.b32.xlu0 %v227, %s232
  %v234 = vpop.permute.xlu0 %233
  %s236 = sor.u32 256, 16
  %237 = vbcast.lane.b32.xlu0 %v227, %s236
  %v238 = vpop.permute.xlu0 %237
  %s240 = sor.u32 256, 24
  %241 = vbcast.lane.b32.xlu0 %v227, %s240
  %v242 = vpop.permute.xlu0 %241
  %s244 = sor.u32 256, 32
  %245 = vbcast.lane.b32.xlu0 %v227, %s244
  %v246 = vpop.permute.xlu0 %245
  %s248 = sor.u32 256, 40
  %249 = vbcast.lane.b32.xlu0 %v227, %s248
  %v250 = vpop.permute.xlu0 %249
  %s252 = sor.u32 256, 48
  %253 = vbcast.lane.b32.xlu0 %v227, %s252
  %v254 = vpop.permute.xlu0 %253
  %s256 = sor.u32 256, 56
  %257 = vbcast.lane.b32.xlu0 %v227, %s256
  %v258 = vpop.permute.xlu0 %257
  %s260 = sor.u32 256, 64
  %261 = vbcast.lane.b32.xlu0 %v227, %s260
  %v262 = vpop.permute.xlu0 %261
  %s264 = sor.u32 256, 72
  %265 = vbcast.lane.b32.xlu0 %v227, %s264
  %v266 = vpop.permute.xlu0 %265
  %s268 = sor.u32 256, 80
  %269 = vbcast.lane.b32.xlu0 %v227, %s268
  %v270 = vpop.permute.xlu0 %269
  %s272 = sor.u32 256, 88
  %273 = vbcast.lane.b32.xlu0 %v227, %s272
  %v274 = vpop.permute.xlu0 %273
  %s276 = sor.u32 256, 96
  %277 = vbcast.lane.b32.xlu0 %v227, %s276
  %v278 = vpop.permute.xlu0 %277
  %s280 = sor.u32 256, 104
  %281 = vbcast.lane.b32.xlu0 %v227, %s280
  %v282 = vpop.permute.xlu0 %281
  %s284 = sor.u32 256, 112
  %285 = vbcast.lane.b32.xlu0 %v227, %s284
  %v286 = vpop.permute.xlu0 %285
  %s288 = sor.u32 256, 120
  %289 = vbcast.lane.b32.xlu0 %v227, %s288
  %v290 = vpop.permute.xlu0 %289
  %v291 = vlaneseq
  %v292 = vshrl.u32 %v291, 7
  %v293 = vsub.s32 4, %v292
  %v294 = vrot.slane %v15, %v293
  %296 = vbcast.lane.b32.xlu0 %v294, 256
  %v297 = vpop.permute.xlu0 %296
  %s299 = sor.u32 256, 8
  %300 = vbcast.lane.b32.xlu0 %v294, %s299
  %v301 = vpop.permute.xlu0 %300
  %s303 = sor.u32 256, 16
  %304 = vbcast.lane.b32.xlu0 %v294, %s303
  %v305 = vpop.permute.xlu0 %304
  %s307 = sor.u32 256, 24
  %308 = vbcast.lane.b32.xlu0 %v294, %s307
  %v309 = vpop.permute.xlu0 %308
  %s311 = sor.u32 256, 32
  %312 = vbcast.lane.b32.xlu0 %v294, %s311
  %v313 = vpop.permute.xlu0 %312
  %s315 = sor.u32 256, 40
  %316 = vbcast.lane.b32.xlu0 %v294, %s315
  %v317 = vpop.permute.xlu0 %316
  %s319 = sor.u32 256, 48
  %320 = vbcast.lane.b32.xlu0 %v294, %s319
  %v321 = vpop.permute.xlu0 %320
  %s323 = sor.u32 256, 56
  %324 = vbcast.lane.b32.xlu0 %v294, %s323
  %v325 = vpop.permute.xlu0 %324
  %s327 = sor.u32 256, 64
  %328 = vbcast.lane.b32.xlu0 %v294, %s327
  %v329 = vpop.permute.xlu0 %328
  %s331 = sor.u32 256, 72
  %332 = vbcast.lane.b32.xlu0 %v294, %s331
  %v333 = vpop.permute.xlu0 %332
  %s335 = sor.u32 256, 80
  %336 = vbcast.lane.b32.xlu0 %v294, %s335
  %v337 = vpop.permute.xlu0 %336
  %s339 = sor.u32 256, 88
  %340 = vbcast.lane.b32.xlu0 %v294, %s339
  %v341 = vpop.permute.xlu0 %340
  %s343 = sor.u32 256, 96
  %344 = vbcast.lane.b32.xlu0 %v294, %s343
  %v345 = vpop.permute.xlu0 %344
  %s347 = sor.u32 256, 104
  %348 = vbcast.lane.b32.xlu0 %v294, %s347
  %v349 = vpop.permute.xlu0 %348
  %s351 = sor.u32 256, 112
  %352 = vbcast.lane.b32.xlu0 %v294, %s351
  %v353 = vpop.permute.xlu0 %352
  %s355 = sor.u32 256, 120
  %356 = vbcast.lane.b32.xlu0 %v294, %s355
  %v357 = vpop.permute.xlu0 %356
  %v358 = vlaneseq
  %v359 = vshrl.u32 %v358, 7
  %v360 = vsub.s32 5, %v359
  %v361 = vrot.slane %v15, %v360
  %363 = vbcast.lane.b32.xlu0 %v361, 256
  %v364 = vpop.permute.xlu0 %363
  %s366 = sor.u32 256, 8
  %367 = vbcast.lane.b32.xlu0 %v361, %s366
  %v368 = vpop.permute.xlu0 %367
  %s370 = sor.u32 256, 16
  %371 = vbcast.lane.b32.xlu0 %v361, %s370
  %v372 = vpop.permute.xlu0 %371
  %s374 = sor.u32 256, 24
  %375 = vbcast.lane.b32.xlu0 %v361, %s374
  %v376 = vpop.permute.xlu0 %375
  %s378 = sor.u32 256, 32
  %379 = vbcast.lane.b32.xlu0 %v361, %s378
  %v380 = vpop.permute.xlu0 %379
  %s382 = sor.u32 256, 40
  %383 = vbcast.lane.b32.xlu0 %v361, %s382
  %v384 = vpop.permute.xlu0 %383
  %s386 = sor.u32 256, 48
  %387 = vbcast.lane.b32.xlu0 %v361, %s386
  %v388 = vpop.permute.xlu0 %387
  %s390 = sor.u32 256, 56
  %391 = vbcast.lane.b32.xlu0 %v361, %s390
  %v392 = vpop.permute.xlu0 %391
  %s394 = sor.u32 256, 64
  %395 = vbcast.lane.b32.xlu0 %v361, %s394
  %v396 = vpop.permute.xlu0 %395
  %s398 = sor.u32 256, 72
  %399 = vbcast.lane.b32.xlu0 %v361, %s398
  %v400 = vpop.permute.xlu0 %399
  %s402 = sor.u32 256, 80
  %403 = vbcast.lane.b32.xlu0 %v361, %s402
  %v404 = vpop.permute.xlu0 %403
  %s406 = sor.u32 256, 88
  %407 = vbcast.lane.b32.xlu0 %v361, %s406
  %v408 = vpop.permute.xlu0 %407
  %s410 = sor.u32 256, 96
  %411 = vbcast.lane.b32.xlu0 %v361, %s410
  %v412 = vpop.permute.xlu0 %411
  %s414 = sor.u32 256, 104
  %415 = vbcast.lane.b32.xlu0 %v361, %s414
  %v416 = vpop.permute.xlu0 %415
  %s418 = sor.u32 256, 112
  %419 = vbcast.lane.b32.xlu0 %v361, %s418
  %v420 = vpop.permute.xlu0 %419
  %s422 = sor.u32 256, 120
  %423 = vbcast.lane.b32.xlu0 %v361, %s422
  %v424 = vpop.permute.xlu0 %423
  %v425 = vlaneseq
  %v426 = vshrl.u32 %v425, 7
  %v427 = vsub.s32 6, %v426
  %v428 = vrot.slane %v15, %v427
  %430 = vbcast.lane.b32.xlu0 %v428, 256
  %v431 = vpop.permute.xlu0 %430
  %s433 = sor.u32 256, 8
  %434 = vbcast.lane.b32.xlu0 %v428, %s433
  %v435 = vpop.permute.xlu0 %434
  %s437 = sor.u32 256, 16
  %438 = vbcast.lane.b32.xlu0 %v428, %s437
  %v439 = vpop.permute.xlu0 %438
  %s441 = sor.u32 256, 24
  %442 = vbcast.lane.b32.xlu0 %v428, %s441
  %v443 = vpop.permute.xlu0 %442
  %s445 = sor.u32 256, 32
  %446 = vbcast.lane.b32.xlu0 %v428, %s445
  %v447 = vpop.permute.xlu0 %446
  %s449 = sor.u32 256, 40
  %450 = vbcast.lane.b32.xlu0 %v428, %s449
  %v451 = vpop.permute.xlu0 %450
  %s453 = sor.u32 256, 48
  %454 = vbcast.lane.b32.xlu0 %v428, %s453
  %v455 = vpop.permute.xlu0 %454
  %s457 = sor.u32 256, 56
  %458 = vbcast.lane.b32.xlu0 %v428, %s457
  %v459 = vpop.permute.xlu0 %458
  %s461 = sor.u32 256, 64
  %462 = vbcast.lane.b32.xlu0 %v428, %s461
  %v463 = vpop.permute.xlu0 %462
  %s465 = sor.u32 256, 72
  %466 = vbcast.lane.b32.xlu0 %v428, %s465
  %v467 = vpop.permute.xlu0 %466
  %s469 = sor.u32 256, 80
  %470 = vbcast.lane.b32.xlu0 %v428, %s469
  %v471 = vpop.permute.xlu0 %470
  %s473 = sor.u32 256, 88
  %474 = vbcast.lane.b32.xlu0 %v428, %s473
  %v475 = vpop.permute.xlu0 %474
  %s477 = sor.u32 256, 96
  %478 = vbcast.lane.b32.xlu0 %v428, %s477
  %v479 = vpop.permute.xlu0 %478
  %s481 = sor.u32 256, 104
  %482 = vbcast.lane.b32.xlu0 %v428, %s481
  %v483 = vpop.permute.xlu0 %482
  %s485 = sor.u32 256, 112
  %486 = vbcast.lane.b32.xlu0 %v428, %s485
  %v487 = vpop.permute.xlu0 %486
  %s489 = sor.u32 256, 120
  %490 = vbcast.lane.b32.xlu0 %v428, %s489
  %v491 = vpop.permute.xlu0 %490
  %v492 = vlaneseq
  %v493 = vshrl.u32 %v492, 7
  %v494 = vsub.s32 7, %v493
  %v495 = vrot.slane %v15, %v494
  %497 = vbcast.lane.b32.xlu0 %v495, 256
  %v498 = vpop.permute.xlu0 %497
  %s500 = sor.u32 256, 8
  %501 = vbcast.lane.b32.xlu0 %v495, %s500
  %v502 = vpop.permute.xlu0 %501
  %s504 = sor.u32 256, 16
  %505 = vbcast.lane.b32.xlu0 %v495, %s504
  %v506 = vpop.permute.xlu0 %505
  %s508 = sor.u32 256, 24
  %509 = vbcast.lane.b32.xlu0 %v495, %s508
  %v510 = vpop.permute.xlu0 %509
  %s512 = sor.u32 256, 32
  %513 = vbcast.lane.b32.xlu0 %v495, %s512
  %v514 = vpop.permute.xlu0 %513
  %s516 = sor.u32 256, 40
  %517 = vbcast.lane.b32.xlu0 %v495, %s516
  %v518 = vpop.permute.xlu0 %517
  %s520 = sor.u32 256, 48
  %521 = vbcast.lane.b32.xlu0 %v495, %s520
  %v522 = vpop.permute.xlu0 %521
  %s524 = sor.u32 256, 56
  %525 = vbcast.lane.b32.xlu0 %v495, %s524
  %v526 = vpop.permute.xlu0 %525
  %s528 = sor.u32 256, 64
  %529 = vbcast.lane.b32.xlu0 %v495, %s528
  %v530 = vpop.permute.xlu0 %529
  %s532 = sor.u32 256, 72
  %533 = vbcast.lane.b32.xlu0 %v495, %s532
  %v534 = vpop.permute.xlu0 %533
  %s536 = sor.u32 256, 80
  %537 = vbcast.lane.b32.xlu0 %v495, %s536
  %v538 = vpop.permute.xlu0 %537
  %s540 = sor.u32 256, 88
  %541 = vbcast.lane.b32.xlu0 %v495, %s540
  %v542 = vpop.permute.xlu0 %541
  %s544 = sor.u32 256, 96
  %545 = vbcast.lane.b32.xlu0 %v495, %s544
  %v546 = vpop.permute.xlu0 %545
  %s548 = sor.u32 256, 104
  %549 = vbcast.lane.b32.xlu0 %v495, %s548
  %v550 = vpop.permute.xlu0 %549
  %s552 = sor.u32 256, 112
  %553 = vbcast.lane.b32.xlu0 %v495, %s552
  %v554 = vpop.permute.xlu0 %553
  %s556 = sor.u32 256, 120
  %557 = vbcast.lane.b32.xlu0 %v495, %s556
  %v558 = vpop.permute.xlu0 %557
  %v559 = vcombine.high %v22, %v22
  %v561 = vunpack.c.l.s4 1966171168
  %v562 = vunpack.c.0.s8 %v561
  %v563 = vlaneseq
  %v564 = vshrl.u32 %v563, 7
  %v565 = vsub.s32 %v562, %v564
  %v566 = vrot.slane %v22, %v565
  %v568 = vunpack.c.l.s4 1966171168
  %v569 = vunpack.c.0.s8 %v568
  %v570 = vlaneseq
  %v571 = vshrl.u32 %v570, 7
  %v572 = vsub.s32 %v569, %v571
  %v573 = vrot.slane %v559, %v572
  %v574 = vcombine.high %v566, %v566
  %v575 = vcombine.high %v573, %v573
  %v577 = vunpack.c.l.s4 1966171168
  %v578 = vunpack.c.0.s8 %v577
  %v579 = vlaneseq
  %v580 = vshrl.u32 %v579, 7
  %v581 = vsub.s32 %v578, %v580
  %v582 = vrot.slane %v566, %v581
  %v584 = vunpack.c.l.s4 1966171168
  %v585 = vunpack.c.0.s8 %v584
  %v586 = vlaneseq
  %v587 = vshrl.u32 %v586, 7
  %v588 = vsub.s32 %v585, %v587
  %v589 = vrot.slane %v573, %v588
  %v591 = vunpack.c.l.s4 1966171168
  %v592 = vunpack.c.0.s8 %v591
  %v593 = vlaneseq
  %v594 = vshrl.u32 %v593, 7
  %v595 = vsub.s32 %v592, %v594
  %v596 = vrot.slane %v574, %v595
  %v598 = vunpack.c.l.s4 1966171168
  %v599 = vunpack.c.0.s8 %v598
  %v600 = vlaneseq
  %v601 = vshrl.u32 %v600, 7
  %v602 = vsub.s32 %v599, %v601
  %v603 = vrot.slane %v575, %v602
  %v604 = vcombine.high %v582, %v582
  %v605 = vcombine.high %v589, %v589
  %v606 = vcombine.high %v596, %v596
  %v607 = vcombine.high %v603, %v603
  %v608 = vlaneseq
  %v609 = vshrl.u32 %v608, 7
  %v610 = vsub.s32 0, %v609
  %v611 = vrot.slane %v582, %v610
  %v612 = vlaneseq
  %v613 = vshrl.u32 %v612, 7
  %v614 = vsub.s32 0, %v613
  %v615 = vrot.slane %v596, %v614
  %v616 = vlaneseq
  %v617 = vshrl.u32 %v616, 7
  %v618 = vsub.s32 0, %v617
  %v619 = vrot.slane %v604, %v618
  %v620 = vlaneseq
  %v621 = vshrl.u32 %v620, 7
  %v622 = vsub.s32 0, %v621
  %v623 = vrot.slane %v606, %v622
  %v624 = vlaneseq
  %v625 = vshrl.u32 %v624, 7
  %v626 = vsub.s32 0, %v625
  %v627 = vrot.slane %v589, %v626
  %v628 = vlaneseq
  %v629 = vshrl.u32 %v628, 7
  %v630 = vsub.s32 0, %v629
  %v631 = vrot.slane %v603, %v630
  %v632 = vlaneseq
  %v633 = vshrl.u32 %v632, 7
  %v634 = vsub.s32 0, %v633
  %v635 = vrot.slane %v605, %v634
  %v636 = vlaneseq
  %v637 = vshrl.u32 %v636, 7
  %v638 = vsub.s32 0, %v637
  %v639 = vrot.slane %v607, %v638
  %vm640 = vcmp.eq.s32.totalorder %v29, %v611
  %vm641 = vcmp.eq.s32.totalorder %v33, %v611
  %vm642 = vcmp.eq.s32.totalorder %v37, %v611
  %vm643 = vcmp.eq.s32.totalorder %v41, %v611
  %vm644 = vcmp.eq.s32.totalorder %v45, %v611
  %vm645 = vcmp.eq.s32.totalorder %v49, %v611
  %vm646 = vcmp.eq.s32.totalorder %v53, %v611
  %vm647 = vcmp.eq.s32.totalorder %v57, %v611
  %vm648 = vcmp.eq.s32.totalorder %v61, %v611
  %vm649 = vcmp.eq.s32.totalorder %v65, %v611
  %vm650 = vcmp.eq.s32.totalorder %v69, %v611
  %vm651 = vcmp.eq.s32.totalorder %v73, %v611
  %vm652 = vcmp.eq.s32.totalorder %v77, %v611
  %vm653 = vcmp.eq.s32.totalorder %v81, %v611
  %vm654 = vcmp.eq.s32.totalorder %v85, %v611
  %vm655 = vcmp.eq.s32.totalorder %v89, %v611
  %vm656 = vcmp.eq.s32.totalorder %v96, %v615
  %vm657 = vcmp.eq.s32.totalorder %v100, %v615
  %vm658 = vcmp.eq.s32.totalorder %v104, %v615
  %vm659 = vcmp.eq.s32.totalorder %v108, %v615
  %vm660 = vcmp.eq.s32.totalorder %v112, %v615
  %vm661 = vcmp.eq.s32.totalorder %v116, %v615
  %vm662 = vcmp.eq.s32.totalorder %v120, %v615
  %vm663 = vcmp.eq.s32.totalorder %v124, %v615
  %vm664 = vcmp.eq.s32.totalorder %v128, %v615
  %vm665 = vcmp.eq.s32.totalorder %v132, %v615
  %vm666 = vcmp.eq.s32.totalorder %v136, %v615
  %vm667 = vcmp.eq.s32.totalorder %v140, %v615
  %vm668 = vcmp.eq.s32.totalorder %v144, %v615
  %vm669 = vcmp.eq.s32.totalorder %v148, %v615
  %vm670 = vcmp.eq.s32.totalorder %v152, %v615
  %vm671 = vcmp.eq.s32.totalorder %v156, %v615
  %vm672 = vcmp.eq.s32.totalorder %v163, %v619
  %vm673 = vcmp.eq.s32.totalorder %v167, %v619
  %vm674 = vcmp.eq.s32.totalorder %v171, %v619
  %vm675 = vcmp.eq.s32.totalorder %v175, %v619
  %vm676 = vcmp.eq.s32.totalorder %v179, %v619
  %vm677 = vcmp.eq.s32.totalorder %v183, %v619
  %vm678 = vcmp.eq.s32.totalorder %v187, %v619
  %vm679 = vcmp.eq.s32.totalorder %v191, %v619
  %vm680 = vcmp.eq.s32.totalorder %v195, %v619
  %vm681 = vcmp.eq.s32.totalorder %v199, %v619
  %vm682 = vcmp.eq.s32.totalorder %v203, %v619
  %vm683 = vcmp.eq.s32.totalorder %v207, %v619
  %vm684 = vcmp.eq.s32.totalorder %v211, %v619
  %vm685 = vcmp.eq.s32.totalorder %v215, %v619
  %vm686 = vcmp.eq.s32.totalorder %v219, %v619
  %vm687 = vcmp.eq.s32.totalorder %v223, %v619
  %vm688 = vcmp.eq.s32.totalorder %v230, %v623
  %vm689 = vcmp.eq.s32.totalorder %v234, %v623
  %vm690 = vcmp.eq.s32.totalorder %v238, %v623
  %vm691 = vcmp.eq.s32.totalorder %v242, %v623
  %vm692 = vcmp.eq.s32.totalorder %v246, %v623
  %vm693 = vcmp.eq.s32.totalorder %v250, %v623
  %vm694 = vcmp.eq.s32.totalorder %v254, %v623
  %vm695 = vcmp.eq.s32.totalorder %v258, %v623
  %vm696 = vcmp.eq.s32.totalorder %v262, %v623
  %vm697 = vcmp.eq.s32.totalorder %v266, %v623
  %vm698 = vcmp.eq.s32.totalorder %v270, %v623
  %vm699 = vcmp.eq.s32.totalorder %v274, %v623
  %vm700 = vcmp.eq.s32.totalorder %v278, %v623
  %vm701 = vcmp.eq.s32.totalorder %v282, %v623
  %vm702 = vcmp.eq.s32.totalorder %v286, %v623
  %vm703 = vcmp.eq.s32.totalorder %v290, %v623
  %vm704 = vcmp.eq.s32.totalorder %v297, %v627
  %vm705 = vcmp.eq.s32.totalorder %v301, %v627
  %vm706 = vcmp.eq.s32.totalorder %v305, %v627
  %vm707 = vcmp.eq.s32.totalorder %v309, %v627
  %vm708 = vcmp.eq.s32.totalorder %v313, %v627
  %vm709 = vcmp.eq.s32.totalorder %v317, %v627
  %vm710 = vcmp.eq.s32.totalorder %v321, %v627
  %vm711 = vcmp.eq.s32.totalorder %v325, %v627
  %vm712 = vcmp.eq.s32.totalorder %v329, %v627
  %vm713 = vcmp.eq.s32.totalorder %v333, %v627
  %vm714 = vcmp.eq.s32.totalorder %v337, %v627
  %vm715 = vcmp.eq.s32.totalorder %v341, %v627
  %vm716 = vcmp.eq.s32.totalorder %v345, %v627
  %vm717 = vcmp.eq.s32.totalorder %v349, %v627
  %vm718 = vcmp.eq.s32.totalorder %v353, %v627
  %vm719 = vcmp.eq.s32.totalorder %v357, %v627
  %vm720 = vcmp.eq.s32.totalorder %v364, %v631
  %vm721 = vcmp.eq.s32.totalorder %v368, %v631
  %vm722 = vcmp.eq.s32.totalorder %v372, %v631
  %vm723 = vcmp.eq.s32.totalorder %v376, %v631
  %vm724 = vcmp.eq.s32.totalorder %v380, %v631
  %vm725 = vcmp.eq.s32.totalorder %v384, %v631
  %vm726 = vcmp.eq.s32.totalorder %v388, %v631
  %vm727 = vcmp.eq.s32.totalorder %v392, %v631
  %vm728 = vcmp.eq.s32.totalorder %v396, %v631
  %vm729 = vcmp.eq.s32.totalorder %v400, %v631
  %vm730 = vcmp.eq.s32.totalorder %v404, %v631
  %vm731 = vcmp.eq.s32.totalorder %v408, %v631
  %vm732 = vcmp.eq.s32.totalorder %v412, %v631
  %vm733 = vcmp.eq.s32.totalorder %v416, %v631
  %vm734 = vcmp.eq.s32.totalorder %v420, %v631
  %vm735 = vcmp.eq.s32.totalorder %v424, %v631
  %vm736 = vcmp.eq.s32.totalorder %v431, %v635
  %vm737 = vcmp.eq.s32.totalorder %v435, %v635
  %vm738 = vcmp.eq.s32.totalorder %v439, %v635
  %vm739 = vcmp.eq.s32.totalorder %v443, %v635
  %vm740 = vcmp.eq.s32.totalorder %v447, %v635
  %vm741 = vcmp.eq.s32.totalorder %v451, %v635
  %vm742 = vcmp.eq.s32.totalorder %v455, %v635
  %vm743 = vcmp.eq.s32.totalorder %v459, %v635
  %vm744 = vcmp.eq.s32.totalorder %v463, %v635
  %vm745 = vcmp.eq.s32.totalorder %v467, %v635
  %vm746 = vcmp.eq.s32.totalorder %v471, %v635
  %vm747 = vcmp.eq.s32.totalorder %v475, %v635
  %vm748 = vcmp.eq.s32.totalorder %v479, %v635
  %vm749 = vcmp.eq.s32.totalorder %v483, %v635
  %vm750 = vcmp.eq.s32.totalorder %v487, %v635
  %vm751 = vcmp.eq.s32.totalorder %v491, %v635
  %vm752 = vcmp.eq.s32.totalorder %v498, %v639
  %vm753 = vcmp.eq.s32.totalorder %v502, %v639
  %vm754 = vcmp.eq.s32.totalorder %v506, %v639
  %vm755 = vcmp.eq.s32.totalorder %v510, %v639
  %vm756 = vcmp.eq.s32.totalorder %v514, %v639
  %vm757 = vcmp.eq.s32.totalorder %v518, %v639
  %vm758 = vcmp.eq.s32.totalorder %v522, %v639
  %vm759 = vcmp.eq.s32.totalorder %v526, %v639
  %vm760 = vcmp.eq.s32.totalorder %v530, %v639
  %vm761 = vcmp.eq.s32.totalorder %v534, %v639
  %vm762 = vcmp.eq.s32.totalorder %v538, %v639
  %vm763 = vcmp.eq.s32.totalorder %v542, %v639
  %vm764 = vcmp.eq.s32.totalorder %v546, %v639
  %vm765 = vcmp.eq.s32.totalorder %v550, %v639
  %vm766 = vcmp.eq.s32.totalorder %v554, %v639
  %vm767 = vcmp.eq.s32.totalorder %v558, %v639
  %v768 = vld [vmem:[#allocation2] sm:$0xff]
  %v769 = vsel %vm640, 1, 0
  %v770 = vsel %vm641, 1, 0
  %v771 = vsel %vm642, 1, 0
  %v772 = vsel %vm643, 1, 0
  %v773 = vsel %vm644, 1, 0
  %v774 = vsel %vm645, 1, 0
  %v775 = vsel %vm646, 1, 0
  %v776 = vsel %vm647, 1, 0
  %v777 = vsel %vm648, 1, 0
  %v778 = vsel %vm649, 1, 0
  %v779 = vsel %vm650, 1, 0
  %v780 = vsel %vm651, 1, 0
  %v781 = vsel %vm652, 1, 0
  %v782 = vsel %vm653, 1, 0
  %v783 = vsel %vm654, 1, 0
  %v784 = vsel %vm655, 1, 0
  %v785 = vsel %vm656, 1, 0
  %v786 = vsel %vm657, 1, 0
  %v787 = vsel %vm658, 1, 0
  %v788 = vsel %vm659, 1, 0
  %v789 = vsel %vm660, 1, 0
  %v790 = vsel %vm661, 1, 0
  %v791 = vsel %vm662, 1, 0
  %v792 = vsel %vm663, 1, 0
  %v793 = vsel %vm664, 1, 0
  %v794 = vsel %vm665, 1, 0
  %v795 = vsel %vm666, 1, 0
  %v796 = vsel %vm667, 1, 0
  %v797 = vsel %vm668, 1, 0
  %v798 = vsel %vm669, 1, 0
  %v799 = vsel %vm670, 1, 0
  %v800 = vsel %vm671, 1, 0
  %v801 = vsel %vm672, 1, 0
  %v802 = vsel %vm673, 1, 0
  %v803 = vsel %vm674, 1, 0
  %v804 = vsel %vm675, 1, 0
  %v805 = vsel %vm676, 1, 0
  %v806 = vsel %vm677, 1, 0
  %v807 = vsel %vm678, 1, 0
  %v808 = vsel %vm679, 1, 0
  %v809 = vsel %vm680, 1, 0
  %v810 = vsel %vm681, 1, 0
  %v811 = vsel %vm682, 1, 0
  %v812 = vsel %vm683, 1, 0
  %v813 = vsel %vm684, 1, 0
  %v814 = vsel %vm685, 1, 0
  %v815 = vsel %vm686, 1, 0
  %v816 = vsel %vm687, 1, 0
  %v817 = vsel %vm688, 1, 0
  %v818 = vsel %vm689, 1, 0
  %v819 = vsel %vm690, 1, 0
  %v820 = vsel %vm691, 1, 0
  %v821 = vsel %vm692, 1, 0
  %v822 = vsel %vm693, 1, 0
  %v823 = vsel %vm694, 1, 0
  %v824 = vsel %vm695, 1, 0
  %v825 = vsel %vm696, 1, 0
  %v826 = vsel %vm697, 1, 0
  %v827 = vsel %vm698, 1, 0
  %v828 = vsel %vm699, 1, 0
  %v829 = vsel %vm700, 1, 0
  %v830 = vsel %vm701, 1, 0
  %v831 = vsel %vm702, 1, 0
  %v832 = vsel %vm703, 1, 0
  %v833 = vsel %vm704, 1, 0
  %v834 = vsel %vm705, 1, 0
  %v835 = vsel %vm706, 1, 0
  %v836 = vsel %vm707, 1, 0
  %v837 = vsel %vm708, 1, 0
  %v838 = vsel %vm709, 1, 0
  %v839 = vsel %vm710, 1, 0
  %v840 = vsel %vm711, 1, 0
  %v841 = vsel %vm712, 1, 0
  %v842 = vsel %vm713, 1, 0
  %v843 = vsel %vm714, 1, 0
  %v844 = vsel %vm715, 1, 0
  %v845 = vsel %vm716, 1, 0
  %v846 = vsel %vm717, 1, 0
  %v847 = vsel %vm718, 1, 0
  %v848 = vsel %vm719, 1, 0
  %v849 = vsel %vm720, 1, 0
  %v850 = vsel %vm721, 1, 0
  %v851 = vsel %vm722, 1, 0
  %v852 = vsel %vm723, 1, 0
  %v853 = vsel %vm724, 1, 0
  %v854 = vsel %vm725, 1, 0
  %v855 = vsel %vm726, 1, 0
  %v856 = vsel %vm727, 1, 0
  %v857 = vsel %vm728, 1, 0
  %v858 = vsel %vm729, 1, 0
  %v859 = vsel %vm730, 1, 0
  %v860 = vsel %vm731, 1, 0
  %v861 = vsel %vm732, 1, 0
  %v862 = vsel %vm733, 1, 0
  %v863 = vsel %vm734, 1, 0
  %v864 = vsel %vm735, 1, 0
  %v865 = vsel %vm736, 1, 0
  %v866 = vsel %vm737, 1, 0
  %v867 = vsel %vm738, 1, 0
  %v868 = vsel %vm739, 1, 0
  %v869 = vsel %vm740, 1, 0
  %v870 = vsel %vm741, 1, 0
  %v871 = vsel %vm742, 1, 0
  %v872 = vsel %vm743, 1, 0
  %v873 = vsel %vm744, 1, 0
  %v874 = vsel %vm745, 1, 0
  %v875 = vsel %vm746, 1, 0
  %v876 = vsel %vm747, 1, 0
  %v877 = vsel %vm748, 1, 0
  %v878 = vsel %vm749, 1, 0
  %v879 = vsel %vm750, 1, 0
  %v880 = vsel %vm751, 1, 0
  %v881 = vsel %vm752, 1, 0
  %v882 = vsel %vm753, 1, 0
  %v883 = vsel %vm754, 1, 0
  %v884 = vsel %vm755, 1, 0
  %v885 = vsel %vm756, 1, 0
  %v886 = vsel %vm757, 1, 0
  %v887 = vsel %vm758, 1, 0
  %v888 = vsel %vm759, 1, 0
  %v889 = vsel %vm760, 1, 0
  %v890 = vsel %vm761, 1, 0
  %v891 = vsel %vm762, 1, 0
  %v892 = vsel %vm763, 1, 0
  %v893 = vsel %vm764, 1, 0
  %v894 = vsel %vm765, 1, 0
  %v895 = vsel %vm766, 1, 0
  %v896 = vsel %vm767, 1, 0
  %v897 = vcvt.s32.f32 %v769
  %v898 = vcvt.s32.f32 %v770
  %v899 = vcvt.s32.f32 %v771
  %v900 = vcvt.s32.f32 %v772
  %v901 = vcvt.s32.f32 %v773
  %v902 = vcvt.s32.f32 %v774
  %v903 = vcvt.s32.f32 %v775
  %v904 = vcvt.s32.f32 %v776
  %v905 = vcvt.s32.f32 %v777
  %v906 = vcvt.s32.f32 %v778
  %v907 = vcvt.s32.f32 %v779
  %v908 = vcvt.s32.f32 %v780
  %v909 = vcvt.s32.f32 %v781
  %v910 = vcvt.s32.f32 %v782
  %v911 = vcvt.s32.f32 %v783
  %v912 = vcvt.s32.f32 %v784
  %v913 = vcvt.s32.f32 %v785
  %v914 = vcvt.s32.f32 %v786
  %v915 = vcvt.s32.f32 %v787
  %v916 = vcvt.s32.f32 %v788
  %v917 = vcvt.s32.f32 %v789
  %v918 = vcvt.s32.f32 %v790
  %v919 = vcvt.s32.f32 %v791
  %v920 = vcvt.s32.f32 %v792
  %v921 = vcvt.s32.f32 %v793
  %v922 = vcvt.s32.f32 %v794
  %v923 = vcvt.s32.f32 %v795
  %v924 = vcvt.s32.f32 %v796
  %v925 = vcvt.s32.f32 %v797
  %v926 = vcvt.s32.f32 %v798
  %v927 = vcvt.s32.f32 %v799
  %v928 = vcvt.s32.f32 %v800
  %v929 = vcvt.s32.f32 %v801
  %v930 = vcvt.s32.f32 %v802
  %v931 = vcvt.s32.f32 %v803
  %v932 = vcvt.s32.f32 %v804
  %v933 = vcvt.s32.f32 %v805
  %v934 = vcvt.s32.f32 %v806
  %v935 = vcvt.s32.f32 %v807
  %v936 = vcvt.s32.f32 %v808
  %v937 = vcvt.s32.f32 %v809
  %v938 = vcvt.s32.f32 %v810
  %v939 = vcvt.s32.f32 %v811
  %v940 = vcvt.s32.f32 %v812
  %v941 = vcvt.s32.f32 %v813
  %v942 = vcvt.s32.f32 %v814
  %v943 = vcvt.s32.f32 %v815
  %v944 = vcvt.s32.f32 %v816
  %v945 = vcvt.s32.f32 %v817
  %v946 = vcvt.s32.f32 %v818
  %v947 = vcvt.s32.f32 %v819
  %v948 = vcvt.s32.f32 %v820
  %v949 = vcvt.s32.f32 %v821
  %v950 = vcvt.s32.f32 %v822
  %v951 = vcvt.s32.f32 %v823
  %v952 = vcvt.s32.f32 %v824
  %v953 = vcvt.s32.f32 %v825
  %v954 = vcvt.s32.f32 %v826
  %v955 = vcvt.s32.f32 %v827
  %v956 = vcvt.s32.f32 %v828
  %v957 = vcvt.s32.f32 %v829
  %v958 = vcvt.s32.f32 %v830
  %v959 = vcvt.s32.f32 %v831
  %v960 = vcvt.s32.f32 %v832
  %v961 = vcvt.s32.f32 %v833
  %v962 = vcvt.s32.f32 %v834
  %v963 = vcvt.s32.f32 %v835
  %v964 = vcvt.s32.f32 %v836
  %v965 = vcvt.s32.f32 %v837
  %v966 = vcvt.s32.f32 %v838
  %v967 = vcvt.s32.f32 %v839
  %v968 = vcvt.s32.f32 %v840
  %v969 = vcvt.s32.f32 %v841
  %v970 = vcvt.s32.f32 %v842
  %v971 = vcvt.s32.f32 %v843
  %v972 = vcvt.s32.f32 %v844
  %v973 = vcvt.s32.f32 %v845
  %v974 = vcvt.s32.f32 %v846
  %v975 = vcvt.s32.f32 %v847
  %v976 = vcvt.s32.f32 %v848
  %v977 = vcvt.s32.f32 %v849
  %v978 = vcvt.s32.f32 %v850
  %v979 = vcvt.s32.f32 %v851
  %v980 = vcvt.s32.f32 %v852
  %v981 = vcvt.s32.f32 %v853
  %v982 = vcvt.s32.f32 %v854
  %v983 = vcvt.s32.f32 %v855
  %v984 = vcvt.s32.f32 %v856
  %v985 = vcvt.s32.f32 %v857
  %v986 = vcvt.s32.f32 %v858
  %v987 = vcvt.s32.f32 %v859
  %v988 = vcvt.s32.f32 %v860
  %v989 = vcvt.s32.f32 %v861
  %v990 = vcvt.s32.f32 %v862
  %v991 = vcvt.s32.f32 %v863
  %v992 = vcvt.s32.f32 %v864
  %v993 = vcvt.s32.f32 %v865
  %v994 = vcvt.s32.f32 %v866
  %v995 = vcvt.s32.f32 %v867
  %v996 = vcvt.s32.f32 %v868
  %v997 = vcvt.s32.f32 %v869
  %v998 = vcvt.s32.f32 %v870
  %v999 = vcvt.s32.f32 %v871
  %v1000 = vcvt.s32.f32 %v872
  %v1001 = vcvt.s32.f32 %v873
  %v1002 = vcvt.s32.f32 %v874
  %v1003 = vcvt.s32.f32 %v875
  %v1004 = vcvt.s32.f32 %v876
  %v1005 = vcvt.s32.f32 %v877
  %v1006 = vcvt.s32.f32 %v878
  %v1007 = vcvt.s32.f32 %v879
  %v1008 = vcvt.s32.f32 %v880
  %v1009 = vcvt.s32.f32 %v881
  %v1010 = vcvt.s32.f32 %v882
  %v1011 = vcvt.s32.f32 %v883
  %v1012 = vcvt.s32.f32 %v884
  %v1013 = vcvt.s32.f32 %v885
  %v1014 = vcvt.s32.f32 %v886
  %v1015 = vcvt.s32.f32 %v887
  %v1016 = vcvt.s32.f32 %v888
  %v1017 = vcvt.s32.f32 %v889
  %v1018 = vcvt.s32.f32 %v890
  %v1019 = vcvt.s32.f32 %v891
  %v1020 = vcvt.s32.f32 %v892
  %v1021 = vcvt.s32.f32 %v893
  %v1022 = vcvt.s32.f32 %v894
  %v1023 = vcvt.s32.f32 %v895
  %v1024 = vcvt.s32.f32 %v896
  %1025 = vadd.xlane.f32.xlu0 %v897
  %v1026 = vpop.xlane.xlu0 %1025
  %1027 = vadd.xlane.f32.xlu0 %v898
  %v1028 = vpop.xlane.xlu0 %1027
  %1029 = vadd.xlane.f32.xlu0 %v899
  %v1030 = vpop.xlane.xlu0 %1029
  %1031 = vadd.xlane.f32.xlu0 %v900
  %v1032 = vpop.xlane.xlu0 %1031
  %1033 = vadd.xlane.f32.xlu0 %v901
  %v1034 = vpop.xlane.xlu0 %1033
  %1035 = vadd.xlane.f32.xlu0 %v902
  %v1036 = vpop.xlane.xlu0 %1035
  %1037 = vadd.xlane.f32.xlu0 %v903
  %v1038 = vpop.xlane.xlu0 %1037
  %1039 = vadd.xlane.f32.xlu0 %v904
  %v1040 = vpop.xlane.xlu0 %1039
  %1041 = vadd.xlane.f32.xlu0 %v905
  %v1042 = vpop.xlane.xlu0 %1041
  %1043 = vadd.xlane.f32.xlu0 %v906
  %v1044 = vpop.xlane.xlu0 %1043
  %1045 = vadd.xlane.f32.xlu0 %v907
  %v1046 = vpop.xlane.xlu0 %1045
  %1047 = vadd.xlane.f32.xlu0 %v908
  %v1048 = vpop.xlane.xlu0 %1047
  %1049 = vadd.xlane.f32.xlu0 %v909
  %v1050 = vpop.xlane.xlu0 %1049
  %1051 = vadd.xlane.f32.xlu0 %v910
  %v1052 = vpop.xlane.xlu0 %1051
  %1053 = vadd.xlane.f32.xlu0 %v911
  %v1054 = vpop.xlane.xlu0 %1053
  %1055 = vadd.xlane.f32.xlu0 %v912
  %v1056 = vpop.xlane.xlu0 %1055
  %1057 = vadd.xlane.f32.xlu0 %v913
  %v1058 = vpop.xlane.xlu0 %1057
  %1059 = vadd.xlane.f32.xlu0 %v914
  %v1060 = vpop.xlane.xlu0 %1059
  %1061 = vadd.xlane.f32.xlu0 %v915
  %v1062 = vpop.xlane.xlu0 %1061
  %1063 = vadd.xlane.f32.xlu0 %v916
  %v1064 = vpop.xlane.xlu0 %1063
  %1065 = vadd.xlane.f32.xlu0 %v917
  %v1066 = vpop.xlane.xlu0 %1065
  %1067 = vadd.xlane.f32.xlu0 %v918
  %v1068 = vpop.xlane.xlu0 %1067
  %1069 = vadd.xlane.f32.xlu0 %v919
  %v1070 = vpop.xlane.xlu0 %1069
  %1071 = vadd.xlane.f32.xlu0 %v920
  %v1072 = vpop.xlane.xlu0 %1071
  %1073 = vadd.xlane.f32.xlu0 %v921
  %v1074 = vpop.xlane.xlu0 %1073
  %1075 = vadd.xlane.f32.xlu0 %v922
  %v1076 = vpop.xlane.xlu0 %1075
  %1077 = vadd.xlane.f32.xlu0 %v923
  %v1078 = vpop.xlane.xlu0 %1077
  %1079 = vadd.xlane.f32.xlu0 %v924
  %v1080 = vpop.xlane.xlu0 %1079
  %1081 = vadd.xlane.f32.xlu0 %v925
  %v1082 = vpop.xlane.xlu0 %1081
  %1083 = vadd.xlane.f32.xlu0 %v926
  %v1084 = vpop.xlane.xlu0 %1083
  %1085 = vadd.xlane.f32.xlu0 %v927
  %v1086 = vpop.xlane.xlu0 %1085
  %1087 = vadd.xlane.f32.xlu0 %v928
  %v1088 = vpop.xlane.xlu0 %1087
  %1089 = vadd.xlane.f32.xlu0 %v929
  %v1090 = vpop.xlane.xlu0 %1089
  %1091 = vadd.xlane.f32.xlu0 %v930
  %v1092 = vpop.xlane.xlu0 %1091
  %1093 = vadd.xlane.f32.xlu0 %v931
  %v1094 = vpop.xlane.xlu0 %1093
  %1095 = vadd.xlane.f32.xlu0 %v932
  %v1096 = vpop.xlane.xlu0 %1095
  %1097 = vadd.xlane.f32.xlu0 %v933
  %v1098 = vpop.xlane.xlu0 %1097
  %1099 = vadd.xlane.f32.xlu0 %v934
  %v1100 = vpop.xlane.xlu0 %1099
  %1101 = vadd.xlane.f32.xlu0 %v935
  %v1102 = vpop.xlane.xlu0 %1101
  %1103 = vadd.xlane.f32.xlu0 %v936
  %v1104 = vpop.xlane.xlu0 %1103
  %1105 = vadd.xlane.f32.xlu0 %v937
  %v1106 = vpop.xlane.xlu0 %1105
  %1107 = vadd.xlane.f32.xlu0 %v938
  %v1108 = vpop.xlane.xlu0 %1107
  %1109 = vadd.xlane.f32.xlu0 %v939
  %v1110 = vpop.xlane.xlu0 %1109
  %1111 = vadd.xlane.f32.xlu0 %v940
  %v1112 = vpop.xlane.xlu0 %1111
  %1113 = vadd.xlane.f32.xlu0 %v941
  %v1114 = vpop.xlane.xlu0 %1113
  %1115 = vadd.xlane.f32.xlu0 %v942
  %v1116 = vpop.xlane.xlu0 %1115
  %1117 = vadd.xlane.f32.xlu0 %v943
  %v1118 = vpop.xlane.xlu0 %1117
  %1119 = vadd.xlane.f32.xlu0 %v944
  %v1120 = vpop.xlane.xlu0 %1119
  %1121 = vadd.xlane.f32.xlu0 %v945
  %v1122 = vpop.xlane.xlu0 %1121
  %1123 = vadd.xlane.f32.xlu0 %v946
  %v1124 = vpop.xlane.xlu0 %1123
  %1125 = vadd.xlane.f32.xlu0 %v947
  %v1126 = vpop.xlane.xlu0 %1125
  %1127 = vadd.xlane.f32.xlu0 %v948
  %v1128 = vpop.xlane.xlu0 %1127
  %1129 = vadd.xlane.f32.xlu0 %v949
  %v1130 = vpop.xlane.xlu0 %1129
  %1131 = vadd.xlane.f32.xlu0 %v950
  %v1132 = vpop.xlane.xlu0 %1131
  %1133 = vadd.xlane.f32.xlu0 %v951
  %v1134 = vpop.xlane.xlu0 %1133
  %1135 = vadd.xlane.f32.xlu0 %v952
  %v1136 = vpop.xlane.xlu0 %1135
  %1137 = vadd.xlane.f32.xlu0 %v953
  %v1138 = vpop.xlane.xlu0 %1137
  %1139 = vadd.xlane.f32.xlu0 %v954
  %v1140 = vpop.xlane.xlu0 %1139
  %1141 = vadd.xlane.f32.xlu0 %v955
  %v1142 = vpop.xlane.xlu0 %1141
  %1143 = vadd.xlane.f32.xlu0 %v956
  %v1144 = vpop.xlane.xlu0 %1143
  %1145 = vadd.xlane.f32.xlu0 %v957
  %v1146 = vpop.xlane.xlu0 %1145
  %1147 = vadd.xlane.f32.xlu0 %v958
  %v1148 = vpop.xlane.xlu0 %1147
  %1149 = vadd.xlane.f32.xlu0 %v959
  %v1150 = vpop.xlane.xlu0 %1149
  %1151 = vadd.xlane.f32.xlu0 %v960
  %v1152 = vpop.xlane.xlu0 %1151
  %1153 = vadd.xlane.f32.xlu0 %v961
  %v1154 = vpop.xlane.xlu0 %1153
  %1155 = vadd.xlane.f32.xlu0 %v962
  %v1156 = vpop.xlane.xlu0 %1155
  %1157 = vadd.xlane.f32.xlu0 %v963
  %v1158 = vpop.xlane.xlu0 %1157
  %1159 = vadd.xlane.f32.xlu0 %v964
  %v1160 = vpop.xlane.xlu0 %1159
  %1161 = vadd.xlane.f32.xlu0 %v965
  %v1162 = vpop.xlane.xlu0 %1161
  %1163 = vadd.xlane.f32.xlu0 %v966
  %v1164 = vpop.xlane.xlu0 %1163
  %1165 = vadd.xlane.f32.xlu0 %v967
  %v1166 = vpop.xlane.xlu0 %1165
  %1167 = vadd.xlane.f32.xlu0 %v968
  %v1168 = vpop.xlane.xlu0 %1167
  %1169 = vadd.xlane.f32.xlu0 %v969
  %v1170 = vpop.xlane.xlu0 %1169
  %1171 = vadd.xlane.f32.xlu0 %v970
  %v1172 = vpop.xlane.xlu0 %1171
  %1173 = vadd.xlane.f32.xlu0 %v971
  %v1174 = vpop.xlane.xlu0 %1173
  %1175 = vadd.xlane.f32.xlu0 %v972
  %v1176 = vpop.xlane.xlu0 %1175
  %1177 = vadd.xlane.f32.xlu0 %v973
  %v1178 = vpop.xlane.xlu0 %1177
  %1179 = vadd.xlane.f32.xlu0 %v974
  %v1180 = vpop.xlane.xlu0 %1179
  %1181 = vadd.xlane.f32.xlu0 %v975
  %v1182 = vpop.xlane.xlu0 %1181
  %1183 = vadd.xlane.f32.xlu0 %v976
  %v1184 = vpop.xlane.xlu0 %1183
  %1185 = vadd.xlane.f32.xlu0 %v977
  %v1186 = vpop.xlane.xlu0 %1185
  %1187 = vadd.xlane.f32.xlu0 %v978
  %v1188 = vpop.xlane.xlu0 %1187
  %1189 = vadd.xlane.f32.xlu0 %v979
  %v1190 = vpop.xlane.xlu0 %1189
  %1191 = vadd.xlane.f32.xlu0 %v980
  %v1192 = vpop.xlane.xlu0 %1191
  %1193 = vadd.xlane.f32.xlu0 %v981
  %v1194 = vpop.xlane.xlu0 %1193
  %1195 = vadd.xlane.f32.xlu0 %v982
  %v1196 = vpop.xlane.xlu0 %1195
  %1197 = vadd.xlane.f32.xlu0 %v983
  %v1198 = vpop.xlane.xlu0 %1197
  %1199 = vadd.xlane.f32.xlu0 %v984
  %v1200 = vpop.xlane.xlu0 %1199
  %1201 = vadd.xlane.f32.xlu0 %v985
  %v1202 = vpop.xlane.xlu0 %1201
  %1203 = vadd.xlane.f32.xlu0 %v986
  %v1204 = vpop.xlane.xlu0 %1203
  %1205 = vadd.xlane.f32.xlu0 %v987
  %v1206 = vpop.xlane.xlu0 %1205
  %1207 = vadd.xlane.f32.xlu0 %v988
  %v1208 = vpop.xlane.xlu0 %1207
  %1209 = vadd.xlane.f32.xlu0 %v989
  %v1210 = vpop.xlane.xlu0 %1209
  %1211 = vadd.xlane.f32.xlu0 %v990
  %v1212 = vpop.xlane.xlu0 %1211
  %1213 = vadd.xlane.f32.xlu0 %v991
  %v1214 = vpop.xlane.xlu0 %1213
  %1215 = vadd.xlane.f32.xlu0 %v992
  %v1216 = vpop.xlane.xlu0 %1215
  %1217 = vadd.xlane.f32.xlu0 %v993
  %v1218 = vpop.xlane.xlu0 %1217
  %1219 = vadd.xlane.f32.xlu0 %v994
  %v1220 = vpop.xlane.xlu0 %1219
  %1221 = vadd.xlane.f32.xlu0 %v995
  %v1222 = vpop.xlane.xlu0 %1221
  %1223 = vadd.xlane.f32.xlu0 %v996
  %v1224 = vpop.xlane.xlu0 %1223
  %1225 = vadd.xlane.f32.xlu0 %v997
  %v1226 = vpop.xlane.xlu0 %1225
  %1227 = vadd.xlane.f32.xlu0 %v998
  %v1228 = vpop.xlane.xlu0 %1227
  %1229 = vadd.xlane.f32.xlu0 %v999
  %v1230 = vpop.xlane.xlu0 %1229
  %1231 = vadd.xlane.f32.xlu0 %v1000
  %v1232 = vpop.xlane.xlu0 %1231
  %1233 = vadd.xlane.f32.xlu0 %v1001
  %v1234 = vpop.xlane.xlu0 %1233
  %1235 = vadd.xlane.f32.xlu0 %v1002
  %v1236 = vpop.xlane.xlu0 %1235
  %1237 = vadd.xlane.f32.xlu0 %v1003
  %v1238 = vpop.xlane.xlu0 %1237
  %1239 = vadd.xlane.f32.xlu0 %v1004
  %v1240 = vpop.xlane.xlu0 %1239
  %1241 = vadd.xlane.f32.xlu0 %v1005
  %v1242 = vpop.xlane.xlu0 %1241
  %1243 = vadd.xlane.f32.xlu0 %v1006
  %v1244 = vpop.xlane.xlu0 %1243
  %1245 = vadd.xlane.f32.xlu0 %v1007
  %v1246 = vpop.xlane.xlu0 %1245
  %1247 = vadd.xlane.f32.xlu0 %v1008
  %v1248 = vpop.xlane.xlu0 %1247
  %1249 = vadd.xlane.f32.xlu0 %v1009
  %v1250 = vpop.xlane.xlu0 %1249
  %1251 = vadd.xlane.f32.xlu0 %v1010
  %v1252 = vpop.xlane.xlu0 %1251
  %1253 = vadd.xlane.f32.xlu0 %v1011
  %v1254 = vpop.xlane.xlu0 %1253
  %1255 = vadd.xlane.f32.xlu0 %v1012
  %v1256 = vpop.xlane.xlu0 %1255
  %1257 = vadd.xlane.f32.xlu0 %v1013
  %v1258 = vpop.xlane.xlu0 %1257
  %1259 = vadd.xlane.f32.xlu0 %v1014
  %v1260 = vpop.xlane.xlu0 %1259
  %1261 = vadd.xlane.f32.xlu0 %v1015
  %v1262 = vpop.xlane.xlu0 %1261
  %1263 = vadd.xlane.f32.xlu0 %v1016
  %v1264 = vpop.xlane.xlu0 %1263
  %1265 = vadd.xlane.f32.xlu0 %v1017
  %v1266 = vpop.xlane.xlu0 %1265
  %1267 = vadd.xlane.f32.xlu0 %v1018
  %v1268 = vpop.xlane.xlu0 %1267
  %1269 = vadd.xlane.f32.xlu0 %v1019
  %v1270 = vpop.xlane.xlu0 %1269
  %1271 = vadd.xlane.f32.xlu0 %v1020
  %v1272 = vpop.xlane.xlu0 %1271
  %1273 = vadd.xlane.f32.xlu0 %v1021
  %v1274 = vpop.xlane.xlu0 %1273
  %1275 = vadd.xlane.f32.xlu0 %v1022
  %v1276 = vpop.xlane.xlu0 %1275
  %1277 = vadd.xlane.f32.xlu0 %v1023
  %v1278 = vpop.xlane.xlu0 %1277
  %1279 = vadd.xlane.f32.xlu0 %v1024
  %v1280 = vpop.xlane.xlu0 %1279
  %v1409 = vlaneseq
  %v1410 = vand.u32 %v1409, 127
  %v1411 = vlaneseq
  %v1412 = vshrl.u32 %v1411, 7
  %v1413 = vsub.s32 %v1410, %v1412
  %v1414 = vrot.slane %v1026, %v1413
  %v1415 = vadd.s32 %v1410, 4294967288
  %v1416 = vlaneseq
  %v1417 = vshrl.u32 %v1416, 7
  %v1418 = vsub.s32 %v1415, %v1417
  %v1419 = vrot.slane %v1028, %v1418
  %vm1420 = vcmask 130112
  %v1421 = vsel %vm1420, %v1419, %v1414
  %v1422 = vadd.s32 %v1410, 4294967280
  %v1423 = vlaneseq
  %v1424 = vshrl.u32 %v1423, 7
  %v1425 = vsub.s32 %v1422, %v1424
  %v1426 = vrot.slane %v1030, %v1425
  %vm1427 = vcmask 195712
  %v1428 = vsel %vm1427, %v1426, %v1421
  %v1429 = vadd.s32 %v1410, 4294967272
  %v1430 = vlaneseq
  %v1431 = vshrl.u32 %v1430, 7
  %v1432 = vsub.s32 %v1429, %v1431
  %v1433 = vrot.slane %v1032, %v1432
  %vm1434 = vcmask 261312
  %v1435 = vsel %vm1434, %v1433, %v1428
  %v1436 = vadd.s32 %v1410, 4294967264
  %v1437 = vlaneseq
  %v1438 = vshrl.u32 %v1437, 7
  %v1439 = vsub.s32 %v1436, %v1438
  %v1440 = vrot.slane %v1034, %v1439
  %vm1441 = vcmask 326912
  %v1442 = vsel %vm1441, %v1440, %v1435
  %v1443 = vadd.s32 %v1410, 4294967256
  %v1444 = vlaneseq
  %v1445 = vshrl.u32 %v1444, 7
  %v1446 = vsub.s32 %v1443, %v1445
  %v1447 = vrot.slane %v1036, %v1446
  %vm1448 = vcmask 392512
  %v1449 = vsel %vm1448, %v1447, %v1442
  %v1450 = vadd.s32 %v1410, 4294967248
  %v1451 = vlaneseq
  %v1452 = vshrl.u32 %v1451, 7
  %v1453 = vsub.s32 %v1450, %v1452
  %v1454 = vrot.slane %v1038, %v1453
  %vm1455 = vcmask 458112
  %v1456 = vsel %vm1455, %v1454, %v1449
  %v1457 = vadd.s32 %v1410, 4294967240
  %v1458 = vlaneseq
  %v1459 = vshrl.u32 %v1458, 7
  %v1460 = vsub.s32 %v1457, %v1459
  %v1461 = vrot.slane %v1040, %v1460
  %vm1462 = vcmask 523712
  %v1463 = vsel %vm1462, %v1461, %v1456
  %v1464 = vadd.s32 %v1410, 4294967232
  %v1465 = vlaneseq
  %v1466 = vshrl.u32 %v1465, 7
  %v1467 = vsub.s32 %v1464, %v1466
  %v1468 = vrot.slane %v1042, %v1467
  %vm1469 = vcmask 589312
  %v1470 = vsel %vm1469, %v1468, %v1463
  %v1471 = vadd.s32 %v1410, 4294967224
  %v1472 = vlaneseq
  %v1473 = vshrl.u32 %v1472, 7
  %v1474 = vsub.s32 %v1471, %v1473
  %v1475 = vrot.slane %v1044, %v1474
  %vm1476 = vcmask 654912
  %v1477 = vsel %vm1476, %v1475, %v1470
  %v1478 = vadd.s32 %v1410, 4294967216
  %v1479 = vlaneseq
  %v1480 = vshrl.u32 %v1479, 7
  %v1481 = vsub.s32 %v1478, %v1480
  %v1482 = vrot.slane %v1046, %v1481
  %vm1483 = vcmask 720512
  %v1484 = vsel %vm1483, %v1482, %v1477
  %v1485 = vadd.s32 %v1410, 4294967208
  %v1486 = vlaneseq
  %v1487 = vshrl.u32 %v1486, 7
  %v1488 = vsub.s32 %v1485, %v1487
  %v1489 = vrot.slane %v1048, %v1488
  %vm1490 = vcmask 786112
  %v1491 = vsel %vm1490, %v1489, %v1484
  %v1492 = vadd.s32 %v1410, 4294967200
  %v1493 = vlaneseq
  %v1494 = vshrl.u32 %v1493, 7
  %v1495 = vsub.s32 %v1492, %v1494
  %v1496 = vrot.slane %v1050, %v1495
  %vm1497 = vcmask 851712
  %v1498 = vsel %vm1497, %v1496, %v1491
  %v1499 = vadd.s32 %v1410, 4294967192
  %v1500 = vlaneseq
  %v1501 = vshrl.u32 %v1500, 7
  %v1502 = vsub.s32 %v1499, %v1501
  %v1503 = vrot.slane %v1052, %v1502
  %vm1504 = vcmask 917312
  %v1505 = vsel %vm1504, %v1503, %v1498
  %v1506 = vadd.s32 %v1410, 4294967184
  %v1507 = vlaneseq
  %v1508 = vshrl.u32 %v1507, 7
  %v1509 = vsub.s32 %v1506, %v1508
  %v1510 = vrot.slane %v1054, %v1509
  %vm1511 = vcmask 982912
  %v1512 = vsel %vm1511, %v1510, %v1505
  %v1513 = vadd.s32 %v1410, 4294967176
  %v1514 = vlaneseq
  %v1515 = vshrl.u32 %v1514, 7
  %v1516 = vsub.s32 %v1513, %v1515
  %v1517 = vrot.slane %v1056, %v1516
  %vm1518 = vcmask 1048512
  %v1519 = vsel %vm1518, %v1517, %v1512
  %v1520 = vlaneseq
  %v1521 = vshrl.u32 %v1520, 7
  %v1522 = vsub.s32 %v1410, %v1521
  %v1523 = vrot.slane %v1058, %v1522
  %v1524 = vlaneseq
  %v1525 = vshrl.u32 %v1524, 7
  %v1526 = vsub.s32 %v1415, %v1525
  %v1527 = vrot.slane %v1060, %v1526
  %v1528 = vsel %vm1420, %v1527, %v1523
  %v1529 = vlaneseq
  %v1530 = vshrl.u32 %v1529, 7
  %v1531 = vsub.s32 %v1422, %v1530
  %v1532 = vrot.slane %v1062, %v1531
  %v1533 = vsel %vm1427, %v1532, %v1528
  %v1534 = vlaneseq
  %v1535 = vshrl.u32 %v1534, 7
  %v1536 = vsub.s32 %v1429, %v1535
  %v1537 = vrot.slane %v1064, %v1536
  %v1538 = vsel %vm1434, %v1537, %v1533
  %v1539 = vlaneseq
  %v1540 = vshrl.u32 %v1539, 7
  %v1541 = vsub.s32 %v1436, %v1540
  %v1542 = vrot.slane %v1066, %v1541
  %v1543 = vsel %vm1441, %v1542, %v1538
  %v1544 = vlaneseq
  %v1545 = vshrl.u32 %v1544, 7
  %v1546 = vsub.s32 %v1443, %v1545
  %v1547 = vrot.slane %v1068, %v1546
  %v1548 = vsel %vm1448, %v1547, %v1543
  %v1549 = vlaneseq
  %v1550 = vshrl.u32 %v1549, 7
  %v1551 = vsub.s32 %v1450, %v1550
  %v1552 = vrot.slane %v1070, %v1551
  %v1553 = vsel %vm1455, %v1552, %v1548
  %v1554 = vlaneseq
  %v1555 = vshrl.u32 %v1554, 7
  %v1556 = vsub.s32 %v1457, %v1555
  %v1557 = vrot.slane %v1072, %v1556
  %v1558 = vsel %vm1462, %v1557, %v1553
  %v1559 = vlaneseq
  %v1560 = vshrl.u32 %v1559, 7
  %v1561 = vsub.s32 %v1464, %v1560
  %v1562 = vrot.slane %v1074, %v1561
  %v1563 = vsel %vm1469, %v1562, %v1558
  %v1564 = vlaneseq
  %v1565 = vshrl.u32 %v1564, 7
  %v1566 = vsub.s32 %v1471, %v1565
  %v1567 = vrot.slane %v1076, %v1566
  %v1568 = vsel %vm1476, %v1567, %v1563
  %v1569 = vlaneseq
  %v1570 = vshrl.u32 %v1569, 7
  %v1571 = vsub.s32 %v1478, %v1570
  %v1572 = vrot.slane %v1078, %v1571
  %v1573 = vsel %vm1483, %v1572, %v1568
  %v1574 = vlaneseq
  %v1575 = vshrl.u32 %v1574, 7
  %v1576 = vsub.s32 %v1485, %v1575
  %v1577 = vrot.slane %v1080, %v1576
  %v1578 = vsel %vm1490, %v1577, %v1573
  %v1579 = vlaneseq
  %v1580 = vshrl.u32 %v1579, 7
  %v1581 = vsub.s32 %v1492, %v1580
  %v1582 = vrot.slane %v1082, %v1581
  %v1583 = vsel %vm1497, %v1582, %v1578
  %v1584 = vlaneseq
  %v1585 = vshrl.u32 %v1584, 7
  %v1586 = vsub.s32 %v1499, %v1585
  %v1587 = vrot.slane %v1084, %v1586
  %v1588 = vsel %vm1504, %v1587, %v1583
  %v1589 = vlaneseq
  %v1590 = vshrl.u32 %v1589, 7
  %v1591 = vsub.s32 %v1506, %v1590
  %v1592 = vrot.slane %v1086, %v1591
  %v1593 = vsel %vm1511, %v1592, %v1588
  %v1594 = vlaneseq
  %v1595 = vshrl.u32 %v1594, 7
  %v1596 = vsub.s32 %v1513, %v1595
  %v1597 = vrot.slane %v1088, %v1596
  %v1598 = vsel %vm1518, %v1597, %v1593
  %v1599 = vlaneseq
  %v1600 = vshrl.u32 %v1599, 7
  %v1601 = vsub.s32 %v1410, %v1600
  %v1602 = vrot.slane %v1090, %v1601
  %v1603 = vlaneseq
  %v1604 = vshrl.u32 %v1603, 7
  %v1605 = vsub.s32 %v1415, %v1604
  %v1606 = vrot.slane %v1092, %v1605
  %v1607 = vsel %vm1420, %v1606, %v1602
  %v1608 = vlaneseq
  %v1609 = vshrl.u32 %v1608, 7
  %v1610 = vsub.s32 %v1422, %v1609
  %v1611 = vrot.slane %v1094, %v1610
  %v1612 = vsel %vm1427, %v1611, %v1607
  %v1613 = vlaneseq
  %v1614 = vshrl.u32 %v1613, 7
  %v1615 = vsub.s32 %v1429, %v1614
  %v1616 = vrot.slane %v1096, %v1615
  %v1617 = vsel %vm1434, %v1616, %v1612
  %v1618 = vlaneseq
  %v1619 = vshrl.u32 %v1618, 7
  %v1620 = vsub.s32 %v1436, %v1619
  %v1621 = vrot.slane %v1098, %v1620
  %v1622 = vsel %vm1441, %v1621, %v1617
  %v1623 = vlaneseq
  %v1624 = vshrl.u32 %v1623, 7
  %v1625 = vsub.s32 %v1443, %v1624
  %v1626 = vrot.slane %v1100, %v1625
  %v1627 = vsel %vm1448, %v1626, %v1622
  %v1628 = vlaneseq
  %v1629 = vshrl.u32 %v1628, 7
  %v1630 = vsub.s32 %v1450, %v1629
  %v1631 = vrot.slane %v1102, %v1630
  %v1632 = vsel %vm1455, %v1631, %v1627
  %v1633 = vlaneseq
  %v1634 = vshrl.u32 %v1633, 7
  %v1635 = vsub.s32 %v1457, %v1634
  %v1636 = vrot.slane %v1104, %v1635
  %v1637 = vsel %vm1462, %v1636, %v1632
  %v1638 = vlaneseq
  %v1639 = vshrl.u32 %v1638, 7
  %v1640 = vsub.s32 %v1464, %v1639
  %v1641 = vrot.slane %v1106, %v1640
  %v1642 = vsel %vm1469, %v1641, %v1637
  %v1643 = vlaneseq
  %v1644 = vshrl.u32 %v1643, 7
  %v1645 = vsub.s32 %v1471, %v1644
  %v1646 = vrot.slane %v1108, %v1645
  %v1647 = vsel %vm1476, %v1646, %v1642
  %v1648 = vlaneseq
  %v1649 = vshrl.u32 %v1648, 7
  %v1650 = vsub.s32 %v1478, %v1649
  %v1651 = vrot.slane %v1110, %v1650
  %v1652 = vsel %vm1483, %v1651, %v1647
  %v1653 = vlaneseq
  %v1654 = vshrl.u32 %v1653, 7
  %v1655 = vsub.s32 %v1485, %v1654
  %v1656 = vrot.slane %v1112, %v1655
  %v1657 = vsel %vm1490, %v1656, %v1652
  %v1658 = vlaneseq
  %v1659 = vshrl.u32 %v1658, 7
  %v1660 = vsub.s32 %v1492, %v1659
  %v1661 = vrot.slane %v1114, %v1660
  %v1662 = vsel %vm1497, %v1661, %v1657
  %v1663 = vlaneseq
  %v1664 = vshrl.u32 %v1663, 7
  %v1665 = vsub.s32 %v1499, %v1664
  %v1666 = vrot.slane %v1116, %v1665
  %v1667 = vsel %vm1504, %v1666, %v1662
  %v1668 = vlaneseq
  %v1669 = vshrl.u32 %v1668, 7
  %v1670 = vsub.s32 %v1506, %v1669
  %v1671 = vrot.slane %v1118, %v1670
  %v1672 = vsel %vm1511, %v1671, %v1667
  %v1673 = vlaneseq
  %v1674 = vshrl.u32 %v1673, 7
  %v1675 = vsub.s32 %v1513, %v1674
  %v1676 = vrot.slane %v1120, %v1675
  %v1677 = vsel %vm1518, %v1676, %v1672
  %v1678 = vlaneseq
  %v1679 = vshrl.u32 %v1678, 7
  %v1680 = vsub.s32 %v1410, %v1679
  %v1681 = vrot.slane %v1122, %v1680
  %v1682 = vlaneseq
  %v1683 = vshrl.u32 %v1682, 7
  %v1684 = vsub.s32 %v1415, %v1683
  %v1685 = vrot.slane %v1124, %v1684
  %v1686 = vsel %vm1420, %v1685, %v1681
  %v1687 = vlaneseq
  %v1688 = vshrl.u32 %v1687, 7
  %v1689 = vsub.s32 %v1422, %v1688
  %v1690 = vrot.slane %v1126, %v1689
  %v1691 = vsel %vm1427, %v1690, %v1686
  %v1692 = vlaneseq
  %v1693 = vshrl.u32 %v1692, 7
  %v1694 = vsub.s32 %v1429, %v1693
  %v1695 = vrot.slane %v1128, %v1694
  %v1696 = vsel %vm1434, %v1695, %v1691
  %v1697 = vlaneseq
  %v1698 = vshrl.u32 %v1697, 7
  %v1699 = vsub.s32 %v1436, %v1698
  %v1700 = vrot.slane %v1130, %v1699
  %v1701 = vsel %vm1441, %v1700, %v1696
  %v1702 = vlaneseq
  %v1703 = vshrl.u32 %v1702, 7
  %v1704 = vsub.s32 %v1443, %v1703
  %v1705 = vrot.slane %v1132, %v1704
  %v1706 = vsel %vm1448, %v1705, %v1701
  %v1707 = vlaneseq
  %v1708 = vshrl.u32 %v1707, 7
  %v1709 = vsub.s32 %v1450, %v1708
  %v1710 = vrot.slane %v1134, %v1709
  %v1711 = vsel %vm1455, %v1710, %v1706
  %v1712 = vlaneseq
  %v1713 = vshrl.u32 %v1712, 7
  %v1714 = vsub.s32 %v1457, %v1713
  %v1715 = vrot.slane %v1136, %v1714
  %v1716 = vsel %vm1462, %v1715, %v1711
  %v1717 = vlaneseq
  %v1718 = vshrl.u32 %v1717, 7
  %v1719 = vsub.s32 %v1464, %v1718
  %v1720 = vrot.slane %v1138, %v1719
  %v1721 = vsel %vm1469, %v1720, %v1716
  %v1722 = vlaneseq
  %v1723 = vshrl.u32 %v1722, 7
  %v1724 = vsub.s32 %v1471, %v1723
  %v1725 = vrot.slane %v1140, %v1724
  %v1726 = vsel %vm1476, %v1725, %v1721
  %v1727 = vlaneseq
  %v1728 = vshrl.u32 %v1727, 7
  %v1729 = vsub.s32 %v1478, %v1728
  %v1730 = vrot.slane %v1142, %v1729
  %v1731 = vsel %vm1483, %v1730, %v1726
  %v1732 = vlaneseq
  %v1733 = vshrl.u32 %v1732, 7
  %v1734 = vsub.s32 %v1485, %v1733
  %v1735 = vrot.slane %v1144, %v1734
  %v1736 = vsel %vm1490, %v1735, %v1731
  %v1737 = vlaneseq
  %v1738 = vshrl.u32 %v1737, 7
  %v1739 = vsub.s32 %v1492, %v1738
  %v1740 = vrot.slane %v1146, %v1739
  %v1741 = vsel %vm1497, %v1740, %v1736
  %v1742 = vlaneseq
  %v1743 = vshrl.u32 %v1742, 7
  %v1744 = vsub.s32 %v1499, %v1743
  %v1745 = vrot.slane %v1148, %v1744
  %v1746 = vsel %vm1504, %v1745, %v1741
  %v1747 = vlaneseq
  %v1748 = vshrl.u32 %v1747, 7
  %v1749 = vsub.s32 %v1506, %v1748
  %v1750 = vrot.slane %v1150, %v1749
  %v1751 = vsel %vm1511, %v1750, %v1746
  %v1752 = vlaneseq
  %v1753 = vshrl.u32 %v1752, 7
  %v1754 = vsub.s32 %v1513, %v1753
  %v1755 = vrot.slane %v1152, %v1754
  %v1756 = vsel %vm1518, %v1755, %v1751
  %v1757 = vlaneseq
  %v1758 = vshrl.u32 %v1757, 7
  %v1759 = vsub.s32 %v1410, %v1758
  %v1760 = vrot.slane %v1154, %v1759
  %v1761 = vlaneseq
  %v1762 = vshrl.u32 %v1761, 7
  %v1763 = vsub.s32 %v1415, %v1762
  %v1764 = vrot.slane %v1156, %v1763
  %v1765 = vsel %vm1420, %v1764, %v1760
  %v1766 = vlaneseq
  %v1767 = vshrl.u32 %v1766, 7
  %v1768 = vsub.s32 %v1422, %v1767
  %v1769 = vrot.slane %v1158, %v1768
  %v1770 = vsel %vm1427, %v1769, %v1765
  %v1771 = vlaneseq
  %v1772 = vshrl.u32 %v1771, 7
  %v1773 = vsub.s32 %v1429, %v1772
  %v1774 = vrot.slane %v1160, %v1773
  %v1775 = vsel %vm1434, %v1774, %v1770
  %v1776 = vlaneseq
  %v1777 = vshrl.u32 %v1776, 7
  %v1778 = vsub.s32 %v1436, %v1777
  %v1779 = vrot.slane %v1162, %v1778
  %v1780 = vsel %vm1441, %v1779, %v1775
  %v1781 = vlaneseq
  %v1782 = vshrl.u32 %v1781, 7
  %v1783 = vsub.s32 %v1443, %v1782
  %v1784 = vrot.slane %v1164, %v1783
  %v1785 = vsel %vm1448, %v1784, %v1780
  %v1786 = vlaneseq
  %v1787 = vshrl.u32 %v1786, 7
  %v1788 = vsub.s32 %v1450, %v1787
  %v1789 = vrot.slane %v1166, %v1788
  %v1790 = vsel %vm1455, %v1789, %v1785
  %v1791 = vlaneseq
  %v1792 = vshrl.u32 %v1791, 7
  %v1793 = vsub.s32 %v1457, %v1792
  %v1794 = vrot.slane %v1168, %v1793
  %v1795 = vsel %vm1462, %v1794, %v1790
  %v1796 = vlaneseq
  %v1797 = vshrl.u32 %v1796, 7
  %v1798 = vsub.s32 %v1464, %v1797
  %v1799 = vrot.slane %v1170, %v1798
  %v1800 = vsel %vm1469, %v1799, %v1795
  %v1801 = vlaneseq
  %v1802 = vshrl.u32 %v1801, 7
  %v1803 = vsub.s32 %v1471, %v1802
  %v1804 = vrot.slane %v1172, %v1803
  %v1805 = vsel %vm1476, %v1804, %v1800
  %v1806 = vlaneseq
  %v1807 = vshrl.u32 %v1806, 7
  %v1808 = vsub.s32 %v1478, %v1807
  %v1809 = vrot.slane %v1174, %v1808
  %v1810 = vsel %vm1483, %v1809, %v1805
  %v1811 = vlaneseq
  %v1812 = vshrl.u32 %v1811, 7
  %v1813 = vsub.s32 %v1485, %v1812
  %v1814 = vrot.slane %v1176, %v1813
  %v1815 = vsel %vm1490, %v1814, %v1810
  %v1816 = vlaneseq
  %v1817 = vshrl.u32 %v1816, 7
  %v1818 = vsub.s32 %v1492, %v1817
  %v1819 = vrot.slane %v1178, %v1818
  %v1820 = vsel %vm1497, %v1819, %v1815
  %v1821 = vlaneseq
  %v1822 = vshrl.u32 %v1821, 7
  %v1823 = vsub.s32 %v1499, %v1822
  %v1824 = vrot.slane %v1180, %v1823
  %v1825 = vsel %vm1504, %v1824, %v1820
  %v1826 = vlaneseq
  %v1827 = vshrl.u32 %v1826, 7
  %v1828 = vsub.s32 %v1506, %v1827
  %v1829 = vrot.slane %v1182, %v1828
  %v1830 = vsel %vm1511, %v1829, %v1825
  %v1831 = vlaneseq
  %v1832 = vshrl.u32 %v1831, 7
  %v1833 = vsub.s32 %v1513, %v1832
  %v1834 = vrot.slane %v1184, %v1833
  %v1835 = vsel %vm1518, %v1834, %v1830
  %v1836 = vlaneseq
  %v1837 = vshrl.u32 %v1836, 7
  %v1838 = vsub.s32 %v1410, %v1837
  %v1839 = vrot.slane %v1186, %v1838
  %v1840 = vlaneseq
  %v1841 = vshrl.u32 %v1840, 7
  %v1842 = vsub.s32 %v1415, %v1841
  %v1843 = vrot.slane %v1188, %v1842
  %v1844 = vsel %vm1420, %v1843, %v1839
  %v1845 = vlaneseq
  %v1846 = vshrl.u32 %v1845, 7
  %v1847 = vsub.s32 %v1422, %v1846
  %v1848 = vrot.slane %v1190, %v1847
  %v1849 = vsel %vm1427, %v1848, %v1844
  %v1850 = vlaneseq
  %v1851 = vshrl.u32 %v1850, 7
  %v1852 = vsub.s32 %v1429, %v1851
  %v1853 = vrot.slane %v1192, %v1852
  %v1854 = vsel %vm1434, %v1853, %v1849
  %v1855 = vlaneseq
  %v1856 = vshrl.u32 %v1855, 7
  %v1857 = vsub.s32 %v1436, %v1856
  %v1858 = vrot.slane %v1194, %v1857
  %v1859 = vsel %vm1441, %v1858, %v1854
  %v1860 = vlaneseq
  %v1861 = vshrl.u32 %v1860, 7
  %v1862 = vsub.s32 %v1443, %v1861
  %v1863 = vrot.slane %v1196, %v1862
  %v1864 = vsel %vm1448, %v1863, %v1859
  %v1865 = vlaneseq
  %v1866 = vshrl.u32 %v1865, 7
  %v1867 = vsub.s32 %v1450, %v1866
  %v1868 = vrot.slane %v1198, %v1867
  %v1869 = vsel %vm1455, %v1868, %v1864
  %v1870 = vlaneseq
  %v1871 = vshrl.u32 %v1870, 7
  %v1872 = vsub.s32 %v1457, %v1871
  %v1873 = vrot.slane %v1200, %v1872
  %v1874 = vsel %vm1462, %v1873, %v1869
  %v1875 = vlaneseq
  %v1876 = vshrl.u32 %v1875, 7
  %v1877 = vsub.s32 %v1464, %v1876
  %v1878 = vrot.slane %v1202, %v1877
  %v1879 = vsel %vm1469, %v1878, %v1874
  %v1880 = vlaneseq
  %v1881 = vshrl.u32 %v1880, 7
  %v1882 = vsub.s32 %v1471, %v1881
  %v1883 = vrot.slane %v1204, %v1882
  %v1884 = vsel %vm1476, %v1883, %v1879
  %v1885 = vlaneseq
  %v1886 = vshrl.u32 %v1885, 7
  %v1887 = vsub.s32 %v1478, %v1886
  %v1888 = vrot.slane %v1206, %v1887
  %v1889 = vsel %vm1483, %v1888, %v1884
  %v1890 = vlaneseq
  %v1891 = vshrl.u32 %v1890, 7
  %v1892 = vsub.s32 %v1485, %v1891
  %v1893 = vrot.slane %v1208, %v1892
  %v1894 = vsel %vm1490, %v1893, %v1889
  %v1895 = vlaneseq
  %v1896 = vshrl.u32 %v1895, 7
  %v1897 = vsub.s32 %v1492, %v1896
  %v1898 = vrot.slane %v1210, %v1897
  %v1899 = vsel %vm1497, %v1898, %v1894
  %v1900 = vlaneseq
  %v1901 = vshrl.u32 %v1900, 7
  %v1902 = vsub.s32 %v1499, %v1901
  %v1903 = vrot.slane %v1212, %v1902
  %v1904 = vsel %vm1504, %v1903, %v1899
  %v1905 = vlaneseq
  %v1906 = vshrl.u32 %v1905, 7
  %v1907 = vsub.s32 %v1506, %v1906
  %v1908 = vrot.slane %v1214, %v1907
  %v1909 = vsel %vm1511, %v1908, %v1904
  %v1910 = vlaneseq
  %v1911 = vshrl.u32 %v1910, 7
  %v1912 = vsub.s32 %v1513, %v1911
  %v1913 = vrot.slane %v1216, %v1912
  %v1914 = vsel %vm1518, %v1913, %v1909
  %v1915 = vlaneseq
  %v1916 = vshrl.u32 %v1915, 7
  %v1917 = vsub.s32 %v1410, %v1916
  %v1918 = vrot.slane %v1218, %v1917
  %v1919 = vlaneseq
  %v1920 = vshrl.u32 %v1919, 7
  %v1921 = vsub.s32 %v1415, %v1920
  %v1922 = vrot.slane %v1220, %v1921
  %v1923 = vsel %vm1420, %v1922, %v1918
  %v1924 = vlaneseq
  %v1925 = vshrl.u32 %v1924, 7
  %v1926 = vsub.s32 %v1422, %v1925
  %v1927 = vrot.slane %v1222, %v1926
  %v1928 = vsel %vm1427, %v1927, %v1923
  %v1929 = vlaneseq
  %v1930 = vshrl.u32 %v1929, 7
  %v1931 = vsub.s32 %v1429, %v1930
  %v1932 = vrot.slane %v1224, %v1931
  %v1933 = vsel %vm1434, %v1932, %v1928
  %v1934 = vlaneseq
  %v1935 = vshrl.u32 %v1934, 7
  %v1936 = vsub.s32 %v1436, %v1935
  %v1937 = vrot.slane %v1226, %v1936
  %v1938 = vsel %vm1441, %v1937, %v1933
  %v1939 = vlaneseq
  %v1940 = vshrl.u32 %v1939, 7
  %v1941 = vsub.s32 %v1443, %v1940
  %v1942 = vrot.slane %v1228, %v1941
  %v1943 = vsel %vm1448, %v1942, %v1938
  %v1944 = vlaneseq
  %v1945 = vshrl.u32 %v1944, 7
  %v1946 = vsub.s32 %v1450, %v1945
  %v1947 = vrot.slane %v1230, %v1946
  %v1948 = vsel %vm1455, %v1947, %v1943
  %v1949 = vlaneseq
  %v1950 = vshrl.u32 %v1949, 7
  %v1951 = vsub.s32 %v1457, %v1950
  %v1952 = vrot.slane %v1232, %v1951
  %v1953 = vsel %vm1462, %v1952, %v1948
  %v1954 = vlaneseq
  %v1955 = vshrl.u32 %v1954, 7
  %v1956 = vsub.s32 %v1464, %v1955
  %v1957 = vrot.slane %v1234, %v1956
  %v1958 = vsel %vm1469, %v1957, %v1953
  %v1959 = vlaneseq
  %v1960 = vshrl.u32 %v1959, 7
  %v1961 = vsub.s32 %v1471, %v1960
  %v1962 = vrot.slane %v1236, %v1961
  %v1963 = vsel %vm1476, %v1962, %v1958
  %v1964 = vlaneseq
  %v1965 = vshrl.u32 %v1964, 7
  %v1966 = vsub.s32 %v1478, %v1965
  %v1967 = vrot.slane %v1238, %v1966
  %v1968 = vsel %vm1483, %v1967, %v1963
  %v1969 = vlaneseq
  %v1970 = vshrl.u32 %v1969, 7
  %v1971 = vsub.s32 %v1485, %v1970
  %v1972 = vrot.slane %v1240, %v1971
  %v1973 = vsel %vm1490, %v1972, %v1968
  %v1974 = vlaneseq
  %v1975 = vshrl.u32 %v1974, 7
  %v1976 = vsub.s32 %v1492, %v1975
  %v1977 = vrot.slane %v1242, %v1976
  %v1978 = vsel %vm1497, %v1977, %v1973
  %v1979 = vlaneseq
  %v1980 = vshrl.u32 %v1979, 7
  %v1981 = vsub.s32 %v1499, %v1980
  %v1982 = vrot.slane %v1244, %v1981
  %v1983 = vsel %vm1504, %v1982, %v1978
  %v1984 = vlaneseq
  %v1985 = vshrl.u32 %v1984, 7
  %v1986 = vsub.s32 %v1506, %v1985
  %v1987 = vrot.slane %v1246, %v1986
  %v1988 = vsel %vm1511, %v1987, %v1983
  %v1989 = vlaneseq
  %v1990 = vshrl.u32 %v1989, 7
  %v1991 = vsub.s32 %v1513, %v1990
  %v1992 = vrot.slane %v1248, %v1991
  %v1993 = vsel %vm1518, %v1992, %v1988
  %v1994 = vlaneseq
  %v1995 = vshrl.u32 %v1994, 7
  %v1996 = vsub.s32 %v1410, %v1995
  %v1997 = vrot.slane %v1250, %v1996
  %v1998 = vlaneseq
  %v1999 = vshrl.u32 %v1998, 7
  %v2000 = vsub.s32 %v1415, %v1999
  %v2001 = vrot.slane %v1252, %v2000
  %v2002 = vsel %vm1420, %v2001, %v1997
  %v2003 = vlaneseq
  %v2004 = vshrl.u32 %v2003, 7
  %v2005 = vsub.s32 %v1422, %v2004
  %v2006 = vrot.slane %v1254, %v2005
  %v2007 = vsel %vm1427, %v2006, %v2002
  %v2008 = vlaneseq
  %v2009 = vshrl.u32 %v2008, 7
  %v2010 = vsub.s32 %v1429, %v2009
  %v2011 = vrot.slane %v1256, %v2010
  %v2012 = vsel %vm1434, %v2011, %v2007
  %v2013 = vlaneseq
  %v2014 = vshrl.u32 %v2013, 7
  %v2015 = vsub.s32 %v1436, %v2014
  %v2016 = vrot.slane %v1258, %v2015
  %v2017 = vsel %vm1441, %v2016, %v2012
  %v2018 = vlaneseq
  %v2019 = vshrl.u32 %v2018, 7
  %v2020 = vsub.s32 %v1443, %v2019
  %v2021 = vrot.slane %v1260, %v2020
  %v2022 = vsel %vm1448, %v2021, %v2017
  %v2023 = vlaneseq
  %v2024 = vshrl.u32 %v2023, 7
  %v2025 = vsub.s32 %v1450, %v2024
  %v2026 = vrot.slane %v1262, %v2025
  %v2027 = vsel %vm1455, %v2026, %v2022
  %v2028 = vlaneseq
  %v2029 = vshrl.u32 %v2028, 7
  %v2030 = vsub.s32 %v1457, %v2029
  %v2031 = vrot.slane %v1264, %v2030
  %v2032 = vsel %vm1462, %v2031, %v2027
  %v2033 = vlaneseq
  %v2034 = vshrl.u32 %v2033, 7
  %v2035 = vsub.s32 %v1464, %v2034
  %v2036 = vrot.slane %v1266, %v2035
  %v2037 = vsel %vm1469, %v2036, %v2032
  %v2038 = vlaneseq
  %v2039 = vshrl.u32 %v2038, 7
  %v2040 = vsub.s32 %v1471, %v2039
  %v2041 = vrot.slane %v1268, %v2040
  %v2042 = vsel %vm1476, %v2041, %v2037
  %v2043 = vlaneseq
  %v2044 = vshrl.u32 %v2043, 7
  %v2045 = vsub.s32 %v1478, %v2044
  %v2046 = vrot.slane %v1270, %v2045
  %v2047 = vsel %vm1483, %v2046, %v2042
  %v2048 = vlaneseq
  %v2049 = vshrl.u32 %v2048, 7
  %v2050 = vsub.s32 %v1485, %v2049
  %v2051 = vrot.slane %v1272, %v2050
  %v2052 = vsel %vm1490, %v2051, %v2047
  %v2053 = vlaneseq
  %v2054 = vshrl.u32 %v2053, 7
  %v2055 = vsub.s32 %v1492, %v2054
  %v2056 = vrot.slane %v1274, %v2055
  %v2057 = vsel %vm1497, %v2056, %v2052
  %v2058 = vlaneseq
  %v2059 = vshrl.u32 %v2058, 7
  %v2060 = vsub.s32 %v1499, %v2059
  %v2061 = vrot.slane %v1276, %v2060
  %v2062 = vsel %vm1504, %v2061, %v2057
  %v2063 = vlaneseq
  %v2064 = vshrl.u32 %v2063, 7
  %v2065 = vsub.s32 %v1506, %v2064
  %v2066 = vrot.slane %v1278, %v2065
  %v2067 = vsel %vm1511, %v2066, %v2062
  %v2068 = vlaneseq
  %v2069 = vshrl.u32 %v2068, 7
  %v2070 = vsub.s32 %v1513, %v2069
  %v2071 = vrot.slane %v1280, %v2070
  %v2072 = vsel %vm1518, %v2071, %v2067
  %vm2073 = vcmask 1041409
  %v2074 = vsel %vm2073, %v1598, %v1519
  %vm2075 = vcmask 1042434
  %v2076 = vsel %vm2075, %v1677, %v2074
  %vm2077 = vcmask 1043459
  %v2078 = vsel %vm2077, %v1756, %v2076
  %vm2079 = vcmask 1044484
  %v2080 = vsel %vm2079, %v1835, %v2078
  %vm2081 = vcmask 1045509
  %v2082 = vsel %vm2081, %v1914, %v2080
  %vm2083 = vcmask 1046534
  %v2084 = vsel %vm2083, %v1993, %v2082
  %vm2085 = vcmask 1047559
  %v2086 = vsel %vm2085, %v2072, %v2084
  %v2088 = vadd.f32 %v768, %v2086
  %2089 = vst [vmem:[#allocation2] sm:$0xff] %v2088
  %v2090 = vlaneseq
  %v2091 = vshrl.u32 %v2090, 7
  %v2092 = vadd.s32 %v2091, 8
  %v2093 = vadd.s32 %v2091, 16
  %v2094 = vadd.s32 %v2091, 24
  %v2095 = vadd.s32 %v2091, 32
  %v2096 = vadd.s32 %v2091, 40
  %v2097 = vadd.s32 %v2091, 48
  %v2098 = vadd.s32 %v2091, 56
  %v2099 = vadd.s32 %v2091, 64
  %v2100 = vadd.s32 %v2091, 72
  %v2101 = vadd.s32 %v2091, 80
  %v2102 = vadd.s32 %v2091, 88
  %v2103 = vadd.s32 %v2091, 96
  %v2104 = vadd.s32 %v2091, 104
  %v2105 = vadd.s32 %v2091, 112
  %v2106 = vadd.s32 %v2091, 120
  %v2107 = vld [vmem:[%s1] sm:$0xff]
  %vm2108 = vcmp.ne.s32.totalorder %v2107, 0
  %vm2109 = vcmp.ne.s32.totalorder %v2107, 1
  %vm2110 = vmand %vm2108, %vm2109
  %v2111 = vsel %vm2110, %v2107, 4294967295
  %v2112 = vcombine.high %v2111, %v2111
  %v2114 = vunpack.c.l.s4 1966171168
  %v2115 = vunpack.c.0.s8 %v2114
  %v2116 = vlaneseq
  %v2117 = vshrl.u32 %v2116, 7
  %v2118 = vsub.s32 %v2115, %v2117
  %v2119 = vrot.slane %v2111, %v2118
  %v2121 = vunpack.c.l.s4 1966171168
  %v2122 = vunpack.c.0.s8 %v2121
  %v2123 = vlaneseq
  %v2124 = vshrl.u32 %v2123, 7
  %v2125 = vsub.s32 %v2122, %v2124
  %v2126 = vrot.slane %v2112, %v2125
  %v2127 = vcombine.high %v2119, %v2119
  %v2128 = vcombine.high %v2126, %v2126
  %v2130 = vunpack.c.l.s4 1966171168
  %v2131 = vunpack.c.0.s8 %v2130
  %v2132 = vlaneseq
  %v2133 = vshrl.u32 %v2132, 7
  %v2134 = vsub.s32 %v2131, %v2133
  %v2135 = vrot.slane %v2119, %v2134
  %v2137 = vunpack.c.l.s4 1966171168
  %v2138 = vunpack.c.0.s8 %v2137
  %v2139 = vlaneseq
  %v2140 = vshrl.u32 %v2139, 7
  %v2141 = vsub.s32 %v2138, %v2140
  %v2142 = vrot.slane %v2126, %v2141
  %v2144 = vunpack.c.l.s4 1966171168
  %v2145 = vunpack.c.0.s8 %v2144
  %v2146 = vlaneseq
  %v2147 = vshrl.u32 %v2146, 7
  %v2148 = vsub.s32 %v2145, %v2147
  %v2149 = vrot.slane %v2127, %v2148
  %v2151 = vunpack.c.l.s4 1966171168
  %v2152 = vunpack.c.0.s8 %v2151
  %v2153 = vlaneseq
  %v2154 = vshrl.u32 %v2153, 7
  %v2155 = vsub.s32 %v2152, %v2154
  %v2156 = vrot.slane %v2128, %v2155
  %v2157 = vcombine.high %v2135, %v2135
  %v2158 = vcombine.high %v2142, %v2142
  %v2159 = vcombine.high %v2149, %v2149
  %v2160 = vcombine.high %v2156, %v2156
  %v2161 = vlaneseq
  %v2162 = vshrl.u32 %v2161, 7
  %v2163 = vsub.s32 0, %v2162
  %v2164 = vrot.slane %v2135, %v2163
  %v2165 = vlaneseq
  %v2166 = vshrl.u32 %v2165, 7
  %v2167 = vsub.s32 0, %v2166
  %v2168 = vrot.slane %v2149, %v2167
  %v2169 = vlaneseq
  %v2170 = vshrl.u32 %v2169, 7
  %v2171 = vsub.s32 0, %v2170
  %v2172 = vrot.slane %v2157, %v2171
  %v2173 = vlaneseq
  %v2174 = vshrl.u32 %v2173, 7
  %v2175 = vsub.s32 0, %v2174
  %v2176 = vrot.slane %v2159, %v2175
  %v2177 = vlaneseq
  %v2178 = vshrl.u32 %v2177, 7
  %v2179 = vsub.s32 0, %v2178
  %v2180 = vrot.slane %v2142, %v2179
  %v2181 = vlaneseq
  %v2182 = vshrl.u32 %v2181, 7
  %v2183 = vsub.s32 0, %v2182
  %v2184 = vrot.slane %v2156, %v2183
  %v2185 = vlaneseq
  %v2186 = vshrl.u32 %v2185, 7
  %v2187 = vsub.s32 0, %v2186
  %v2188 = vrot.slane %v2158, %v2187
  %v2189 = vlaneseq
  %v2190 = vshrl.u32 %v2189, 7
  %v2191 = vsub.s32 0, %v2190
  %v2192 = vrot.slane %v2160, %v2191
  %vm2193 = vcmp.eq.s32.totalorder %v29, %v2164
  %vm2194 = vcmp.eq.s32.totalorder %v33, %v2164
  %vm2195 = vcmp.eq.s32.totalorder %v37, %v2164
  %vm2196 = vcmp.eq.s32.totalorder %v41, %v2164
  %vm2197 = vcmp.eq.s32.totalorder %v45, %v2164
  %vm2198 = vcmp.eq.s32.totalorder %v49, %v2164
  %vm2199 = vcmp.eq.s32.totalorder %v53, %v2164
  %vm2200 = vcmp.eq.s32.totalorder %v57, %v2164
  %vm2201 = vcmp.eq.s32.totalorder %v61, %v2164
  %vm2202 = vcmp.eq.s32.totalorder %v65, %v2164
  %vm2203 = vcmp.eq.s32.totalorder %v69, %v2164
  %vm2204 = vcmp.eq.s32.totalorder %v73, %v2164
  %vm2205 = vcmp.eq.s32.totalorder %v77, %v2164
  %vm2206 = vcmp.eq.s32.totalorder %v81, %v2164
  %vm2207 = vcmp.eq.s32.totalorder %v85, %v2164
  %vm2208 = vcmp.eq.s32.totalorder %v89, %v2164
  %vm2209 = vcmp.eq.s32.totalorder %v96, %v2168
  %vm2210 = vcmp.eq.s32.totalorder %v100, %v2168
  %vm2211 = vcmp.eq.s32.totalorder %v104, %v2168
  %vm2212 = vcmp.eq.s32.totalorder %v108, %v2168
  %vm2213 = vcmp.eq.s32.totalorder %v112, %v2168
  %vm2214 = vcmp.eq.s32.totalorder %v116, %v2168
  %vm2215 = vcmp.eq.s32.totalorder %v120, %v2168
  %vm2216 = vcmp.eq.s32.totalorder %v124, %v2168
  %vm2217 = vcmp.eq.s32.totalorder %v128, %v2168
  %vm2218 = vcmp.eq.s32.totalorder %v132, %v2168
  %vm2219 = vcmp.eq.s32.totalorder %v136, %v2168
  %vm2220 = vcmp.eq.s32.totalorder %v140, %v2168
  %vm2221 = vcmp.eq.s32.totalorder %v144, %v2168
  %vm2222 = vcmp.eq.s32.totalorder %v148, %v2168
  %vm2223 = vcmp.eq.s32.totalorder %v152, %v2168
  %vm2224 = vcmp.eq.s32.totalorder %v156, %v2168
  %vm2225 = vcmp.eq.s32.totalorder %v163, %v2172
  %vm2226 = vcmp.eq.s32.totalorder %v167, %v2172
  %vm2227 = vcmp.eq.s32.totalorder %v171, %v2172
  %vm2228 = vcmp.eq.s32.totalorder %v175, %v2172
  %vm2229 = vcmp.eq.s32.totalorder %v179, %v2172
  %vm2230 = vcmp.eq.s32.totalorder %v183, %v2172
  %vm2231 = vcmp.eq.s32.totalorder %v187, %v2172
  %vm2232 = vcmp.eq.s32.totalorder %v191, %v2172
  %vm2233 = vcmp.eq.s32.totalorder %v195, %v2172
  %vm2234 = vcmp.eq.s32.totalorder %v199, %v2172
  %vm2235 = vcmp.eq.s32.totalorder %v203, %v2172
  %vm2236 = vcmp.eq.s32.totalorder %v207, %v2172
  %vm2237 = vcmp.eq.s32.totalorder %v211, %v2172
  %vm2238 = vcmp.eq.s32.totalorder %v215, %v2172
  %vm2239 = vcmp.eq.s32.totalorder %v219, %v2172
  %vm2240 = vcmp.eq.s32.totalorder %v223, %v2172
  %vm2241 = vcmp.eq.s32.totalorder %v230, %v2176
  %vm2242 = vcmp.eq.s32.totalorder %v234, %v2176
  %vm2243 = vcmp.eq.s32.totalorder %v238, %v2176
  %vm2244 = vcmp.eq.s32.totalorder %v242, %v2176
  %vm2245 = vcmp.eq.s32.totalorder %v246, %v2176
  %vm2246 = vcmp.eq.s32.totalorder %v250, %v2176
  %vm2247 = vcmp.eq.s32.totalorder %v254, %v2176
  %vm2248 = vcmp.eq.s32.totalorder %v258, %v2176
  %vm2249 = vcmp.eq.s32.totalorder %v262, %v2176
  %vm2250 = vcmp.eq.s32.totalorder %v266, %v2176
  %vm2251 = vcmp.eq.s32.totalorder %v270, %v2176
  %vm2252 = vcmp.eq.s32.totalorder %v274, %v2176
  %vm2253 = vcmp.eq.s32.totalorder %v278, %v2176
  %vm2254 = vcmp.eq.s32.totalorder %v282, %v2176
  %vm2255 = vcmp.eq.s32.totalorder %v286, %v2176
  %vm2256 = vcmp.eq.s32.totalorder %v290, %v2176
  %vm2257 = vcmp.eq.s32.totalorder %v297, %v2180
  %vm2258 = vcmp.eq.s32.totalorder %v301, %v2180
  %vm2259 = vcmp.eq.s32.totalorder %v305, %v2180
  %vm2260 = vcmp.eq.s32.totalorder %v309, %v2180
  %vm2261 = vcmp.eq.s32.totalorder %v313, %v2180
  %vm2262 = vcmp.eq.s32.totalorder %v317, %v2180
  %vm2263 = vcmp.eq.s32.totalorder %v321, %v2180
  %vm2264 = vcmp.eq.s32.totalorder %v325, %v2180
  %vm2265 = vcmp.eq.s32.totalorder %v329, %v2180
  %vm2266 = vcmp.eq.s32.totalorder %v333, %v2180
  %vm2267 = vcmp.eq.s32.totalorder %v337, %v2180
  %vm2268 = vcmp.eq.s32.totalorder %v341, %v2180
  %vm2269 = vcmp.eq.s32.totalorder %v345, %v2180
  %vm2270 = vcmp.eq.s32.totalorder %v349, %v2180
  %vm2271 = vcmp.eq.s32.totalorder %v353, %v2180
  %vm2272 = vcmp.eq.s32.totalorder %v357, %v2180
  %vm2273 = vcmp.eq.s32.totalorder %v364, %v2184
  %vm2274 = vcmp.eq.s32.totalorder %v368, %v2184
  %vm2275 = vcmp.eq.s32.totalorder %v372, %v2184
  %vm2276 = vcmp.eq.s32.totalorder %v376, %v2184
  %vm2277 = vcmp.eq.s32.totalorder %v380, %v2184
  %vm2278 = vcmp.eq.s32.totalorder %v384, %v2184
  %vm2279 = vcmp.eq.s32.totalorder %v388, %v2184
  %vm2280 = vcmp.eq.s32.totalorder %v392, %v2184
  %vm2281 = vcmp.eq.s32.totalorder %v396, %v2184
  %vm2282 = vcmp.eq.s32.totalorder %v400, %v2184
  %vm2283 = vcmp.eq.s32.totalorder %v404, %v2184
  %vm2284 = vcmp.eq.s32.totalorder %v408, %v2184
  %vm2285 = vcmp.eq.s32.totalorder %v412, %v2184
  %vm2286 = vcmp.eq.s32.totalorder %v416, %v2184
  %vm2287 = vcmp.eq.s32.totalorder %v420, %v2184
  %vm2288 = vcmp.eq.s32.totalorder %v424, %v2184
  %vm2289 = vcmp.eq.s32.totalorder %v431, %v2188
  %vm2290 = vcmp.eq.s32.totalorder %v435, %v2188
  %vm2291 = vcmp.eq.s32.totalorder %v439, %v2188
  %vm2292 = vcmp.eq.s32.totalorder %v443, %v2188
  %vm2293 = vcmp.eq.s32.totalorder %v447, %v2188
  %vm2294 = vcmp.eq.s32.totalorder %v451, %v2188
  %vm2295 = vcmp.eq.s32.totalorder %v455, %v2188
  %vm2296 = vcmp.eq.s32.totalorder %v459, %v2188
  %vm2297 = vcmp.eq.s32.totalorder %v463, %v2188
  %vm2298 = vcmp.eq.s32.totalorder %v467, %v2188
  %vm2299 = vcmp.eq.s32.totalorder %v471, %v2188
  %vm2300 = vcmp.eq.s32.totalorder %v475, %v2188
  %vm2301 = vcmp.eq.s32.totalorder %v479, %v2188
  %vm2302 = vcmp.eq.s32.totalorder %v483, %v2188
  %vm2303 = vcmp.eq.s32.totalorder %v487, %v2188
  %vm2304 = vcmp.eq.s32.totalorder %v491, %v2188
  %vm2305 = vcmp.eq.s32.totalorder %v498, %v2192
  %vm2306 = vcmp.eq.s32.totalorder %v502, %v2192
  %vm2307 = vcmp.eq.s32.totalorder %v506, %v2192
  %vm2308 = vcmp.eq.s32.totalorder %v510, %v2192
  %vm2309 = vcmp.eq.s32.totalorder %v514, %v2192
  %vm2310 = vcmp.eq.s32.totalorder %v518, %v2192
  %vm2311 = vcmp.eq.s32.totalorder %v522, %v2192
  %vm2312 = vcmp.eq.s32.totalorder %v526, %v2192
  %vm2313 = vcmp.eq.s32.totalorder %v530, %v2192
  %vm2314 = vcmp.eq.s32.totalorder %v534, %v2192
  %vm2315 = vcmp.eq.s32.totalorder %v538, %v2192
  %vm2316 = vcmp.eq.s32.totalorder %v542, %v2192
  %vm2317 = vcmp.eq.s32.totalorder %v546, %v2192
  %vm2318 = vcmp.eq.s32.totalorder %v550, %v2192
  %vm2319 = vcmp.eq.s32.totalorder %v554, %v2192
  %vm2320 = vcmp.eq.s32.totalorder %v558, %v2192
  %vm2321 = vcmp.lt.s32.totalorder %v1410, %v2091
  %vm2322 = vcmp.lt.s32.totalorder %v1410, %v2092
  %vm2323 = vcmp.lt.s32.totalorder %v1410, %v2093
  %vm2324 = vcmp.lt.s32.totalorder %v1410, %v2094
  %vm2325 = vcmp.lt.s32.totalorder %v1410, %v2095
  %vm2326 = vcmp.lt.s32.totalorder %v1410, %v2096
  %vm2327 = vcmp.lt.s32.totalorder %v1410, %v2097
  %vm2328 = vcmp.lt.s32.totalorder %v1410, %v2098
  %vm2329 = vcmp.lt.s32.totalorder %v1410, %v2099
  %vm2330 = vcmp.lt.s32.totalorder %v1410, %v2100
  %vm2331 = vcmp.lt.s32.totalorder %v1410, %v2101
  %vm2332 = vcmp.lt.s32.totalorder %v1410, %v2102
  %vm2333 = vcmp.lt.s32.totalorder %v1410, %v2103
  %vm2334 = vcmp.lt.s32.totalorder %v1410, %v2104
  %vm2335 = vcmp.lt.s32.totalorder %v1410, %v2105
  %vm2336 = vcmp.lt.s32.totalorder %v1410, %v2106
  %v2337 = vsel %vm2321, 1, 0
  %v2338 = vsel %vm2322, 1, 0
  %v2339 = vsel %vm2323, 1, 0
  %v2340 = vsel %vm2324, 1, 0
  %v2341 = vsel %vm2325, 1, 0
  %v2342 = vsel %vm2326, 1, 0
  %v2343 = vsel %vm2327, 1, 0
  %v2344 = vsel %vm2328, 1, 0
  %v2345 = vsel %vm2329, 1, 0
  %v2346 = vsel %vm2330, 1, 0
  %v2347 = vsel %vm2331, 1, 0
  %v2348 = vsel %vm2332, 1, 0
  %v2349 = vsel %vm2333, 1, 0
  %v2350 = vsel %vm2334, 1, 0
  %v2351 = vsel %vm2335, 1, 0
  %v2352 = vsel %vm2336, 1, 0
  %vm2353 = vcmp.eq.s32.totalorder %v2337, 1
  %vm2354 = vcmp.eq.s32.totalorder %v2338, 1
  %vm2355 = vcmp.eq.s32.totalorder %v2339, 1
  %vm2356 = vcmp.eq.s32.totalorder %v2340, 1
  %vm2357 = vcmp.eq.s32.totalorder %v2341, 1
  %vm2358 = vcmp.eq.s32.totalorder %v2342, 1
  %vm2359 = vcmp.eq.s32.totalorder %v2343, 1
  %vm2360 = vcmp.eq.s32.totalorder %v2344, 1
  %vm2361 = vcmp.eq.s32.totalorder %v2345, 1
  %vm2362 = vcmp.eq.s32.totalorder %v2346, 1
  %vm2363 = vcmp.eq.s32.totalorder %v2347, 1
  %vm2364 = vcmp.eq.s32.totalorder %v2348, 1
  %vm2365 = vcmp.eq.s32.totalorder %v2349, 1
  %vm2366 = vcmp.eq.s32.totalorder %v2350, 1
  %vm2367 = vcmp.eq.s32.totalorder %v2351, 1
  %vm2368 = vcmp.eq.s32.totalorder %v2352, 1
  %vm2369 = vmand %vm2193, %vm2353
  %vm2370 = vmand %vm2194, %vm2354
  %vm2371 = vmand %vm2195, %vm2355
  %vm2372 = vmand %vm2196, %vm2356
  %vm2373 = vmand %vm2197, %vm2357
  %vm2374 = vmand %vm2198, %vm2358
  %vm2375 = vmand %vm2199, %vm2359
  %vm2376 = vmand %vm2200, %vm2360
  %vm2377 = vmand %vm2201, %vm2361
  %vm2378 = vmand %vm2202, %vm2362
  %vm2379 = vmand %vm2203, %vm2363
  %vm2380 = vmand %vm2204, %vm2364
  %vm2381 = vmand %vm2205, %vm2365
  %vm2382 = vmand %vm2206, %vm2366
  %vm2383 = vmand %vm2207, %vm2367
  %vm2384 = vmand %vm2208, %vm2368
  %vm2385 = vmand %vm2209, %vm2353
  %vm2386 = vmand %vm2210, %vm2354
  %vm2387 = vmand %vm2211, %vm2355
  %vm2388 = vmand %vm2212, %vm2356
  %vm2389 = vmand %vm2213, %vm2357
  %vm2390 = vmand %vm2214, %vm2358
  %vm2391 = vmand %vm2215, %vm2359
  %vm2392 = vmand %vm2216, %vm2360
  %vm2393 = vmand %vm2217, %vm2361
  %vm2394 = vmand %vm2218, %vm2362
  %vm2395 = vmand %vm2219, %vm2363
  %vm2396 = vmand %vm2220, %vm2364
  %vm2397 = vmand %vm2221, %vm2365
  %vm2398 = vmand %vm2222, %vm2366
  %vm2399 = vmand %vm2223, %vm2367
  %vm2400 = vmand %vm2224, %vm2368
  %vm2401 = vmand %vm2225, %vm2353
  %vm2402 = vmand %vm2226, %vm2354
  %vm2403 = vmand %vm2227, %vm2355
  %vm2404 = vmand %vm2228, %vm2356
  %vm2405 = vmand %vm2229, %vm2357
  %vm2406 = vmand %vm2230, %vm2358
  %vm2407 = vmand %vm2231, %vm2359
  %vm2408 = vmand %vm2232, %vm2360
  %vm2409 = vmand %vm2233, %vm2361
  %vm2410 = vmand %vm2234, %vm2362
  %vm2411 = vmand %vm2235, %vm2363
  %vm2412 = vmand %vm2236, %vm2364
  %vm2413 = vmand %vm2237, %vm2365
  %vm2414 = vmand %vm2238, %vm2366
  %vm2415 = vmand %vm2239, %vm2367
  %vm2416 = vmand %vm2240, %vm2368
  %vm2417 = vmand %vm2241, %vm2353
  %vm2418 = vmand %vm2242, %vm2354
  %vm2419 = vmand %vm2243, %vm2355
  %vm2420 = vmand %vm2244, %vm2356
  %vm2421 = vmand %vm2245, %vm2357
  %vm2422 = vmand %vm2246, %vm2358
  %vm2423 = vmand %vm2247, %vm2359
  %vm2424 = vmand %vm2248, %vm2360
  %vm2425 = vmand %vm2249, %vm2361
  %vm2426 = vmand %vm2250, %vm2362
  %vm2427 = vmand %vm2251, %vm2363
  %vm2428 = vmand %vm2252, %vm2364
  %vm2429 = vmand %vm2253, %vm2365
  %vm2430 = vmand %vm2254, %vm2366
  %vm2431 = vmand %vm2255, %vm2367
  %vm2432 = vmand %vm2256, %vm2368
  %vm2433 = vmand %vm2257, %vm2353
  %vm2434 = vmand %vm2258, %vm2354
  %vm2435 = vmand %vm2259, %vm2355
  %vm2436 = vmand %vm2260, %vm2356
  %vm2437 = vmand %vm2261, %vm2357
  %vm2438 = vmand %vm2262, %vm2358
  %vm2439 = vmand %vm2263, %vm2359
  %vm2440 = vmand %vm2264, %vm2360
  %vm2441 = vmand %vm2265, %vm2361
  %vm2442 = vmand %vm2266, %vm2362
  %vm2443 = vmand %vm2267, %vm2363
  %vm2444 = vmand %vm2268, %vm2364
  %vm2445 = vmand %vm2269, %vm2365
  %vm2446 = vmand %vm2270, %vm2366
  %vm2447 = vmand %vm2271, %vm2367
  %vm2448 = vmand %vm2272, %vm2368
  %vm2449 = vmand %vm2273, %vm2353
  %vm2450 = vmand %vm2274, %vm2354
  %vm2451 = vmand %vm2275, %vm2355
  %vm2452 = vmand %vm2276, %vm2356
  %vm2453 = vmand %vm2277, %vm2357
  %vm2454 = vmand %vm2278, %vm2358
  %vm2455 = vmand %vm2279, %vm2359
  %vm2456 = vmand %vm2280, %vm2360
  %vm2457 = vmand %vm2281, %vm2361
  %vm2458 = vmand %vm2282, %vm2362
  %vm2459 = vmand %vm2283, %vm2363
  %vm2460 = vmand %vm2284, %vm2364
  %vm2461 = vmand %vm2285, %vm2365
  %vm2462 = vmand %vm2286, %vm2366
  %vm2463 = vmand %vm2287, %vm2367
  %vm2464 = vmand %vm2288, %vm2368
  %vm2465 = vmand %vm2289, %vm2353
  %vm2466 = vmand %vm2290, %vm2354
  %vm2467 = vmand %vm2291, %vm2355
  %vm2468 = vmand %vm2292, %vm2356
  %vm2469 = vmand %vm2293, %vm2357
  %vm2470 = vmand %vm2294, %vm2358
  %vm2471 = vmand %vm2295, %vm2359
  %vm2472 = vmand %vm2296, %vm2360
  %vm2473 = vmand %vm2297, %vm2361
  %vm2474 = vmand %vm2298, %vm2362
  %vm2475 = vmand %vm2299, %vm2363
  %vm2476 = vmand %vm2300, %vm2364
  %vm2477 = vmand %vm2301, %vm2365
  %vm2478 = vmand %vm2302, %vm2366
  %vm2479 = vmand %vm2303, %vm2367
  %vm2480 = vmand %vm2304, %vm2368
  %vm2481 = vmand %vm2305, %vm2353
  %vm2482 = vmand %vm2306, %vm2354
  %vm2483 = vmand %vm2307, %vm2355
  %vm2484 = vmand %vm2308, %vm2356
  %vm2485 = vmand %vm2309, %vm2357
  %vm2486 = vmand %vm2310, %vm2358
  %vm2487 = vmand %vm2311, %vm2359
  %vm2488 = vmand %vm2312, %vm2360
  %vm2489 = vmand %vm2313, %vm2361
  %vm2490 = vmand %vm2314, %vm2362
  %vm2491 = vmand %vm2315, %vm2363
  %vm2492 = vmand %vm2316, %vm2364
  %vm2493 = vmand %vm2317, %vm2365
  %vm2494 = vmand %vm2318, %vm2366
  %vm2495 = vmand %vm2319, %vm2367
  %vm2496 = vmand %vm2320, %vm2368
  %v2497 = vld [vmem:[#allocation3] sm:$0xff]
  %v2498 = vsel %vm2369, 1, 0
  %v2499 = vsel %vm2370, 1, 0
  %v2500 = vsel %vm2371, 1, 0
  %v2501 = vsel %vm2372, 1, 0
  %v2502 = vsel %vm2373, 1, 0
  %v2503 = vsel %vm2374, 1, 0
  %v2504 = vsel %vm2375, 1, 0
  %v2505 = vsel %vm2376, 1, 0
  %v2506 = vsel %vm2377, 1, 0
  %v2507 = vsel %vm2378, 1, 0
  %v2508 = vsel %vm2379, 1, 0
  %v2509 = vsel %vm2380, 1, 0
  %v2510 = vsel %vm2381, 1, 0
  %v2511 = vsel %vm2382, 1, 0
  %v2512 = vsel %vm2383, 1, 0
  %v2513 = vsel %vm2384, 1, 0
  %v2514 = vsel %vm2385, 1, 0
  %v2515 = vsel %vm2386, 1, 0
  %v2516 = vsel %vm2387, 1, 0
  %v2517 = vsel %vm2388, 1, 0
  %v2518 = vsel %vm2389, 1, 0
  %v2519 = vsel %vm2390, 1, 0
  %v2520 = vsel %vm2391, 1, 0
  %v2521 = vsel %vm2392, 1, 0
  %v2522 = vsel %vm2393, 1, 0
  %v2523 = vsel %vm2394, 1, 0
  %v2524 = vsel %vm2395, 1, 0
  %v2525 = vsel %vm2396, 1, 0
  %v2526 = vsel %vm2397, 1, 0
  %v2527 = vsel %vm2398, 1, 0
  %v2528 = vsel %vm2399, 1, 0
  %v2529 = vsel %vm2400, 1, 0
  %v2530 = vsel %vm2401, 1, 0
  %v2531 = vsel %vm2402, 1, 0
  %v2532 = vsel %vm2403, 1, 0
  %v2533 = vsel %vm2404, 1, 0
  %v2534 = vsel %vm2405, 1, 0
  %v2535 = vsel %vm2406, 1, 0
  %v2536 = vsel %vm2407, 1, 0
  %v2537 = vsel %vm2408, 1, 0
  %v2538 = vsel %vm2409, 1, 0
  %v2539 = vsel %vm2410, 1, 0
  %v2540 = vsel %vm2411, 1, 0
  %v2541 = vsel %vm2412, 1, 0
  %v2542 = vsel %vm2413, 1, 0
  %v2543 = vsel %vm2414, 1, 0
  %v2544 = vsel %vm2415, 1, 0
  %v2545 = vsel %vm2416, 1, 0
  %v2546 = vsel %vm2417, 1, 0
  %v2547 = vsel %vm2418, 1, 0
  %v2548 = vsel %vm2419, 1, 0
  %v2549 = vsel %vm2420, 1, 0
  %v2550 = vsel %vm2421, 1, 0
  %v2551 = vsel %vm2422, 1, 0
  %v2552 = vsel %vm2423, 1, 0
  %v2553 = vsel %vm2424, 1, 0
  %v2554 = vsel %vm2425, 1, 0
  %v2555 = vsel %vm2426, 1, 0
  %v2556 = vsel %vm2427, 1, 0
  %v2557 = vsel %vm2428, 1, 0
  %v2558 = vsel %vm2429, 1, 0
  %v2559 = vsel %vm2430, 1, 0
  %v2560 = vsel %vm2431, 1, 0
  %v2561 = vsel %vm2432, 1, 0
  %v2562 = vsel %vm2433, 1, 0
  %v2563 = vsel %vm2434, 1, 0
  %v2564 = vsel %vm2435, 1, 0
  %v2565 = vsel %vm2436, 1, 0
  %v2566 = vsel %vm2437, 1, 0
  %v2567 = vsel %vm2438, 1, 0
  %v2568 = vsel %vm2439, 1, 0
  %v2569 = vsel %vm2440, 1, 0
  %v2570 = vsel %vm2441, 1, 0
  %v2571 = vsel %vm2442, 1, 0
  %v2572 = vsel %vm2443, 1, 0
  %v2573 = vsel %vm2444, 1, 0
  %v2574 = vsel %vm2445, 1, 0
  %v2575 = vsel %vm2446, 1, 0
  %v2576 = vsel %vm2447, 1, 0
  %v2577 = vsel %vm2448, 1, 0
  %v2578 = vsel %vm2449, 1, 0
  %v2579 = vsel %vm2450, 1, 0
  %v2580 = vsel %vm2451, 1, 0
  %v2581 = vsel %vm2452, 1, 0
  %v2582 = vsel %vm2453, 1, 0
  %v2583 = vsel %vm2454, 1, 0
  %v2584 = vsel %vm2455, 1, 0
  %v2585 = vsel %vm2456, 1, 0
  %v2586 = vsel %vm2457, 1, 0
  %v2587 = vsel %vm2458, 1, 0
  %v2588 = vsel %vm2459, 1, 0
  %v2589 = vsel %vm2460, 1, 0
  %v2590 = vsel %vm2461, 1, 0
  %v2591 = vsel %vm2462, 1, 0
  %v2592 = vsel %vm2463, 1, 0
  %v2593 = vsel %vm2464, 1, 0
  %v2594 = vsel %vm2465, 1, 0
  %v2595 = vsel %vm2466, 1, 0
  %v2596 = vsel %vm2467, 1, 0
  %v2597 = vsel %vm2468, 1, 0
  %v2598 = vsel %vm2469, 1, 0
  %v2599 = vsel %vm2470, 1, 0
  %v2600 = vsel %vm2471, 1, 0
  %v2601 = vsel %vm2472, 1, 0
  %v2602 = vsel %vm2473, 1, 0
  %v2603 = vsel %vm2474, 1, 0
  %v2604 = vsel %vm2475, 1, 0
  %v2605 = vsel %vm2476, 1, 0
  %v2606 = vsel %vm2477, 1, 0
  %v2607 = vsel %vm2478, 1, 0
  %v2608 = vsel %vm2479, 1, 0
  %v2609 = vsel %vm2480, 1, 0
  %v2610 = vsel %vm2481, 1, 0
  %v2611 = vsel %vm2482, 1, 0
  %v2612 = vsel %vm2483, 1, 0
  %v2613 = vsel %vm2484, 1, 0
  %v2614 = vsel %vm2485, 1, 0
  %v2615 = vsel %vm2486, 1, 0
  %v2616 = vsel %vm2487, 1, 0
  %v2617 = vsel %vm2488, 1, 0
  %v2618 = vsel %vm2489, 1, 0
  %v2619 = vsel %vm2490, 1, 0
  %v2620 = vsel %vm2491, 1, 0
  %v2621 = vsel %vm2492, 1, 0
  %v2622 = vsel %vm2493, 1, 0
  %v2623 = vsel %vm2494, 1, 0
  %v2624 = vsel %vm2495, 1, 0
  %v2625 = vsel %vm2496, 1, 0
  %v2626 = vcvt.s32.f32 %v2498
  %v2627 = vcvt.s32.f32 %v2499
  %v2628 = vcvt.s32.f32 %v2500
  %v2629 = vcvt.s32.f32 %v2501
  %v2630 = vcvt.s32.f32 %v2502
  %v2631 = vcvt.s32.f32 %v2503
  %v2632 = vcvt.s32.f32 %v2504
  %v2633 = vcvt.s32.f32 %v2505
  %v2634 = vcvt.s32.f32 %v2506
  %v2635 = vcvt.s32.f32 %v2507
  %v2636 = vcvt.s32.f32 %v2508
  %v2637 = vcvt.s32.f32 %v2509
  %v2638 = vcvt.s32.f32 %v2510
  %v2639 = vcvt.s32.f32 %v2511
  %v2640 = vcvt.s32.f32 %v2512
  %v2641 = vcvt.s32.f32 %v2513
  %v2642 = vcvt.s32.f32 %v2514
  %v2643 = vcvt.s32.f32 %v2515
  %v2644 = vcvt.s32.f32 %v2516
  %v2645 = vcvt.s32.f32 %v2517
  %v2646 = vcvt.s32.f32 %v2518
  %v2647 = vcvt.s32.f32 %v2519
  %v2648 = vcvt.s32.f32 %v2520
  %v2649 = vcvt.s32.f32 %v2521
  %v2650 = vcvt.s32.f32 %v2522
  %v2651 = vcvt.s32.f32 %v2523
  %v2652 = vcvt.s32.f32 %v2524
  %v2653 = vcvt.s32.f32 %v2525
  %v2654 = vcvt.s32.f32 %v2526
  %v2655 = vcvt.s32.f32 %v2527
  %v2656 = vcvt.s32.f32 %v2528
  %v2657 = vcvt.s32.f32 %v2529
  %v2658 = vcvt.s32.f32 %v2530
  %v2659 = vcvt.s32.f32 %v2531
  %v2660 = vcvt.s32.f32 %v2532
  %v2661 = vcvt.s32.f32 %v2533
  %v2662 = vcvt.s32.f32 %v2534
  %v2663 = vcvt.s32.f32 %v2535
  %v2664 = vcvt.s32.f32 %v2536
  %v2665 = vcvt.s32.f32 %v2537
  %v2666 = vcvt.s32.f32 %v2538
  %v2667 = vcvt.s32.f32 %v2539
  %v2668 = vcvt.s32.f32 %v2540
  %v2669 = vcvt.s32.f32 %v2541
  %v2670 = vcvt.s32.f32 %v2542
  %v2671 = vcvt.s32.f32 %v2543
  %v2672 = vcvt.s32.f32 %v2544
  %v2673 = vcvt.s32.f32 %v2545
  %v2674 = vcvt.s32.f32 %v2546
  %v2675 = vcvt.s32.f32 %v2547
  %v2676 = vcvt.s32.f32 %v2548
  %v2677 = vcvt.s32.f32 %v2549
  %v2678 = vcvt.s32.f32 %v2550
  %v2679 = vcvt.s32.f32 %v2551
  %v2680 = vcvt.s32.f32 %v2552
  %v2681 = vcvt.s32.f32 %v2553
  %v2682 = vcvt.s32.f32 %v2554
  %v2683 = vcvt.s32.f32 %v2555
  %v2684 = vcvt.s32.f32 %v2556
  %v2685 = vcvt.s32.f32 %v2557
  %v2686 = vcvt.s32.f32 %v2558
  %v2687 = vcvt.s32.f32 %v2559
  %v2688 = vcvt.s32.f32 %v2560
  %v2689 = vcvt.s32.f32 %v2561
  %v2690 = vcvt.s32.f32 %v2562
  %v2691 = vcvt.s32.f32 %v2563
  %v2692 = vcvt.s32.f32 %v2564
  %v2693 = vcvt.s32.f32 %v2565
  %v2694 = vcvt.s32.f32 %v2566
  %v2695 = vcvt.s32.f32 %v2567
  %v2696 = vcvt.s32.f32 %v2568
  %v2697 = vcvt.s32.f32 %v2569
  %v2698 = vcvt.s32.f32 %v2570
  %v2699 = vcvt.s32.f32 %v2571
  %v2700 = vcvt.s32.f32 %v2572
  %v2701 = vcvt.s32.f32 %v2573
  %v2702 = vcvt.s32.f32 %v2574
  %v2703 = vcvt.s32.f32 %v2575
  %v2704 = vcvt.s32.f32 %v2576
  %v2705 = vcvt.s32.f32 %v2577
  %v2706 = vcvt.s32.f32 %v2578
  %v2707 = vcvt.s32.f32 %v2579
  %v2708 = vcvt.s32.f32 %v2580
  %v2709 = vcvt.s32.f32 %v2581
  %v2710 = vcvt.s32.f32 %v2582
  %v2711 = vcvt.s32.f32 %v2583
  %v2712 = vcvt.s32.f32 %v2584
  %v2713 = vcvt.s32.f32 %v2585
  %v2714 = vcvt.s32.f32 %v2586
  %v2715 = vcvt.s32.f32 %v2587
  %v2716 = vcvt.s32.f32 %v2588
  %v2717 = vcvt.s32.f32 %v2589
  %v2718 = vcvt.s32.f32 %v2590
  %v2719 = vcvt.s32.f32 %v2591
  %v2720 = vcvt.s32.f32 %v2592
  %v2721 = vcvt.s32.f32 %v2593
  %v2722 = vcvt.s32.f32 %v2594
  %v2723 = vcvt.s32.f32 %v2595
  %v2724 = vcvt.s32.f32 %v2596
  %v2725 = vcvt.s32.f32 %v2597
  %v2726 = vcvt.s32.f32 %v2598
  %v2727 = vcvt.s32.f32 %v2599
  %v2728 = vcvt.s32.f32 %v2600
  %v2729 = vcvt.s32.f32 %v2601
  %v2730 = vcvt.s32.f32 %v2602
  %v2731 = vcvt.s32.f32 %v2603
  %v2732 = vcvt.s32.f32 %v2604
  %v2733 = vcvt.s32.f32 %v2605
  %v2734 = vcvt.s32.f32 %v2606
  %v2735 = vcvt.s32.f32 %v2607
  %v2736 = vcvt.s32.f32 %v2608
  %v2737 = vcvt.s32.f32 %v2609
  %v2738 = vcvt.s32.f32 %v2610
  %v2739 = vcvt.s32.f32 %v2611
  %v2740 = vcvt.s32.f32 %v2612
  %v2741 = vcvt.s32.f32 %v2613
  %v2742 = vcvt.s32.f32 %v2614
  %v2743 = vcvt.s32.f32 %v2615
  %v2744 = vcvt.s32.f32 %v2616
  %v2745 = vcvt.s32.f32 %v2617
  %v2746 = vcvt.s32.f32 %v2618
  %v2747 = vcvt.s32.f32 %v2619
  %v2748 = vcvt.s32.f32 %v2620
  %v2749 = vcvt.s32.f32 %v2621
  %v2750 = vcvt.s32.f32 %v2622
  %v2751 = vcvt.s32.f32 %v2623
  %v2752 = vcvt.s32.f32 %v2624
  %v2753 = vcvt.s32.f32 %v2625
  %2754 = vadd.xlane.f32.xlu0 %v2626
  %v2755 = vpop.xlane.xlu0 %2754
  %2756 = vadd.xlane.f32.xlu0 %v2627
  %v2757 = vpop.xlane.xlu0 %2756
  %2758 = vadd.xlane.f32.xlu0 %v2628
  %v2759 = vpop.xlane.xlu0 %2758
  %2760 = vadd.xlane.f32.xlu0 %v2629
  %v2761 = vpop.xlane.xlu0 %2760
  %2762 = vadd.xlane.f32.xlu0 %v2630
  %v2763 = vpop.xlane.xlu0 %2762
  %2764 = vadd.xlane.f32.xlu0 %v2631
  %v2765 = vpop.xlane.xlu0 %2764
  %2766 = vadd.xlane.f32.xlu0 %v2632
  %v2767 = vpop.xlane.xlu0 %2766
  %2768 = vadd.xlane.f32.xlu0 %v2633
  %v2769 = vpop.xlane.xlu0 %2768
  %2770 = vadd.xlane.f32.xlu0 %v2634
  %v2771 = vpop.xlane.xlu0 %2770
  %2772 = vadd.xlane.f32.xlu0 %v2635
  %v2773 = vpop.xlane.xlu0 %2772
  %2774 = vadd.xlane.f32.xlu0 %v2636
  %v2775 = vpop.xlane.xlu0 %2774
  %2776 = vadd.xlane.f32.xlu0 %v2637
  %v2777 = vpop.xlane.xlu0 %2776
  %2778 = vadd.xlane.f32.xlu0 %v2638
  %v2779 = vpop.xlane.xlu0 %2778
  %2780 = vadd.xlane.f32.xlu0 %v2639
  %v2781 = vpop.xlane.xlu0 %2780
  %2782 = vadd.xlane.f32.xlu0 %v2640
  %v2783 = vpop.xlane.xlu0 %2782
  %2784 = vadd.xlane.f32.xlu0 %v2641
  %v2785 = vpop.xlane.xlu0 %2784
  %2786 = vadd.xlane.f32.xlu0 %v2642
  %v2787 = vpop.xlane.xlu0 %2786
  %2788 = vadd.xlane.f32.xlu0 %v2643
  %v2789 = vpop.xlane.xlu0 %2788
  %2790 = vadd.xlane.f32.xlu0 %v2644
  %v2791 = vpop.xlane.xlu0 %2790
  %2792 = vadd.xlane.f32.xlu0 %v2645
  %v2793 = vpop.xlane.xlu0 %2792
  %2794 = vadd.xlane.f32.xlu0 %v2646
  %v2795 = vpop.xlane.xlu0 %2794
  %2796 = vadd.xlane.f32.xlu0 %v2647
  %v2797 = vpop.xlane.xlu0 %2796
  %2798 = vadd.xlane.f32.xlu0 %v2648
  %v2799 = vpop.xlane.xlu0 %2798
  %2800 = vadd.xlane.f32.xlu0 %v2649
  %v2801 = vpop.xlane.xlu0 %2800
  %2802 = vadd.xlane.f32.xlu0 %v2650
  %v2803 = vpop.xlane.xlu0 %2802
  %2804 = vadd.xlane.f32.xlu0 %v2651
  %v2805 = vpop.xlane.xlu0 %2804
  %2806 = vadd.xlane.f32.xlu0 %v2652
  %v2807 = vpop.xlane.xlu0 %2806
  %2808 = vadd.xlane.f32.xlu0 %v2653
  %v2809 = vpop.xlane.xlu0 %2808
  %2810 = vadd.xlane.f32.xlu0 %v2654
  %v2811 = vpop.xlane.xlu0 %2810
  %2812 = vadd.xlane.f32.xlu0 %v2655
  %v2813 = vpop.xlane.xlu0 %2812
  %2814 = vadd.xlane.f32.xlu0 %v2656
  %v2815 = vpop.xlane.xlu0 %2814
  %2816 = vadd.xlane.f32.xlu0 %v2657
  %v2817 = vpop.xlane.xlu0 %2816
  %2818 = vadd.xlane.f32.xlu0 %v2658
  %v2819 = vpop.xlane.xlu0 %2818
  %2820 = vadd.xlane.f32.xlu0 %v2659
  %v2821 = vpop.xlane.xlu0 %2820
  %2822 = vadd.xlane.f32.xlu0 %v2660
  %v2823 = vpop.xlane.xlu0 %2822
  %2824 = vadd.xlane.f32.xlu0 %v2661
  %v2825 = vpop.xlane.xlu0 %2824
  %2826 = vadd.xlane.f32.xlu0 %v2662
  %v2827 = vpop.xlane.xlu0 %2826
  %2828 = vadd.xlane.f32.xlu0 %v2663
  %v2829 = vpop.xlane.xlu0 %2828
  %2830 = vadd.xlane.f32.xlu0 %v2664
  %v2831 = vpop.xlane.xlu0 %2830
  %2832 = vadd.xlane.f32.xlu0 %v2665
  %v2833 = vpop.xlane.xlu0 %2832
  %2834 = vadd.xlane.f32.xlu0 %v2666
  %v2835 = vpop.xlane.xlu0 %2834
  %2836 = vadd.xlane.f32.xlu0 %v2667
  %v2837 = vpop.xlane.xlu0 %2836
  %2838 = vadd.xlane.f32.xlu0 %v2668
  %v2839 = vpop.xlane.xlu0 %2838
  %2840 = vadd.xlane.f32.xlu0 %v2669
  %v2841 = vpop.xlane.xlu0 %2840
  %2842 = vadd.xlane.f32.xlu0 %v2670
  %v2843 = vpop.xlane.xlu0 %2842
  %2844 = vadd.xlane.f32.xlu0 %v2671
  %v2845 = vpop.xlane.xlu0 %2844
  %2846 = vadd.xlane.f32.xlu0 %v2672
  %v2847 = vpop.xlane.xlu0 %2846
  %2848 = vadd.xlane.f32.xlu0 %v2673
  %v2849 = vpop.xlane.xlu0 %2848
  %2850 = vadd.xlane.f32.xlu0 %v2674
  %v2851 = vpop.xlane.xlu0 %2850
  %2852 = vadd.xlane.f32.xlu0 %v2675
  %v2853 = vpop.xlane.xlu0 %2852
  %2854 = vadd.xlane.f32.xlu0 %v2676
  %v2855 = vpop.xlane.xlu0 %2854
  %2856 = vadd.xlane.f32.xlu0 %v2677
  %v2857 = vpop.xlane.xlu0 %2856
  %2858 = vadd.xlane.f32.xlu0 %v2678
  %v2859 = vpop.xlane.xlu0 %2858
  %2860 = vadd.xlane.f32.xlu0 %v2679
  %v2861 = vpop.xlane.xlu0 %2860
  %2862 = vadd.xlane.f32.xlu0 %v2680
  %v2863 = vpop.xlane.xlu0 %2862
  %2864 = vadd.xlane.f32.xlu0 %v2681
  %v2865 = vpop.xlane.xlu0 %2864
  %2866 = vadd.xlane.f32.xlu0 %v2682
  %v2867 = vpop.xlane.xlu0 %2866
  %2868 = vadd.xlane.f32.xlu0 %v2683
  %v2869 = vpop.xlane.xlu0 %2868
  %2870 = vadd.xlane.f32.xlu0 %v2684
  %v2871 = vpop.xlane.xlu0 %2870
  %2872 = vadd.xlane.f32.xlu0 %v2685
  %v2873 = vpop.xlane.xlu0 %2872
  %2874 = vadd.xlane.f32.xlu0 %v2686
  %v2875 = vpop.xlane.xlu0 %2874
  %2876 = vadd.xlane.f32.xlu0 %v2687
  %v2877 = vpop.xlane.xlu0 %2876
  %2878 = vadd.xlane.f32.xlu0 %v2688
  %v2879 = vpop.xlane.xlu0 %2878
  %2880 = vadd.xlane.f32.xlu0 %v2689
  %v2881 = vpop.xlane.xlu0 %2880
  %2882 = vadd.xlane.f32.xlu0 %v2690
  %v2883 = vpop.xlane.xlu0 %2882
  %2884 = vadd.xlane.f32.xlu0 %v2691
  %v2885 = vpop.xlane.xlu0 %2884
  %2886 = vadd.xlane.f32.xlu0 %v2692
  %v2887 = vpop.xlane.xlu0 %2886
  %2888 = vadd.xlane.f32.xlu0 %v2693
  %v2889 = vpop.xlane.xlu0 %2888
  %2890 = vadd.xlane.f32.xlu0 %v2694
  %v2891 = vpop.xlane.xlu0 %2890
  %2892 = vadd.xlane.f32.xlu0 %v2695
  %v2893 = vpop.xlane.xlu0 %2892
  %2894 = vadd.xlane.f32.xlu0 %v2696
  %v2895 = vpop.xlane.xlu0 %2894
  %2896 = vadd.xlane.f32.xlu0 %v2697
  %v2897 = vpop.xlane.xlu0 %2896
  %2898 = vadd.xlane.f32.xlu0 %v2698
  %v2899 = vpop.xlane.xlu0 %2898
  %2900 = vadd.xlane.f32.xlu0 %v2699
  %v2901 = vpop.xlane.xlu0 %2900
  %2902 = vadd.xlane.f32.xlu0 %v2700
  %v2903 = vpop.xlane.xlu0 %2902
  %2904 = vadd.xlane.f32.xlu0 %v2701
  %v2905 = vpop.xlane.xlu0 %2904
  %2906 = vadd.xlane.f32.xlu0 %v2702
  %v2907 = vpop.xlane.xlu0 %2906
  %2908 = vadd.xlane.f32.xlu0 %v2703
  %v2909 = vpop.xlane.xlu0 %2908
  %2910 = vadd.xlane.f32.xlu0 %v2704
  %v2911 = vpop.xlane.xlu0 %2910
  %2912 = vadd.xlane.f32.xlu0 %v2705
  %v2913 = vpop.xlane.xlu0 %2912
  %2914 = vadd.xlane.f32.xlu0 %v2706
  %v2915 = vpop.xlane.xlu0 %2914
  %2916 = vadd.xlane.f32.xlu0 %v2707
  %v2917 = vpop.xlane.xlu0 %2916
  %2918 = vadd.xlane.f32.xlu0 %v2708
  %v2919 = vpop.xlane.xlu0 %2918
  %2920 = vadd.xlane.f32.xlu0 %v2709
  %v2921 = vpop.xlane.xlu0 %2920
  %2922 = vadd.xlane.f32.xlu0 %v2710
  %v2923 = vpop.xlane.xlu0 %2922
  %2924 = vadd.xlane.f32.xlu0 %v2711
  %v2925 = vpop.xlane.xlu0 %2924
  %2926 = vadd.xlane.f32.xlu0 %v2712
  %v2927 = vpop.xlane.xlu0 %2926
  %2928 = vadd.xlane.f32.xlu0 %v2713
  %v2929 = vpop.xlane.xlu0 %2928
  %2930 = vadd.xlane.f32.xlu0 %v2714
  %v2931 = vpop.xlane.xlu0 %2930
  %2932 = vadd.xlane.f32.xlu0 %v2715
  %v2933 = vpop.xlane.xlu0 %2932
  %2934 = vadd.xlane.f32.xlu0 %v2716
  %v2935 = vpop.xlane.xlu0 %2934
  %2936 = vadd.xlane.f32.xlu0 %v2717
  %v2937 = vpop.xlane.xlu0 %2936
  %2938 = vadd.xlane.f32.xlu0 %v2718
  %v2939 = vpop.xlane.xlu0 %2938
  %2940 = vadd.xlane.f32.xlu0 %v2719
  %v2941 = vpop.xlane.xlu0 %2940
  %2942 = vadd.xlane.f32.xlu0 %v2720
  %v2943 = vpop.xlane.xlu0 %2942
  %2944 = vadd.xlane.f32.xlu0 %v2721
  %v2945 = vpop.xlane.xlu0 %2944
  %2946 = vadd.xlane.f32.xlu0 %v2722
  %v2947 = vpop.xlane.xlu0 %2946
  %2948 = vadd.xlane.f32.xlu0 %v2723
  %v2949 = vpop.xlane.xlu0 %2948
  %2950 = vadd.xlane.f32.xlu0 %v2724
  %v2951 = vpop.xlane.xlu0 %2950
  %2952 = vadd.xlane.f32.xlu0 %v2725
  %v2953 = vpop.xlane.xlu0 %2952
  %2954 = vadd.xlane.f32.xlu0 %v2726
  %v2955 = vpop.xlane.xlu0 %2954
  %2956 = vadd.xlane.f32.xlu0 %v2727
  %v2957 = vpop.xlane.xlu0 %2956
  %2958 = vadd.xlane.f32.xlu0 %v2728
  %v2959 = vpop.xlane.xlu0 %2958
  %2960 = vadd.xlane.f32.xlu0 %v2729
  %v2961 = vpop.xlane.xlu0 %2960
  %2962 = vadd.xlane.f32.xlu0 %v2730
  %v2963 = vpop.xlane.xlu0 %2962
  %2964 = vadd.xlane.f32.xlu0 %v2731
  %v2965 = vpop.xlane.xlu0 %2964
  %2966 = vadd.xlane.f32.xlu0 %v2732
  %v2967 = vpop.xlane.xlu0 %2966
  %2968 = vadd.xlane.f32.xlu0 %v2733
  %v2969 = vpop.xlane.xlu0 %2968
  %2970 = vadd.xlane.f32.xlu0 %v2734
  %v2971 = vpop.xlane.xlu0 %2970
  %2972 = vadd.xlane.f32.xlu0 %v2735
  %v2973 = vpop.xlane.xlu0 %2972
  %2974 = vadd.xlane.f32.xlu0 %v2736
  %v2975 = vpop.xlane.xlu0 %2974
  %2976 = vadd.xlane.f32.xlu0 %v2737
  %v2977 = vpop.xlane.xlu0 %2976
  %2978 = vadd.xlane.f32.xlu0 %v2738
  %v2979 = vpop.xlane.xlu0 %2978
  %2980 = vadd.xlane.f32.xlu0 %v2739
  %v2981 = vpop.xlane.xlu0 %2980
  %2982 = vadd.xlane.f32.xlu0 %v2740
  %v2983 = vpop.xlane.xlu0 %2982
  %2984 = vadd.xlane.f32.xlu0 %v2741
  %v2985 = vpop.xlane.xlu0 %2984
  %2986 = vadd.xlane.f32.xlu0 %v2742
  %v2987 = vpop.xlane.xlu0 %2986
  %2988 = vadd.xlane.f32.xlu0 %v2743
  %v2989 = vpop.xlane.xlu0 %2988
  %2990 = vadd.xlane.f32.xlu0 %v2744
  %v2991 = vpop.xlane.xlu0 %2990
  %2992 = vadd.xlane.f32.xlu0 %v2745
  %v2993 = vpop.xlane.xlu0 %2992
  %2994 = vadd.xlane.f32.xlu0 %v2746
  %v2995 = vpop.xlane.xlu0 %2994
  %2996 = vadd.xlane.f32.xlu0 %v2747
  %v2997 = vpop.xlane.xlu0 %2996
  %2998 = vadd.xlane.f32.xlu0 %v2748
  %v2999 = vpop.xlane.xlu0 %2998
  %3000 = vadd.xlane.f32.xlu0 %v2749
  %v3001 = vpop.xlane.xlu0 %3000
  %3002 = vadd.xlane.f32.xlu0 %v2750
  %v3003 = vpop.xlane.xlu0 %3002
  %3004 = vadd.xlane.f32.xlu0 %v2751
  %v3005 = vpop.xlane.xlu0 %3004
  %3006 = vadd.xlane.f32.xlu0 %v2752
  %v3007 = vpop.xlane.xlu0 %3006
  %3008 = vadd.xlane.f32.xlu0 %v2753
  %v3009 = vpop.xlane.xlu0 %3008
  %v3138 = vlaneseq
  %v3139 = vshrl.u32 %v3138, 7
  %v3140 = vsub.s32 %v1410, %v3139
  %v3141 = vrot.slane %v2755, %v3140
  %v3142 = vlaneseq
  %v3143 = vshrl.u32 %v3142, 7
  %v3144 = vsub.s32 %v1415, %v3143
  %v3145 = vrot.slane %v2757, %v3144
  %v3146 = vsel %vm1420, %v3145, %v3141
  %v3147 = vlaneseq
  %v3148 = vshrl.u32 %v3147, 7
  %v3149 = vsub.s32 %v1422, %v3148
  %v3150 = vrot.slane %v2759, %v3149
  %v3151 = vsel %vm1427, %v3150, %v3146
  %v3152 = vlaneseq
  %v3153 = vshrl.u32 %v3152, 7
  %v3154 = vsub.s32 %v1429, %v3153
  %v3155 = vrot.slane %v2761, %v3154
  %v3156 = vsel %vm1434, %v3155, %v3151
  %v3157 = vlaneseq
  %v3158 = vshrl.u32 %v3157, 7
  %v3159 = vsub.s32 %v1436, %v3158
  %v3160 = vrot.slane %v2763, %v3159
  %v3161 = vsel %vm1441, %v3160, %v3156
  %v3162 = vlaneseq
  %v3163 = vshrl.u32 %v3162, 7
  %v3164 = vsub.s32 %v1443, %v3163
  %v3165 = vrot.slane %v2765, %v3164
  %v3166 = vsel %vm1448, %v3165, %v3161
  %v3167 = vlaneseq
  %v3168 = vshrl.u32 %v3167, 7
  %v3169 = vsub.s32 %v1450, %v3168
  %v3170 = vrot.slane %v2767, %v3169
  %v3171 = vsel %vm1455, %v3170, %v3166
  %v3172 = vlaneseq
  %v3173 = vshrl.u32 %v3172, 7
  %v3174 = vsub.s32 %v1457, %v3173
  %v3175 = vrot.slane %v2769, %v3174
  %v3176 = vsel %vm1462, %v3175, %v3171
  %v3177 = vlaneseq
  %v3178 = vshrl.u32 %v3177, 7
  %v3179 = vsub.s32 %v1464, %v3178
  %v3180 = vrot.slane %v2771, %v3179
  %v3181 = vsel %vm1469, %v3180, %v3176
  %v3182 = vlaneseq
  %v3183 = vshrl.u32 %v3182, 7
  %v3184 = vsub.s32 %v1471, %v3183
  %v3185 = vrot.slane %v2773, %v3184
  %v3186 = vsel %vm1476, %v3185, %v3181
  %v3187 = vlaneseq
  %v3188 = vshrl.u32 %v3187, 7
  %v3189 = vsub.s32 %v1478, %v3188
  %v3190 = vrot.slane %v2775, %v3189
  %v3191 = vsel %vm1483, %v3190, %v3186
  %v3192 = vlaneseq
  %v3193 = vshrl.u32 %v3192, 7
  %v3194 = vsub.s32 %v1485, %v3193
  %v3195 = vrot.slane %v2777, %v3194
  %v3196 = vsel %vm1490, %v3195, %v3191
  %v3197 = vlaneseq
  %v3198 = vshrl.u32 %v3197, 7
  %v3199 = vsub.s32 %v1492, %v3198
  %v3200 = vrot.slane %v2779, %v3199
  %v3201 = vsel %vm1497, %v3200, %v3196
  %v3202 = vlaneseq
  %v3203 = vshrl.u32 %v3202, 7
  %v3204 = vsub.s32 %v1499, %v3203
  %v3205 = vrot.slane %v2781, %v3204
  %v3206 = vsel %vm1504, %v3205, %v3201
  %v3207 = vlaneseq
  %v3208 = vshrl.u32 %v3207, 7
  %v3209 = vsub.s32 %v1506, %v3208
  %v3210 = vrot.slane %v2783, %v3209
  %v3211 = vsel %vm1511, %v3210, %v3206
  %v3212 = vlaneseq
  %v3213 = vshrl.u32 %v3212, 7
  %v3214 = vsub.s32 %v1513, %v3213
  %v3215 = vrot.slane %v2785, %v3214
  %v3216 = vsel %vm1518, %v3215, %v3211
  %v3217 = vlaneseq
  %v3218 = vshrl.u32 %v3217, 7
  %v3219 = vsub.s32 %v1410, %v3218
  %v3220 = vrot.slane %v2787, %v3219
  %v3221 = vlaneseq
  %v3222 = vshrl.u32 %v3221, 7
  %v3223 = vsub.s32 %v1415, %v3222
  %v3224 = vrot.slane %v2789, %v3223
  %v3225 = vsel %vm1420, %v3224, %v3220
  %v3226 = vlaneseq
  %v3227 = vshrl.u32 %v3226, 7
  %v3228 = vsub.s32 %v1422, %v3227
  %v3229 = vrot.slane %v2791, %v3228
  %v3230 = vsel %vm1427, %v3229, %v3225
  %v3231 = vlaneseq
  %v3232 = vshrl.u32 %v3231, 7
  %v3233 = vsub.s32 %v1429, %v3232
  %v3234 = vrot.slane %v2793, %v3233
  %v3235 = vsel %vm1434, %v3234, %v3230
  %v3236 = vlaneseq
  %v3237 = vshrl.u32 %v3236, 7
  %v3238 = vsub.s32 %v1436, %v3237
  %v3239 = vrot.slane %v2795, %v3238
  %v3240 = vsel %vm1441, %v3239, %v3235
  %v3241 = vlaneseq
  %v3242 = vshrl.u32 %v3241, 7
  %v3243 = vsub.s32 %v1443, %v3242
  %v3244 = vrot.slane %v2797, %v3243
  %v3245 = vsel %vm1448, %v3244, %v3240
  %v3246 = vlaneseq
  %v3247 = vshrl.u32 %v3246, 7
  %v3248 = vsub.s32 %v1450, %v3247
  %v3249 = vrot.slane %v2799, %v3248
  %v3250 = vsel %vm1455, %v3249, %v3245
  %v3251 = vlaneseq
  %v3252 = vshrl.u32 %v3251, 7
  %v3253 = vsub.s32 %v1457, %v3252
  %v3254 = vrot.slane %v2801, %v3253
  %v3255 = vsel %vm1462, %v3254, %v3250
  %v3256 = vlaneseq
  %v3257 = vshrl.u32 %v3256, 7
  %v3258 = vsub.s32 %v1464, %v3257
  %v3259 = vrot.slane %v2803, %v3258
  %v3260 = vsel %vm1469, %v3259, %v3255
  %v3261 = vlaneseq
  %v3262 = vshrl.u32 %v3261, 7
  %v3263 = vsub.s32 %v1471, %v3262
  %v3264 = vrot.slane %v2805, %v3263
  %v3265 = vsel %vm1476, %v3264, %v3260
  %v3266 = vlaneseq
  %v3267 = vshrl.u32 %v3266, 7
  %v3268 = vsub.s32 %v1478, %v3267
  %v3269 = vrot.slane %v2807, %v3268
  %v3270 = vsel %vm1483, %v3269, %v3265
  %v3271 = vlaneseq
  %v3272 = vshrl.u32 %v3271, 7
  %v3273 = vsub.s32 %v1485, %v3272
  %v3274 = vrot.slane %v2809, %v3273
  %v3275 = vsel %vm1490, %v3274, %v3270
  %v3276 = vlaneseq
  %v3277 = vshrl.u32 %v3276, 7
  %v3278 = vsub.s32 %v1492, %v3277
  %v3279 = vrot.slane %v2811, %v3278
  %v3280 = vsel %vm1497, %v3279, %v3275
  %v3281 = vlaneseq
  %v3282 = vshrl.u32 %v3281, 7
  %v3283 = vsub.s32 %v1499, %v3282
  %v3284 = vrot.slane %v2813, %v3283
  %v3285 = vsel %vm1504, %v3284, %v3280
  %v3286 = vlaneseq
  %v3287 = vshrl.u32 %v3286, 7
  %v3288 = vsub.s32 %v1506, %v3287
  %v3289 = vrot.slane %v2815, %v3288
  %v3290 = vsel %vm1511, %v3289, %v3285
  %v3291 = vlaneseq
  %v3292 = vshrl.u32 %v3291, 7
  %v3293 = vsub.s32 %v1513, %v3292
  %v3294 = vrot.slane %v2817, %v3293
  %v3295 = vsel %vm1518, %v3294, %v3290
  %v3296 = vlaneseq
  %v3297 = vshrl.u32 %v3296, 7
  %v3298 = vsub.s32 %v1410, %v3297
  %v3299 = vrot.slane %v2819, %v3298
  %v3300 = vlaneseq
  %v3301 = vshrl.u32 %v3300, 7
  %v3302 = vsub.s32 %v1415, %v3301
  %v3303 = vrot.slane %v2821, %v3302
  %v3304 = vsel %vm1420, %v3303, %v3299
  %v3305 = vlaneseq
  %v3306 = vshrl.u32 %v3305, 7
  %v3307 = vsub.s32 %v1422, %v3306
  %v3308 = vrot.slane %v2823, %v3307
  %v3309 = vsel %vm1427, %v3308, %v3304
  %v3310 = vlaneseq
  %v3311 = vshrl.u32 %v3310, 7
  %v3312 = vsub.s32 %v1429, %v3311
  %v3313 = vrot.slane %v2825, %v3312
  %v3314 = vsel %vm1434, %v3313, %v3309
  %v3315 = vlaneseq
  %v3316 = vshrl.u32 %v3315, 7
  %v3317 = vsub.s32 %v1436, %v3316
  %v3318 = vrot.slane %v2827, %v3317
  %v3319 = vsel %vm1441, %v3318, %v3314
  %v3320 = vlaneseq
  %v3321 = vshrl.u32 %v3320, 7
  %v3322 = vsub.s32 %v1443, %v3321
  %v3323 = vrot.slane %v2829, %v3322
  %v3324 = vsel %vm1448, %v3323, %v3319
  %v3325 = vlaneseq
  %v3326 = vshrl.u32 %v3325, 7
  %v3327 = vsub.s32 %v1450, %v3326
  %v3328 = vrot.slane %v2831, %v3327
  %v3329 = vsel %vm1455, %v3328, %v3324
  %v3330 = vlaneseq
  %v3331 = vshrl.u32 %v3330, 7
  %v3332 = vsub.s32 %v1457, %v3331
  %v3333 = vrot.slane %v2833, %v3332
  %v3334 = vsel %vm1462, %v3333, %v3329
  %v3335 = vlaneseq
  %v3336 = vshrl.u32 %v3335, 7
  %v3337 = vsub.s32 %v1464, %v3336
  %v3338 = vrot.slane %v2835, %v3337
  %v3339 = vsel %vm1469, %v3338, %v3334
  %v3340 = vlaneseq
  %v3341 = vshrl.u32 %v3340, 7
  %v3342 = vsub.s32 %v1471, %v3341
  %v3343 = vrot.slane %v2837, %v3342
  %v3344 = vsel %vm1476, %v3343, %v3339
  %v3345 = vlaneseq
  %v3346 = vshrl.u32 %v3345, 7
  %v3347 = vsub.s32 %v1478, %v3346
  %v3348 = vrot.slane %v2839, %v3347
  %v3349 = vsel %vm1483, %v3348, %v3344
  %v3350 = vlaneseq
  %v3351 = vshrl.u32 %v3350, 7
  %v3352 = vsub.s32 %v1485, %v3351
  %v3353 = vrot.slane %v2841, %v3352
  %v3354 = vsel %vm1490, %v3353, %v3349
  %v3355 = vlaneseq
  %v3356 = vshrl.u32 %v3355, 7
  %v3357 = vsub.s32 %v1492, %v3356
  %v3358 = vrot.slane %v2843, %v3357
  %v3359 = vsel %vm1497, %v3358, %v3354
  %v3360 = vlaneseq
  %v3361 = vshrl.u32 %v3360, 7
  %v3362 = vsub.s32 %v1499, %v3361
  %v3363 = vrot.slane %v2845, %v3362
  %v3364 = vsel %vm1504, %v3363, %v3359
  %v3365 = vlaneseq
  %v3366 = vshrl.u32 %v3365, 7
  %v3367 = vsub.s32 %v1506, %v3366
  %v3368 = vrot.slane %v2847, %v3367
  %v3369 = vsel %vm1511, %v3368, %v3364
  %v3370 = vlaneseq
  %v3371 = vshrl.u32 %v3370, 7
  %v3372 = vsub.s32 %v1513, %v3371
  %v3373 = vrot.slane %v2849, %v3372
  %v3374 = vsel %vm1518, %v3373, %v3369
  %v3375 = vlaneseq
  %v3376 = vshrl.u32 %v3375, 7
  %v3377 = vsub.s32 %v1410, %v3376
  %v3378 = vrot.slane %v2851, %v3377
  %v3379 = vlaneseq
  %v3380 = vshrl.u32 %v3379, 7
  %v3381 = vsub.s32 %v1415, %v3380
  %v3382 = vrot.slane %v2853, %v3381
  %v3383 = vsel %vm1420, %v3382, %v3378
  %v3384 = vlaneseq
  %v3385 = vshrl.u32 %v3384, 7
  %v3386 = vsub.s32 %v1422, %v3385
  %v3387 = vrot.slane %v2855, %v3386
  %v3388 = vsel %vm1427, %v3387, %v3383
  %v3389 = vlaneseq
  %v3390 = vshrl.u32 %v3389, 7
  %v3391 = vsub.s32 %v1429, %v3390
  %v3392 = vrot.slane %v2857, %v3391
  %v3393 = vsel %vm1434, %v3392, %v3388
  %v3394 = vlaneseq
  %v3395 = vshrl.u32 %v3394, 7
  %v3396 = vsub.s32 %v1436, %v3395
  %v3397 = vrot.slane %v2859, %v3396
  %v3398 = vsel %vm1441, %v3397, %v3393
  %v3399 = vlaneseq
  %v3400 = vshrl.u32 %v3399, 7
  %v3401 = vsub.s32 %v1443, %v3400
  %v3402 = vrot.slane %v2861, %v3401
  %v3403 = vsel %vm1448, %v3402, %v3398
  %v3404 = vlaneseq
  %v3405 = vshrl.u32 %v3404, 7
  %v3406 = vsub.s32 %v1450, %v3405
  %v3407 = vrot.slane %v2863, %v3406
  %v3408 = vsel %vm1455, %v3407, %v3403
  %v3409 = vlaneseq
  %v3410 = vshrl.u32 %v3409, 7
  %v3411 = vsub.s32 %v1457, %v3410
  %v3412 = vrot.slane %v2865, %v3411
  %v3413 = vsel %vm1462, %v3412, %v3408
  %v3414 = vlaneseq
  %v3415 = vshrl.u32 %v3414, 7
  %v3416 = vsub.s32 %v1464, %v3415
  %v3417 = vrot.slane %v2867, %v3416
  %v3418 = vsel %vm1469, %v3417, %v3413
  %v3419 = vlaneseq
  %v3420 = vshrl.u32 %v3419, 7
  %v3421 = vsub.s32 %v1471, %v3420
  %v3422 = vrot.slane %v2869, %v3421
  %v3423 = vsel %vm1476, %v3422, %v3418
  %v3424 = vlaneseq
  %v3425 = vshrl.u32 %v3424, 7
  %v3426 = vsub.s32 %v1478, %v3425
  %v3427 = vrot.slane %v2871, %v3426
  %v3428 = vsel %vm1483, %v3427, %v3423
  %v3429 = vlaneseq
  %v3430 = vshrl.u32 %v3429, 7
  %v3431 = vsub.s32 %v1485, %v3430
  %v3432 = vrot.slane %v2873, %v3431
  %v3433 = vsel %vm1490, %v3432, %v3428
  %v3434 = vlaneseq
  %v3435 = vshrl.u32 %v3434, 7
  %v3436 = vsub.s32 %v1492, %v3435
  %v3437 = vrot.slane %v2875, %v3436
  %v3438 = vsel %vm1497, %v3437, %v3433
  %v3439 = vlaneseq
  %v3440 = vshrl.u32 %v3439, 7
  %v3441 = vsub.s32 %v1499, %v3440
  %v3442 = vrot.slane %v2877, %v3441
  %v3443 = vsel %vm1504, %v3442, %v3438
  %v3444 = vlaneseq
  %v3445 = vshrl.u32 %v3444, 7
  %v3446 = vsub.s32 %v1506, %v3445
  %v3447 = vrot.slane %v2879, %v3446
  %v3448 = vsel %vm1511, %v3447, %v3443
  %v3449 = vlaneseq
  %v3450 = vshrl.u32 %v3449, 7
  %v3451 = vsub.s32 %v1513, %v3450
  %v3452 = vrot.slane %v2881, %v3451
  %v3453 = vsel %vm1518, %v3452, %v3448
  %v3454 = vlaneseq
  %v3455 = vshrl.u32 %v3454, 7
  %v3456 = vsub.s32 %v1410, %v3455
  %v3457 = vrot.slane %v2883, %v3456
  %v3458 = vlaneseq
  %v3459 = vshrl.u32 %v3458, 7
  %v3460 = vsub.s32 %v1415, %v3459
  %v3461 = vrot.slane %v2885, %v3460
  %v3462 = vsel %vm1420, %v3461, %v3457
  %v3463 = vlaneseq
  %v3464 = vshrl.u32 %v3463, 7
  %v3465 = vsub.s32 %v1422, %v3464
  %v3466 = vrot.slane %v2887, %v3465
  %v3467 = vsel %vm1427, %v3466, %v3462
  %v3468 = vlaneseq
  %v3469 = vshrl.u32 %v3468, 7
  %v3470 = vsub.s32 %v1429, %v3469
  %v3471 = vrot.slane %v2889, %v3470
  %v3472 = vsel %vm1434, %v3471, %v3467
  %v3473 = vlaneseq
  %v3474 = vshrl.u32 %v3473, 7
  %v3475 = vsub.s32 %v1436, %v3474
  %v3476 = vrot.slane %v2891, %v3475
  %v3477 = vsel %vm1441, %v3476, %v3472
  %v3478 = vlaneseq
  %v3479 = vshrl.u32 %v3478, 7
  %v3480 = vsub.s32 %v1443, %v3479
  %v3481 = vrot.slane %v2893, %v3480
  %v3482 = vsel %vm1448, %v3481, %v3477
  %v3483 = vlaneseq
  %v3484 = vshrl.u32 %v3483, 7
  %v3485 = vsub.s32 %v1450, %v3484
  %v3486 = vrot.slane %v2895, %v3485
  %v3487 = vsel %vm1455, %v3486, %v3482
  %v3488 = vlaneseq
  %v3489 = vshrl.u32 %v3488, 7
  %v3490 = vsub.s32 %v1457, %v3489
  %v3491 = vrot.slane %v2897, %v3490
  %v3492 = vsel %vm1462, %v3491, %v3487
  %v3493 = vlaneseq
  %v3494 = vshrl.u32 %v3493, 7
  %v3495 = vsub.s32 %v1464, %v3494
  %v3496 = vrot.slane %v2899, %v3495
  %v3497 = vsel %vm1469, %v3496, %v3492
  %v3498 = vlaneseq
  %v3499 = vshrl.u32 %v3498, 7
  %v3500 = vsub.s32 %v1471, %v3499
  %v3501 = vrot.slane %v2901, %v3500
  %v3502 = vsel %vm1476, %v3501, %v3497
  %v3503 = vlaneseq
  %v3504 = vshrl.u32 %v3503, 7
  %v3505 = vsub.s32 %v1478, %v3504
  %v3506 = vrot.slane %v2903, %v3505
  %v3507 = vsel %vm1483, %v3506, %v3502
  %v3508 = vlaneseq
  %v3509 = vshrl.u32 %v3508, 7
  %v3510 = vsub.s32 %v1485, %v3509
  %v3511 = vrot.slane %v2905, %v3510
  %v3512 = vsel %vm1490, %v3511, %v3507
  %v3513 = vlaneseq
  %v3514 = vshrl.u32 %v3513, 7
  %v3515 = vsub.s32 %v1492, %v3514
  %v3516 = vrot.slane %v2907, %v3515
  %v3517 = vsel %vm1497, %v3516, %v3512
  %v3518 = vlaneseq
  %v3519 = vshrl.u32 %v3518, 7
  %v3520 = vsub.s32 %v1499, %v3519
  %v3521 = vrot.slane %v2909, %v3520
  %v3522 = vsel %vm1504, %v3521, %v3517
  %v3523 = vlaneseq
  %v3524 = vshrl.u32 %v3523, 7
  %v3525 = vsub.s32 %v1506, %v3524
  %v3526 = vrot.slane %v2911, %v3525
  %v3527 = vsel %vm1511, %v3526, %v3522
  %v3528 = vlaneseq
  %v3529 = vshrl.u32 %v3528, 7
  %v3530 = vsub.s32 %v1513, %v3529
  %v3531 = vrot.slane %v2913, %v3530
  %v3532 = vsel %vm1518, %v3531, %v3527
  %v3533 = vlaneseq
  %v3534 = vshrl.u32 %v3533, 7
  %v3535 = vsub.s32 %v1410, %v3534
  %v3536 = vrot.slane %v2915, %v3535
  %v3537 = vlaneseq
  %v3538 = vshrl.u32 %v3537, 7
  %v3539 = vsub.s32 %v1415, %v3538
  %v3540 = vrot.slane %v2917, %v3539
  %v3541 = vsel %vm1420, %v3540, %v3536
  %v3542 = vlaneseq
  %v3543 = vshrl.u32 %v3542, 7
  %v3544 = vsub.s32 %v1422, %v3543
  %v3545 = vrot.slane %v2919, %v3544
  %v3546 = vsel %vm1427, %v3545, %v3541
  %v3547 = vlaneseq
  %v3548 = vshrl.u32 %v3547, 7
  %v3549 = vsub.s32 %v1429, %v3548
  %v3550 = vrot.slane %v2921, %v3549
  %v3551 = vsel %vm1434, %v3550, %v3546
  %v3552 = vlaneseq
  %v3553 = vshrl.u32 %v3552, 7
  %v3554 = vsub.s32 %v1436, %v3553
  %v3555 = vrot.slane %v2923, %v3554
  %v3556 = vsel %vm1441, %v3555, %v3551
  %v3557 = vlaneseq
  %v3558 = vshrl.u32 %v3557, 7
  %v3559 = vsub.s32 %v1443, %v3558
  %v3560 = vrot.slane %v2925, %v3559
  %v3561 = vsel %vm1448, %v3560, %v3556
  %v3562 = vlaneseq
  %v3563 = vshrl.u32 %v3562, 7
  %v3564 = vsub.s32 %v1450, %v3563
  %v3565 = vrot.slane %v2927, %v3564
  %v3566 = vsel %vm1455, %v3565, %v3561
  %v3567 = vlaneseq
  %v3568 = vshrl.u32 %v3567, 7
  %v3569 = vsub.s32 %v1457, %v3568
  %v3570 = vrot.slane %v2929, %v3569
  %v3571 = vsel %vm1462, %v3570, %v3566
  %v3572 = vlaneseq
  %v3573 = vshrl.u32 %v3572, 7
  %v3574 = vsub.s32 %v1464, %v3573
  %v3575 = vrot.slane %v2931, %v3574
  %v3576 = vsel %vm1469, %v3575, %v3571
  %v3577 = vlaneseq
  %v3578 = vshrl.u32 %v3577, 7
  %v3579 = vsub.s32 %v1471, %v3578
  %v3580 = vrot.slane %v2933, %v3579
  %v3581 = vsel %vm1476, %v3580, %v3576
  %v3582 = vlaneseq
  %v3583 = vshrl.u32 %v3582, 7
  %v3584 = vsub.s32 %v1478, %v3583
  %v3585 = vrot.slane %v2935, %v3584
  %v3586 = vsel %vm1483, %v3585, %v3581
  %v3587 = vlaneseq
  %v3588 = vshrl.u32 %v3587, 7
  %v3589 = vsub.s32 %v1485, %v3588
  %v3590 = vrot.slane %v2937, %v3589
  %v3591 = vsel %vm1490, %v3590, %v3586
  %v3592 = vlaneseq
  %v3593 = vshrl.u32 %v3592, 7
  %v3594 = vsub.s32 %v1492, %v3593
  %v3595 = vrot.slane %v2939, %v3594
  %v3596 = vsel %vm1497, %v3595, %v3591
  %v3597 = vlaneseq
  %v3598 = vshrl.u32 %v3597, 7
  %v3599 = vsub.s32 %v1499, %v3598
  %v3600 = vrot.slane %v2941, %v3599
  %v3601 = vsel %vm1504, %v3600, %v3596
  %v3602 = vlaneseq
  %v3603 = vshrl.u32 %v3602, 7
  %v3604 = vsub.s32 %v1506, %v3603
  %v3605 = vrot.slane %v2943, %v3604
  %v3606 = vsel %vm1511, %v3605, %v3601
  %v3607 = vlaneseq
  %v3608 = vshrl.u32 %v3607, 7
  %v3609 = vsub.s32 %v1513, %v3608
  %v3610 = vrot.slane %v2945, %v3609
  %v3611 = vsel %vm1518, %v3610, %v3606
  %v3612 = vlaneseq
  %v3613 = vshrl.u32 %v3612, 7
  %v3614 = vsub.s32 %v1410, %v3613
  %v3615 = vrot.slane %v2947, %v3614
  %v3616 = vlaneseq
  %v3617 = vshrl.u32 %v3616, 7
  %v3618 = vsub.s32 %v1415, %v3617
  %v3619 = vrot.slane %v2949, %v3618
  %v3620 = vsel %vm1420, %v3619, %v3615
  %v3621 = vlaneseq
  %v3622 = vshrl.u32 %v3621, 7
  %v3623 = vsub.s32 %v1422, %v3622
  %v3624 = vrot.slane %v2951, %v3623
  %v3625 = vsel %vm1427, %v3624, %v3620
  %v3626 = vlaneseq
  %v3627 = vshrl.u32 %v3626, 7
  %v3628 = vsub.s32 %v1429, %v3627
  %v3629 = vrot.slane %v2953, %v3628
  %v3630 = vsel %vm1434, %v3629, %v3625
  %v3631 = vlaneseq
  %v3632 = vshrl.u32 %v3631, 7
  %v3633 = vsub.s32 %v1436, %v3632
  %v3634 = vrot.slane %v2955, %v3633
  %v3635 = vsel %vm1441, %v3634, %v3630
  %v3636 = vlaneseq
  %v3637 = vshrl.u32 %v3636, 7
  %v3638 = vsub.s32 %v1443, %v3637
  %v3639 = vrot.slane %v2957, %v3638
  %v3640 = vsel %vm1448, %v3639, %v3635
  %v3641 = vlaneseq
  %v3642 = vshrl.u32 %v3641, 7
  %v3643 = vsub.s32 %v1450, %v3642
  %v3644 = vrot.slane %v2959, %v3643
  %v3645 = vsel %vm1455, %v3644, %v3640
  %v3646 = vlaneseq
  %v3647 = vshrl.u32 %v3646, 7
  %v3648 = vsub.s32 %v1457, %v3647
  %v3649 = vrot.slane %v2961, %v3648
  %v3650 = vsel %vm1462, %v3649, %v3645
  %v3651 = vlaneseq
  %v3652 = vshrl.u32 %v3651, 7
  %v3653 = vsub.s32 %v1464, %v3652
  %v3654 = vrot.slane %v2963, %v3653
  %v3655 = vsel %vm1469, %v3654, %v3650
  %v3656 = vlaneseq
  %v3657 = vshrl.u32 %v3656, 7
  %v3658 = vsub.s32 %v1471, %v3657
  %v3659 = vrot.slane %v2965, %v3658
  %v3660 = vsel %vm1476, %v3659, %v3655
  %v3661 = vlaneseq
  %v3662 = vshrl.u32 %v3661, 7
  %v3663 = vsub.s32 %v1478, %v3662
  %v3664 = vrot.slane %v2967, %v3663
  %v3665 = vsel %vm1483, %v3664, %v3660
  %v3666 = vlaneseq
  %v3667 = vshrl.u32 %v3666, 7
  %v3668 = vsub.s32 %v1485, %v3667
  %v3669 = vrot.slane %v2969, %v3668
  %v3670 = vsel %vm1490, %v3669, %v3665
  %v3671 = vlaneseq
  %v3672 = vshrl.u32 %v3671, 7
  %v3673 = vsub.s32 %v1492, %v3672
  %v3674 = vrot.slane %v2971, %v3673
  %v3675 = vsel %vm1497, %v3674, %v3670
  %v3676 = vlaneseq
  %v3677 = vshrl.u32 %v3676, 7
  %v3678 = vsub.s32 %v1499, %v3677
  %v3679 = vrot.slane %v2973, %v3678
  %v3680 = vsel %vm1504, %v3679, %v3675
  %v3681 = vlaneseq
  %v3682 = vshrl.u32 %v3681, 7
  %v3683 = vsub.s32 %v1506, %v3682
  %v3684 = vrot.slane %v2975, %v3683
  %v3685 = vsel %vm1511, %v3684, %v3680
  %v3686 = vlaneseq
  %v3687 = vshrl.u32 %v3686, 7
  %v3688 = vsub.s32 %v1513, %v3687
  %v3689 = vrot.slane %v2977, %v3688
  %v3690 = vsel %vm1518, %v3689, %v3685
  %v3691 = vlaneseq
  %v3692 = vshrl.u32 %v3691, 7
  %v3693 = vsub.s32 %v1410, %v3692
  %v3694 = vrot.slane %v2979, %v3693
  %v3695 = vlaneseq
  %v3696 = vshrl.u32 %v3695, 7
  %v3697 = vsub.s32 %v1415, %v3696
  %v3698 = vrot.slane %v2981, %v3697
  %v3699 = vsel %vm1420, %v3698, %v3694
  %v3700 = vlaneseq
  %v3701 = vshrl.u32 %v3700, 7
  %v3702 = vsub.s32 %v1422, %v3701
  %v3703 = vrot.slane %v2983, %v3702
  %v3704 = vsel %vm1427, %v3703, %v3699
  %v3705 = vlaneseq
  %v3706 = vshrl.u32 %v3705, 7
  %v3707 = vsub.s32 %v1429, %v3706
  %v3708 = vrot.slane %v2985, %v3707
  %v3709 = vsel %vm1434, %v3708, %v3704
  %v3710 = vlaneseq
  %v3711 = vshrl.u32 %v3710, 7
  %v3712 = vsub.s32 %v1436, %v3711
  %v3713 = vrot.slane %v2987, %v3712
  %v3714 = vsel %vm1441, %v3713, %v3709
  %v3715 = vlaneseq
  %v3716 = vshrl.u32 %v3715, 7
  %v3717 = vsub.s32 %v1443, %v3716
  %v3718 = vrot.slane %v2989, %v3717
  %v3719 = vsel %vm1448, %v3718, %v3714
  %v3720 = vlaneseq
  %v3721 = vshrl.u32 %v3720, 7
  %v3722 = vsub.s32 %v1450, %v3721
  %v3723 = vrot.slane %v2991, %v3722
  %v3724 = vsel %vm1455, %v3723, %v3719
  %v3725 = vlaneseq
  %v3726 = vshrl.u32 %v3725, 7
  %v3727 = vsub.s32 %v1457, %v3726
  %v3728 = vrot.slane %v2993, %v3727
  %v3729 = vsel %vm1462, %v3728, %v3724
  %v3730 = vlaneseq
  %v3731 = vshrl.u32 %v3730, 7
  %v3732 = vsub.s32 %v1464, %v3731
  %v3733 = vrot.slane %v2995, %v3732
  %v3734 = vsel %vm1469, %v3733, %v3729
  %v3735 = vlaneseq
  %v3736 = vshrl.u32 %v3735, 7
  %v3737 = vsub.s32 %v1471, %v3736
  %v3738 = vrot.slane %v2997, %v3737
  %v3739 = vsel %vm1476, %v3738, %v3734
  %v3740 = vlaneseq
  %v3741 = vshrl.u32 %v3740, 7
  %v3742 = vsub.s32 %v1478, %v3741
  %v3743 = vrot.slane %v2999, %v3742
  %v3744 = vsel %vm1483, %v3743, %v3739
  %v3745 = vlaneseq
  %v3746 = vshrl.u32 %v3745, 7
  %v3747 = vsub.s32 %v1485, %v3746
  %v3748 = vrot.slane %v3001, %v3747
  %v3749 = vsel %vm1490, %v3748, %v3744
  %v3750 = vlaneseq
  %v3751 = vshrl.u32 %v3750, 7
  %v3752 = vsub.s32 %v1492, %v3751
  %v3753 = vrot.slane %v3003, %v3752
  %v3754 = vsel %vm1497, %v3753, %v3749
  %v3755 = vlaneseq
  %v3756 = vshrl.u32 %v3755, 7
  %v3757 = vsub.s32 %v1499, %v3756
  %v3758 = vrot.slane %v3005, %v3757
  %v3759 = vsel %vm1504, %v3758, %v3754
  %v3760 = vlaneseq
  %v3761 = vshrl.u32 %v3760, 7
  %v3762 = vsub.s32 %v1506, %v3761
  %v3763 = vrot.slane %v3007, %v3762
  %v3764 = vsel %vm1511, %v3763, %v3759
  %v3765 = vlaneseq
  %v3766 = vshrl.u32 %v3765, 7
  %v3767 = vsub.s32 %v1513, %v3766
  %v3768 = vrot.slane %v3009, %v3767
  %v3769 = vsel %vm1518, %v3768, %v3764
  %v3770 = vsel %vm2073, %v3295, %v3216
  %v3771 = vsel %vm2075, %v3374, %v3770
  %v3772 = vsel %vm2077, %v3453, %v3771
  %v3773 = vsel %vm2079, %v3532, %v3772
  %v3774 = vsel %vm2081, %v3611, %v3773
  %v3775 = vsel %vm2083, %v3690, %v3774
  %v3776 = vsel %vm2085, %v3769, %v3775
  %v3778 = vadd.f32 %v2497, %v3776
  %3779 = vst [vmem:[#allocation3] sm:$0xff] %v3778
  %v3780 = vld [vmem:[#allocation3] sm:$0xff]
  %v3781 = vld [vmem:[#allocation2] sm:$0xff]
  %vm3782 = vcmp.lt.f32.partialorder %v3780, %v3781
  %vm3783 = vmand %vm14, %vm3782
  %v3784 = vsel %vm3783, 1, 0
  %v3785 = vcvt.s32.f32 %v3784
  %3786 = vadd.xlane.f32.xlu0 %v3785
  %v3787 = vpop.xlane.xlu0 %3786
  %v3788 = vsel %vm14, 1, 0
  %v3789 = vcvt.s32.f32 %v3788
  %3790 = vadd.xlane.f32.xlu0 %v3789
  %v3791 = vpop.xlane.xlu0 %3790
  %v3792 = vld [vmem:[%s0] sm:$0xff]
  %vm3793 = vcmp.ne.s32.totalorder %v3792, 0
  %vm3794 = vcmp.ne.s32.totalorder %v3792, 1
  %vm3795 = vmand %vm3793, %vm3794
  %v3796 = vsel %vm3795, 1, 0
  %v3797 = vcvt.s32.f32 %v3796
  %3798 = vadd.xlane.f32.xlu0 %v3797
  %v3799 = vpop.xlane.xlu0 %3798
  %v3800 = vadd.f32 %v3799, %v3791
  %v3801 = vmax.f32 %v3800, 1.0
  %v3802 = vrcp.pop %v3801
  %vm3803 = vcmp.gt.f32.partialorder %v3787, 0.0
  %v3804 = vmul.f32 %v3787, 2.0
  %v3805 = vmul.f32 %v3804, %v3802
  %v3806 = vsel %vm3803, %v3805, 0.0
  %vm3807 = vcmask 7168
  %3808 = vst.msk [vmem:[%s2] sm:$0xff] %vm3807, %v3806
  // Predicated region
  $region10: #{rouge1_score_forward.1} parent=0 // pred_check
    _
  $region11: #{rouge1_score_forward.1} parent=0 // pred_check_branch
    %3810 = sbr.rel (0) target = $region13
  $region12: #{rouge1_score_forward.1} parent=0 // pred_region
    _
  $region13: #{rouge1_score_forward.1} parent=0 // pred_fallthru
    _
  // Predicated region
  $region14: #{rouge1_score_forward.1} parent=0 // pred_check
    _
  $region15: #{rouge1_score_forward.1} parent=0 // pred_check_branch
    %3812 = sbr.rel (0) target = $region17
  $region16: #{rouge1_score_forward.1} parent=0 // pred_region
    _
  $region17: #{rouge1_score_forward.1} parent=0 // pred_fallthru
    _

</llo_original>
